<compile_context>
chip_gen: v7x
topology: tpu7x:2x2x1
jax: 0.10.0
libtpu: 0.0.40
codegen_flags: <defaults>
</compile_context>

<pallas_src>
import functools

import jax
import jax.numpy as jnp
from jax.experimental import pallas as pl
from jax.experimental.pallas import tpu as pltpu

EPS = 1e-5  # PyTorch BatchNorm3d default eps


def _round_up(x, m):
    return (x + m - 1) // m * m


def _vmem_limit_bytes():
    cap = 128 * 1024 * 1024
    try:
        info = pltpu.get_tpu_info()
        cap = int(getattr(info, "vmem_capacity_bytes", cap))
    except Exception:
        pass
    # ~75% of physical VMEM, capped: -> ~48 MiB on v7x (64 MiB/core), ~96 MiB on v5e/v6e.
    return max(32 * 1024 * 1024, min(cap * 3 // 4, 112 * 1024 * 1024))


def _pick_row_tile(ho, wo, target_rows=512):
    """Largest even divisor `th` of ho with th*wo <= target_rows (min 2)."""
    best = 2
    for t in range(2, ho + 1, 2):
        if ho % t == 0 and t * wo <= target_rows:
            best = t
    return best


def _pick_spatial_tile(spatial, target=2048):
    """Divisor of `spatial` that is a multiple of 128 (lane-dense transposed store)."""
    if spatial <= target:
        return spatial
    if spatial % 128 == 0:
        best = 128
        for t in range(128, target + 1, 128):
            if spatial % t == 0:
                best = t
        return best
    return spatial  # rare non-128-divisible shapes: whole slab (block == full dim)


def _repeat2_rows(x):
    """(A, ...) -> (2A, ...), duplicating each leading row (nearest upsample along H)."""
    a = x.shape[0]
    y = jnp.broadcast_to(x[:, None], (a, 2) + x.shape[1:])
    return y.reshape((2 * a,) + x.shape[1:])


def _conv_kernel(x_lo_ref, x_mid_ref, x_hi_ref, w_even_ref, w_odd_ref, b_ref,
                 y_ref, sum_ref, m2_ref, patch_ref,
                 *, ho, wo, cin, th, ntiles):
    """One source depth plane -> two output depth planes (od=2d, 2d+1).

    x_*_ref : (H+2, 2W+2, Cin) bf16 padded source planes d, d+1, d+2 (W pre-doubled).
    w_*_ref : (18*Cin, Coutp) bf16 depth-parity-merged weights.
    y_ref   : (2*Ho*Wo, Coutp) bf16 conv+bias output (both planes).
    sum/m2  : (S, Coutp) f32 per-(plane, row-tile) BatchNorm partials.
    patch   : (th*Wo, 18*Cin) bf16 VMEM scratch for the single-dot patch.
    """
    howo = ho * wo
    rows = th * wo
    half = th // 2
    nsrc = half + 2
    inv_cnt = 1.0 / rows
    bias = b_ref[...]                                   # (1, Coutp) f32

    def tile_body(t):
        r0 = t * half                                   # padded source row start

        def stage(xref):
            # Small per-tile staging in f32 (layout-robust slicing / reshape);
            # H nearest-upsample == row duplication on the leading axis.
            src = xref[pl.ds(r0, nsrc), :, :].astype(jnp.float32)
            return _repeat2_rows(src)                   # (th + 4, 2W+2, Cin)

        s_lo = stage(x_lo_ref)
        s_mid = stage(x_mid_ref)
        s_hi = stage(x_hi_ref)

        for p, (g_lo, g_hi, w_ref) in enumerate(
                ((s_lo, s_mid, w_even_ref), (s_mid, s_hi, w_odd_ref))):
            # Assemble the (rows, 18*Cin) bf16 patch, then ONE MXU dot (K = 18*Cin).
            col = 0
            for g in (g_lo, g_hi):
                for kh in range(3):
                    for kw in range(3):
                        piece = g[kh + 1:kh + 1 + th, kw:kw + wo, :]
                        piece = piece.reshape(rows, cin).astype(jnp.bfloat16)
                        patch_ref[:, col:col + cin] = piece
                        col += cin
            acc = jnp.dot(patch_ref[...], w_ref[...],
                          preferred_element_type=jnp.float32)   # (rows, Coutp) f32
            acc = acc + bias

            row0 = p * howo + t * rows
            if not isinstance(row0, int):
                row0 = pl.multiple_of(row0, 8)
            y_ref[pl.ds(row0, rows), :] = acc.astype(y_ref.dtype)

            # Per-(plane, row-tile) BN partials: sum and centered M2 (Chan-combinable).
            psum = jnp.sum(acc, axis=0, keepdims=True)          # (1, Coutp)
            diff = acc - psum * inv_cnt
            pm2 = jnp.sum(diff * diff, axis=0, keepdims=True)   # (1, Coutp)
            srow = p * ntiles + t
            sum_ref[pl.ds(srow, 1), :] = psum
            m2_ref[pl.ds(srow, 1), :] = pm2

    if ntiles <= 4:
        for t in range(ntiles):        # short: static unroll for LLO visibility
            tile_body(t)
    else:
        pl.loop(0, ntiles)(tile_body)  # long: bounded code size / live ranges


def _bn_relu_t_kernel(x_ref, scale_ref, shift_ref, o_ref):
    """Fused affine BN + ReLU + (tm, Coutp)->(Cout, tm) transpose (XLU slot)."""
    y = x_ref[...].astype(jnp.float32) * scale_ref[...] + shift_ref[...]
    yt = jnp.maximum(y, 0.0).T                   # (Coutp, tm)
    o_ref[...] = yt[:o_ref.shape[0], :]          # keep only real channels


def up_conv_forward(x, conv_w, conv_b, gamma, beta):
    """x: (N, Cin, D, H, W) f32 -> (N, Cout, 2D, 2H, 2W) f32 (train-mode BN)."""
    n, cin, d, h, w = x.shape
    cout = conv_w.shape[0]
    do, ho, wo = 2 * d, 2 * h, 2 * w
    assert w % 4 == 0, "W must be a multiple of 4 (tile-aligned in-kernel patch flatten)"
    coutp = _round_up(cout, 128)       # lane-dense matmul N / stores
    # TODO(synk): when cout << 128 a spatial-on-lanes / channels-on-sublanes orientation
    # (pad cout only to 8) would avoid the 128-lane padding of the bf16 intermediate.
    howo = ho * wo
    spatial = do * howo
    m = n * spatial
    hp, wp2 = h + 2, wo + 2

    th = _pick_row_tile(ho, wo)
    ntiles = ho // th
    s_rows = _round_up(2 * ntiles, 8)
    vmem_limit = _vmem_limit_bytes()

    # ---- glue: channels-last bf16, W-axis nearest-upsample, zero pad D/H at source
    #      resolution and W at upsampled resolution.  (Depth/H upsample are folded
    #      into the kernel / index maps -> no materialized x2 volume.)
    x_cl = jnp.transpose(x, (0, 2, 3, 4, 1)).astype(jnp.bfloat16)   # (N, D, H, W, Cin)
    x_wu = jnp.repeat(x_cl, 2, axis=3)                              # (N, D, H, 2W, Cin)
    xg = jnp.pad(x_wu, ((0, 0), (1, 1), (1, 1), (1, 1), (0, 0)))    # (N, D+2, H+2, 2W+2, Cin)

    # ---- weights: fold the depth-upsample duplication into two 18-tap matrices
    #      (even / odd output-depth parity); flatten for a single K = 18*Cin dot.
    w_t = jnp.transpose(conv_w, (2, 3, 4, 1, 0)).astype(jnp.float32)  # (3,3,3,Cin,Cout)
    w_even = jnp.stack([w_t[0], w_t[1] + w_t[2]], axis=0)             # (2,3,3,Cin,Cout)
    w_odd = jnp.stack([w_t[0] + w_t[1], w_t[2]], axis=0)

    def _fold(wg):
        wg = wg.reshape(18 * cin, cout)
        wg = jnp.pad(wg, ((0, 0), (0, coutp - cout)))
        return wg.astype(jnp.bfloat16)

    w_even = _fold(w_even)
    w_odd = _fold(w_odd)
    b_p = jnp.pad(conv_b, (0, coutp - cout)).reshape(1, coutp).astype(jnp.float32)

    def _xplane_spec(off):
        return pl.BlockSpec((None, None, hp, wp2, cin),
                            lambda ni, di, off=off: (ni, di + off, 0, 0, 0))

    conv_flops = 2 * m * (18 * cin) * coutp
    conv_bytes = (3 * xg.size * 2 + (w_even.size + w_odd.size) * 2
                  + m * coutp * 2 + 2 * n * d * s_rows * coutp * 4)

    conv_out, psum_all, pm2_all = pl.pallas_call(
        functools.partial(_conv_kernel, ho=ho, wo=wo, cin=cin, th=th, ntiles=ntiles),
        out_shape=(
            jax.ShapeDtypeStruct((n, spatial, coutp), jnp.bfloat16),   # conv + bias
            jax.ShapeDtypeStruct((n, d, s_rows, coutp), jnp.float32),  # BN partial sums
            jax.ShapeDtypeStruct((n, d, s_rows, coutp), jnp.float32),  # BN partial M2
        ),
        grid_spec=pltpu.PrefetchScalarGridSpec(
            num_scalar_prefetch=0,
            grid=(n, d),
            in_specs=[
                _xplane_spec(0), _xplane_spec(1), _xplane_spec(2),
                pl.BlockSpec((18 * cin, coutp), lambda ni, di: (0, 0)),  # resident
                pl.BlockSpec((18 * cin, coutp), lambda ni, di: (0, 0)),  # resident
                pl.BlockSpec((1, coutp), lambda ni, di: (0, 0)),         # resident
            ],
            out_specs=(
                pl.BlockSpec((None, 2 * howo, coutp), lambda ni, di: (ni, di, 0)),
                pl.BlockSpec((None, None, s_rows, coutp), lambda ni, di: (ni, di, 0, 0)),
                pl.BlockSpec((None, None, s_rows, coutp), lambda ni, di: (ni, di, 0, 0)),
            ),
            scratch_shapes=[pltpu.VMEM((th * wo, 18 * cin), jnp.bfloat16)],
        ),
        compiler_params=pltpu.CompilerParams(
            dimension_semantics=("parallel", "parallel"),
            vmem_limit_bytes=vmem_limit),
        cost_estimate=pl.CostEstimate(
            flops=int(conv_flops), transcendentals=0, bytes_accessed=int(conv_bytes)),
    )(xg, xg, xg, w_even, w_odd, b_p)

    # ---- BatchNorm3d training statistics from per-(plane, row-tile) partials,
    #      combined exactly with Chan's parallel-variance formula (no cancellation).
    r_stats = 2 * ntiles
    cnt = th * wo
    psum = psum_all[:, :, :r_stats, :].reshape(-1, coutp)
    pm2 = pm2_all[:, :, :r_stats, :].reshape(-1, coutp)
    total = jnp.sum(psum, axis=0)
    mean = total / m
    m2 = jnp.sum(pm2, axis=0) + cnt * jnp.sum((psum / cnt - mean) ** 2, axis=0)
    var = m2 / m                               # biased, as PyTorch BN normalization uses
    inv_std = jax.lax.rsqrt(var + EPS)
    gamma_p = jnp.pad(gamma, (0, coutp - cout)).astype(jnp.float32)
    beta_p = jnp.pad(beta, (0, coutp - cout)).astype(jnp.float32)
    scale = (gamma_p * inv_std).reshape(1, coutp)
    shift = (beta_p - mean * gamma_p * inv_std).reshape(1, coutp)

    # ---- fused BN + ReLU + channels-last -> channels-major relayout (in-kernel .T).
    tm = _pick_spatial_tile(spatial)
    bn_flops = 3 * m * coutp
    bn_bytes = m * coutp * 2 + m * cout * 4 + 2 * coutp * 4
    out_cm = pl.pallas_call(
        _bn_relu_t_kernel,
        out_shape=jax.ShapeDtypeStruct((n, cout, spatial), jnp.float32),
        grid_spec=pltpu.PrefetchScalarGridSpec(
            num_scalar_prefetch=0,
            grid=(n, spatial // tm),
            in_specs=[
                pl.BlockSpec((None, tm, coutp), lambda ni, si: (ni, si, 0)),
                pl.BlockSpec((1, coutp), lambda ni, si: (0, 0)),
                pl.BlockSpec((1, coutp), lambda ni, si: (0, 0)),
            ],
            out_specs=pl.BlockSpec((None, cout, tm), lambda ni, si: (ni, 0, si)),
        ),
        compiler_params=pltpu.CompilerParams(
            dimension_semantics=("parallel", "parallel"),
            vmem_limit_bytes=vmem_limit),
        cost_estimate=pl.CostEstimate(
            flops=int(bn_flops), transcendentals=0, bytes_accessed=int(bn_bytes)),
    )(conv_out, scale, shift)

    out = out_cm.reshape(n, cout, do, ho, wo)   # free: already channels-major (NCDHW)
    return out.astype(x.dtype)


def up_conv_reference(x, conv_w, conv_b, gamma, beta):
    """Pure-JAX reference (nearest upsample -> conv3d -> train-mode BN -> ReLU)."""
    xu = jnp.repeat(jnp.repeat(jnp.repeat(x, 2, axis=2), 2, axis=3), 2, axis=4)
    conv = jax.lax.conv_general_dilated(
        xu, conv_w, window_strides=(1, 1, 1), padding=((1, 1),) * 3,
        dimension_numbers=('NCDHW', 'OIDHW', 'NCDHW'))
    conv = conv + conv_b.reshape(1, -1, 1, 1, 1)
    mean = jnp.mean(conv, axis=(0, 2, 3, 4), keepdims=True)
    var = jnp.var(conv, axis=(0, 2, 3, 4), keepdims=True)
    y = (conv - mean) * jax.lax.rsqrt(var + EPS)
    y = y * gamma.reshape(1, -1, 1, 1, 1) + beta.reshape(1, -1, 1, 1, 1)
    return jnp.maximum(y, 0.0)


if __name__ == "__main__":
    key = jax.random.PRNGKey(0)
    k1, k2, k3, k4, k5 = jax.random.split(key, 5)

    N, CIN, COUT, D, H, W = 2, 4, 8, 4, 4, 4     # output spatial = 8x8x8
    x = jax.random.normal(k1, (N, CIN, D, H, W), jnp.float32)

    # Deterministic synthetic parameters (shapes from nn.Conv3d / nn.BatchNorm3d)
    fan_in = CIN * 3 * 3 * 3
    conv_w = jax.random.normal(k2, (COUT, CIN, 3, 3, 3), jnp.float32) / jnp.sqrt(fan_in)
    conv_b = 0.1 * jax.random.normal(k3, (COUT,), jnp.float32)
    gamma = 1.0 + 0.1 * jax.random.normal(k4, (COUT,), jnp.float32)
    beta = 0.1 * jax.random.normal(k5, (COUT,), jnp.float32)

    out = jax.jit(up_conv_forward)(x, conv_w, conv_b, gamma, beta)
    out = jax.block_until_ready(out)

    assert out.shape == (N, COUT, 2 * D, 2 * H, 2 * W)
    ref = up_conv_reference(x, conv_w, conv_b, gamma, beta)
    err = float(jnp.max(jnp.abs(out - ref)))
    assert err < 5e-2, f"mismatch vs JAX reference: {err}"

    print("KERNEL_OK")
</pallas_src>

<mosaic_0001>
module attributes {stable_mosaic.version = 11 : i64} {
  func.func @_conv_kernel(%arg0: i32, %arg1: i32, %arg2: memref<1x1x6x10x4xbf16, #tpu.memory_space<vmem>>, %arg3: memref<1x1x6x10x4xbf16, #tpu.memory_space<vmem>>, %arg4: memref<1x1x6x10x4xbf16, #tpu.memory_space<vmem>>, %arg5: memref<72x128xbf16, #tpu.memory_space<vmem>>, %arg6: memref<72x128xbf16, #tpu.memory_space<vmem>>, %arg7: memref<1x128xf32, #tpu.memory_space<vmem>>, %arg8: memref<1x128x128xbf16, #tpu.memory_space<vmem>>, %arg9: memref<1x1x8x128xf32, #tpu.memory_space<vmem>>, %arg10: memref<1x1x8x128xf32, #tpu.memory_space<vmem>>, %arg11: memref<64x72xbf16, #tpu.memory_space<vmem>>) attributes {dimension_semantics = [#tpu.dimension_semantics<parallel>, #tpu.dimension_semantics<parallel>], iteration_bounds = array<i64: 2, 4>, scalar_prefetch = 0 : i64, scratch_operands = 1 : i64, tpu.core_type = #tpu.core_type<tc>, window_params = [{transform_indices = @transform_0, window_bounds = array<i64: 1, 1, 6, 10, 4>}, {transform_indices = @transform_1, window_bounds = array<i64: 1, 1, 6, 10, 4>}, {transform_indices = @transform_2, window_bounds = array<i64: 1, 1, 6, 10, 4>}, {pipeline_mode = #tpu.pipeline_mode<synchronous>, transform_indices = @transform_3, window_bounds = array<i64: 72, 128>}, {pipeline_mode = #tpu.pipeline_mode<synchronous>, transform_indices = @transform_4, window_bounds = array<i64: 72, 128>}, {pipeline_mode = #tpu.pipeline_mode<synchronous>, transform_indices = @transform_5, window_bounds = array<i64: 1, 128>}, {transform_indices = @transform_6, window_bounds = array<i64: 1, 128, 128>}, {transform_indices = @transform_7, window_bounds = array<i64: 1, 1, 8, 128>}, {transform_indices = @transform_8, window_bounds = array<i64: 1, 1, 8, 128>}]} {
    %c0 = arith.constant 0 : index
    %c0_0 = arith.constant 0 : index
    %0 = vector.load %arg7[%c0, %c0_0] : memref<1x128xf32, #tpu.memory_space<vmem>>, vector<1x128xf32>
    %c0_1 = arith.constant 0 : index
    %c0_2 = arith.constant 0 : index
    %c0_3 = arith.constant 0 : index
    %c0_4 = arith.constant 0 : index
    %c0_5 = arith.constant 0 : index
    %1 = vector.load %arg2[%c0_1, %c0_2, %c0_3, %c0_4, %c0_5] : memref<1x1x6x10x4xbf16, #tpu.memory_space<vmem>>, vector<1x1x6x10x4xbf16>
    %2 = vector.shape_cast %1 : vector<1x1x6x10x4xbf16> to vector<6x10x4xbf16>
    %3 = arith.extf %2 : vector<6x10x4xbf16> to vector<6x10x4xf32>
    %4 = vector.shape_cast %3 : vector<6x10x4xf32> to vector<6x1x10x4xf32>
    %5 = vector.shape_cast %4 : vector<6x1x10x4xf32> to vector<6x1x10x4xf32>
    %6 = vector.broadcast %5 : vector<6x1x10x4xf32> to vector<6x2x10x4xf32>
    %7 = vector.shape_cast %6 : vector<6x2x10x4xf32> to vector<12x10x4xf32>
    %c0_6 = arith.constant 0 : index
    %c0_7 = arith.constant 0 : index
    %c0_8 = arith.constant 0 : index
    %c0_9 = arith.constant 0 : index
    %c0_10 = arith.constant 0 : index
    %8 = vector.load %arg3[%c0_6, %c0_7, %c0_8, %c0_9, %c0_10] : memref<1x1x6x10x4xbf16, #tpu.memory_space<vmem>>, vector<1x1x6x10x4xbf16>
    %9 = vector.shape_cast %8 : vector<1x1x6x10x4xbf16> to vector<6x10x4xbf16>
    %10 = arith.extf %9 : vector<6x10x4xbf16> to vector<6x10x4xf32>
    %11 = vector.shape_cast %10 : vector<6x10x4xf32> to vector<6x1x10x4xf32>
    %12 = vector.shape_cast %11 : vector<6x1x10x4xf32> to vector<6x1x10x4xf32>
    %13 = vector.broadcast %12 : vector<6x1x10x4xf32> to vector<6x2x10x4xf32>
    %14 = vector.shape_cast %13 : vector<6x2x10x4xf32> to vector<12x10x4xf32>
    %c0_11 = arith.constant 0 : index
    %c0_12 = arith.constant 0 : index
    %c0_13 = arith.constant 0 : index
    %c0_14 = arith.constant 0 : index
    %c0_15 = arith.constant 0 : index
    %15 = vector.load %arg4[%c0_11, %c0_12, %c0_13, %c0_14, %c0_15] : memref<1x1x6x10x4xbf16, #tpu.memory_space<vmem>>, vector<1x1x6x10x4xbf16>
    %16 = vector.shape_cast %15 : vector<1x1x6x10x4xbf16> to vector<6x10x4xbf16>
    %17 = arith.extf %16 : vector<6x10x4xbf16> to vector<6x10x4xf32>
    %18 = vector.shape_cast %17 : vector<6x10x4xf32> to vector<6x1x10x4xf32>
    %19 = vector.shape_cast %18 : vector<6x1x10x4xf32> to vector<6x1x10x4xf32>
    %20 = vector.broadcast %19 : vector<6x1x10x4xf32> to vector<6x2x10x4xf32>
    %21 = vector.shape_cast %20 : vector<6x2x10x4xf32> to vector<12x10x4xf32>
    %22 = vector.extract_strided_slice %7 {offsets = [1, 0, 0], sizes = [8, 8, 4], strides = [1, 1, 1]} : vector<12x10x4xf32> to vector<8x8x4xf32>
    %23 = vector.shape_cast %22 : vector<8x8x4xf32> to vector<64x4xf32>
    %24 = arith.truncf %23 : vector<64x4xf32> to vector<64x4xbf16>
    %c0_16 = arith.constant 0 : index
    %c0_17 = arith.constant 0 : index
    %25 = vector.load %arg11[%c0_16, %c0_17] : memref<64x72xbf16, #tpu.memory_space<vmem>>, vector<64x4xbf16>
    tpu.vector_store %arg11[%c0_16, %c0_17], %24 {strides = array<i32>} : memref<64x72xbf16, #tpu.memory_space<vmem>>, vector<64x4xbf16>,
    %26 = vector.extract_strided_slice %7 {offsets = [1, 1, 0], sizes = [8, 8, 4], strides = [1, 1, 1]} : vector<12x10x4xf32> to vector<8x8x4xf32>
    %27 = vector.shape_cast %26 : vector<8x8x4xf32> to vector<64x4xf32>
    %28 = arith.truncf %27 : vector<64x4xf32> to vector<64x4xbf16>
    %c0_18 = arith.constant 0 : index
    %c4 = arith.constant 4 : index
    %29 = vector.load %arg11[%c0_18, %c4] : memref<64x72xbf16, #tpu.memory_space<vmem>>, vector<64x4xbf16>
    tpu.vector_store %arg11[%c0_18, %c4], %28 {strides = array<i32>} : memref<64x72xbf16, #tpu.memory_space<vmem>>, vector<64x4xbf16>,
    %30 = vector.extract_strided_slice %7 {offsets = [1, 2, 0], sizes = [8, 8, 4], strides = [1, 1, 1]} : vector<12x10x4xf32> to vector<8x8x4xf32>
    %31 = vector.shape_cast %30 : vector<8x8x4xf32> to vector<64x4xf32>
    %32 = arith.truncf %31 : vector<64x4xf32> to vector<64x4xbf16>
    %c0_19 = arith.constant 0 : index
    %c8 = arith.constant 8 : index
    %33 = vector.load %arg11[%c0_19, %c8] : memref<64x72xbf16, #tpu.memory_space<vmem>>, vector<64x4xbf16>
    tpu.vector_store %arg11[%c0_19, %c8], %32 {strides = array<i32>} : memref<64x72xbf16, #tpu.memory_space<vmem>>, vector<64x4xbf16>,
    %34 = vector.extract_strided_slice %7 {offsets = [2, 0, 0], sizes = [8, 8, 4], strides = [1, 1, 1]} : vector<12x10x4xf32> to vector<8x8x4xf32>
    %35 = vector.shape_cast %34 : vector<8x8x4xf32> to vector<64x4xf32>
    %36 = arith.truncf %35 : vector<64x4xf32> to vector<64x4xbf16>
    %c0_20 = arith.constant 0 : index
    %c12 = arith.constant 12 : index
    %37 = vector.load %arg11[%c0_20, %c12] : memref<64x72xbf16, #tpu.memory_space<vmem>>, vector<64x4xbf16>
    tpu.vector_store %arg11[%c0_20, %c12], %36 {strides = array<i32>} : memref<64x72xbf16, #tpu.memory_space<vmem>>, vector<64x4xbf16>,
    %38 = vector.extract_strided_slice %7 {offsets = [2, 1, 0], sizes = [8, 8, 4], strides = [1, 1, 1]} : vector<12x10x4xf32> to vector<8x8x4xf32>
    %39 = vector.shape_cast %38 : vector<8x8x4xf32> to vector<64x4xf32>
    %40 = arith.truncf %39 : vector<64x4xf32> to vector<64x4xbf16>
    %c0_21 = arith.constant 0 : index
    %c16 = arith.constant 16 : index
    %41 = vector.load %arg11[%c0_21, %c16] : memref<64x72xbf16, #tpu.memory_space<vmem>>, vector<64x4xbf16>
    tpu.vector_store %arg11[%c0_21, %c16], %40 {strides = array<i32>} : memref<64x72xbf16, #tpu.memory_space<vmem>>, vector<64x4xbf16>,
    %42 = vector.extract_strided_slice %7 {offsets = [2, 2, 0], sizes = [8, 8, 4], strides = [1, 1, 1]} : vector<12x10x4xf32> to vector<8x8x4xf32>
    %43 = vector.shape_cast %42 : vector<8x8x4xf32> to vector<64x4xf32>
    %44 = arith.truncf %43 : vector<64x4xf32> to vector<64x4xbf16>
    %c0_22 = arith.constant 0 : index
    %c20 = arith.constant 20 : index
    %45 = vector.load %arg11[%c0_22, %c20] : memref<64x72xbf16, #tpu.memory_space<vmem>>, vector<64x4xbf16>
    tpu.vector_store %arg11[%c0_22, %c20], %44 {strides = array<i32>} : memref<64x72xbf16, #tpu.memory_space<vmem>>, vector<64x4xbf16>,
    %46 = vector.extract_strided_slice %7 {offsets = [3, 0, 0], sizes = [8, 8, 4], strides = [1, 1, 1]} : vector<12x10x4xf32> to vector<8x8x4xf32>
    %47 = vector.shape_cast %46 : vector<8x8x4xf32> to vector<64x4xf32>
    %48 = arith.truncf %47 : vector<64x4xf32> to vector<64x4xbf16>
    %c0_23 = arith.constant 0 : index
    %c24 = arith.constant 24 : index
    %49 = vector.load %arg11[%c0_23, %c24] : memref<64x72xbf16, #tpu.memory_space<vmem>>, vector<64x4xbf16>
    tpu.vector_store %arg11[%c0_23, %c24], %48 {strides = array<i32>} : memref<64x72xbf16, #tpu.memory_space<vmem>>, vector<64x4xbf16>,
    %50 = vector.extract_strided_slice %7 {offsets = [3, 1, 0], sizes = [8, 8, 4], strides = [1, 1, 1]} : vector<12x10x4xf32> to vector<8x8x4xf32>
    %51 = vector.shape_cast %50 : vector<8x8x4xf32> to vector<64x4xf32>
    %52 = arith.truncf %51 : vector<64x4xf32> to vector<64x4xbf16>
    %c0_24 = arith.constant 0 : index
    %c28 = arith.constant 28 : index
    %53 = vector.load %arg11[%c0_24, %c28] : memref<64x72xbf16, #tpu.memory_space<vmem>>, vector<64x4xbf16>
    tpu.vector_store %arg11[%c0_24, %c28], %52 {strides = array<i32>} : memref<64x72xbf16, #tpu.memory_space<vmem>>, vector<64x4xbf16>,
    %54 = vector.extract_strided_slice %7 {offsets = [3, 2, 0], sizes = [8, 8, 4], strides = [1, 1, 1]} : vector<12x10x4xf32> to vector<8x8x4xf32>
    %55 = vector.shape_cast %54 : vector<8x8x4xf32> to vector<64x4xf32>
    %56 = arith.truncf %55 : vector<64x4xf32> to vector<64x4xbf16>
    %c0_25 = arith.constant 0 : index
    %c32 = arith.constant 32 : index
    %57 = vector.load %arg11[%c0_25, %c32] : memref<64x72xbf16, #tpu.memory_space<vmem>>, vector<64x4xbf16>
    tpu.vector_store %arg11[%c0_25, %c32], %56 {strides = array<i32>} : memref<64x72xbf16, #tpu.memory_space<vmem>>, vector<64x4xbf16>,
    %58 = vector.extract_strided_slice %14 {offsets = [1, 0, 0], sizes = [8, 8, 4], strides = [1, 1, 1]} : vector<12x10x4xf32> to vector<8x8x4xf32>
    %59 = vector.shape_cast %58 : vector<8x8x4xf32> to vector<64x4xf32>
    %60 = arith.truncf %59 : vector<64x4xf32> to vector<64x4xbf16>
    %c0_26 = arith.constant 0 : index
    %c36 = arith.constant 36 : index
    %61 = vector.load %arg11[%c0_26, %c36] : memref<64x72xbf16, #tpu.memory_space<vmem>>, vector<64x4xbf16>
    tpu.vector_store %arg11[%c0_26, %c36], %60 {strides = array<i32>} : memref<64x72xbf16, #tpu.memory_space<vmem>>, vector<64x4xbf16>,
    %62 = vector.extract_strided_slice %14 {offsets = [1, 1, 0], sizes = [8, 8, 4], strides = [1, 1, 1]} : vector<12x10x4xf32> to vector<8x8x4xf32>
    %63 = vector.shape_cast %62 : vector<8x8x4xf32> to vector<64x4xf32>
    %64 = arith.truncf %63 : vector<64x4xf32> to vector<64x4xbf16>
    %c0_27 = arith.constant 0 : index
    %c40 = arith.constant 40 : index
    %65 = vector.load %arg11[%c0_27, %c40] : memref<64x72xbf16, #tpu.memory_space<vmem>>, vector<64x4xbf16>
    tpu.vector_store %arg11[%c0_27, %c40], %64 {strides = array<i32>} : memref<64x72xbf16, #tpu.memory_space<vmem>>, vector<64x4xbf16>,
    %66 = vector.extract_strided_slice %14 {offsets = [1, 2, 0], sizes = [8, 8, 4], strides = [1, 1, 1]} : vector<12x10x4xf32> to vector<8x8x4xf32>
    %67 = vector.shape_cast %66 : vector<8x8x4xf32> to vector<64x4xf32>
    %68 = arith.truncf %67 : vector<64x4xf32> to vector<64x4xbf16>
    %c0_28 = arith.constant 0 : index
    %c44 = arith.constant 44 : index
    %69 = vector.load %arg11[%c0_28, %c44] : memref<64x72xbf16, #tpu.memory_space<vmem>>, vector<64x4xbf16>
    tpu.vector_store %arg11[%c0_28, %c44], %68 {strides = array<i32>} : memref<64x72xbf16, #tpu.memory_space<vmem>>, vector<64x4xbf16>,
    %70 = vector.extract_strided_slice %14 {offsets = [2, 0, 0], sizes = [8, 8, 4], strides = [1, 1, 1]} : vector<12x10x4xf32> to vector<8x8x4xf32>
    %71 = vector.shape_cast %70 : vector<8x8x4xf32> to vector<64x4xf32>
    %72 = arith.truncf %71 : vector<64x4xf32> to vector<64x4xbf16>
    %c0_29 = arith.constant 0 : index
    %c48 = arith.constant 48 : index
    %73 = vector.load %arg11[%c0_29, %c48] : memref<64x72xbf16, #tpu.memory_space<vmem>>, vector<64x4xbf16>
    tpu.vector_store %arg11[%c0_29, %c48], %72 {strides = array<i32>} : memref<64x72xbf16, #tpu.memory_space<vmem>>, vector<64x4xbf16>,
    %74 = vector.extract_strided_slice %14 {offsets = [2, 1, 0], sizes = [8, 8, 4], strides = [1, 1, 1]} : vector<12x10x4xf32> to vector<8x8x4xf32>
    %75 = vector.shape_cast %74 : vector<8x8x4xf32> to vector<64x4xf32>
    %76 = arith.truncf %75 : vector<64x4xf32> to vector<64x4xbf16>
    %c0_30 = arith.constant 0 : index
    %c52 = arith.constant 52 : index
    %77 = vector.load %arg11[%c0_30, %c52] : memref<64x72xbf16, #tpu.memory_space<vmem>>, vector<64x4xbf16>
    tpu.vector_store %arg11[%c0_30, %c52], %76 {strides = array<i32>} : memref<64x72xbf16, #tpu.memory_space<vmem>>, vector<64x4xbf16>,
    %78 = vector.extract_strided_slice %14 {offsets = [2, 2, 0], sizes = [8, 8, 4], strides = [1, 1, 1]} : vector<12x10x4xf32> to vector<8x8x4xf32>
    %79 = vector.shape_cast %78 : vector<8x8x4xf32> to vector<64x4xf32>
    %80 = arith.truncf %79 : vector<64x4xf32> to vector<64x4xbf16>
    %c0_31 = arith.constant 0 : index
    %c56 = arith.constant 56 : index
    %81 = vector.load %arg11[%c0_31, %c56] : memref<64x72xbf16, #tpu.memory_space<vmem>>, vector<64x4xbf16>
    tpu.vector_store %arg11[%c0_31, %c56], %80 {strides = array<i32>} : memref<64x72xbf16, #tpu.memory_space<vmem>>, vector<64x4xbf16>,
    %82 = vector.extract_strided_slice %14 {offsets = [3, 0, 0], sizes = [8, 8, 4], strides = [1, 1, 1]} : vector<12x10x4xf32> to vector<8x8x4xf32>
    %83 = vector.shape_cast %82 : vector<8x8x4xf32> to vector<64x4xf32>
    %84 = arith.truncf %83 : vector<64x4xf32> to vector<64x4xbf16>
    %c0_32 = arith.constant 0 : index
    %c60 = arith.constant 60 : index
    %85 = vector.load %arg11[%c0_32, %c60] : memref<64x72xbf16, #tpu.memory_space<vmem>>, vector<64x4xbf16>
    tpu.vector_store %arg11[%c0_32, %c60], %84 {strides = array<i32>} : memref<64x72xbf16, #tpu.memory_space<vmem>>, vector<64x4xbf16>,
    %86 = vector.extract_strided_slice %14 {offsets = [3, 1, 0], sizes = [8, 8, 4], strides = [1, 1, 1]} : vector<12x10x4xf32> to vector<8x8x4xf32>
    %87 = vector.shape_cast %86 : vector<8x8x4xf32> to vector<64x4xf32>
    %88 = arith.truncf %87 : vector<64x4xf32> to vector<64x4xbf16>
    %c0_33 = arith.constant 0 : index
    %c64 = arith.constant 64 : index
    %89 = vector.load %arg11[%c0_33, %c64] : memref<64x72xbf16, #tpu.memory_space<vmem>>, vector<64x4xbf16>
    tpu.vector_store %arg11[%c0_33, %c64], %88 {strides = array<i32>} : memref<64x72xbf16, #tpu.memory_space<vmem>>, vector<64x4xbf16>,
    %90 = vector.extract_strided_slice %14 {offsets = [3, 2, 0], sizes = [8, 8, 4], strides = [1, 1, 1]} : vector<12x10x4xf32> to vector<8x8x4xf32>
    %91 = vector.shape_cast %90 : vector<8x8x4xf32> to vector<64x4xf32>
    %92 = arith.truncf %91 : vector<64x4xf32> to vector<64x4xbf16>
    %c0_34 = arith.constant 0 : index
    %c68 = arith.constant 68 : index
    %93 = vector.load %arg11[%c0_34, %c68] : memref<64x72xbf16, #tpu.memory_space<vmem>>, vector<64x4xbf16>
    tpu.vector_store %arg11[%c0_34, %c68], %92 {strides = array<i32>} : memref<64x72xbf16, #tpu.memory_space<vmem>>, vector<64x4xbf16>,
    %c0_35 = arith.constant 0 : index
    %c0_36 = arith.constant 0 : index
    %94 = vector.load %arg11[%c0_35, %c0_36] : memref<64x72xbf16, #tpu.memory_space<vmem>>, vector<64x72xbf16>
    %c0_37 = arith.constant 0 : index
    %c0_38 = arith.constant 0 : index
    %95 = vector.load %arg5[%c0_37, %c0_38] : memref<72x128xbf16, #tpu.memory_space<vmem>>, vector<72x128xbf16>
    %cst = arith.constant dense<0.000000e+00> : vector<64x128xf32>
    %96 = tpu.matmul %94, %95, %cst {dimension_numbers = #tpu.dot_dimension_numbers<[1], [0], [0], [1], [0, 0, 1, 1], [], []>} : vector<64x72xbf16>, vector<72x128xbf16>, vector<64x128xf32> -> vector<64x128xf32>
    %97 = vector.broadcast %0 : vector<1x128xf32> to vector<64x128xf32>
    %98 = arith.addf %96, %97 : vector<64x128xf32>
    %99 = arith.truncf %98 : vector<64x128xf32> to vector<64x128xbf16>
    %c0_39 = arith.constant 0 : index
    %c0_40 = arith.constant 0 : index
    %c0_41 = arith.constant 0 : index
    %100 = vector.load %arg8[%c0_39, %c0_40, %c0_41] : memref<1x128x128xbf16, #tpu.memory_space<vmem>>, vector<1x64x128xbf16>
    %101 = vector.shape_cast %100 : vector<1x64x128xbf16> to vector<64x128xbf16>
    %102 = vector.shape_cast %99 : vector<64x128xbf16> to vector<1x64x128xbf16>
    tpu.vector_store %arg8[%c0_39, %c0_40, %c0_41], %102 {strides = array<i32>} : memref<1x128x128xbf16, #tpu.memory_space<vmem>>, vector<1x64x128xbf16>,
    %cst_42 = arith.constant dense<0.000000e+00> : vector<128xf32>
    %103 = vector.multi_reduction <add>, %98, %cst_42 [0] : vector<64x128xf32> to vector<128xf32>
    %104 = vector.shape_cast %103 : vector<128xf32> to vector<1x128xf32>
    %cst_43 = arith.constant 1.562500e-02 : f32
    %105 = vector.broadcast %cst_43 : f32 to vector<1x128xf32>
    %106 = arith.mulf %104, %105 : vector<1x128xf32>
    %107 = vector.broadcast %106 : vector<1x128xf32> to vector<64x128xf32>
    %108 = arith.subf %98, %107 : vector<64x128xf32>
    %109 = arith.mulf %108, %108 : vector<64x128xf32>
    %cst_44 = arith.constant dense<0.000000e+00> : vector<128xf32>
    %110 = vector.multi_reduction <add>, %109, %cst_44 [0] : vector<64x128xf32> to vector<128xf32>
    %111 = vector.shape_cast %110 : vector<128xf32> to vector<1x128xf32>
    %c0_45 = arith.constant 0 : index
    %c0_46 = arith.constant 0 : index
    %c0_47 = arith.constant 0 : index
    %c0_48 = arith.constant 0 : index
    %112 = vector.load %arg9[%c0_45, %c0_46, %c0_47, %c0_48] : memref<1x1x8x128xf32, #tpu.memory_space<vmem>>, vector<1x1x1x128xf32>
    %113 = vector.shape_cast %112 : vector<1x1x1x128xf32> to vector<1x128xf32>
    %114 = vector.shape_cast %104 : vector<1x128xf32> to vector<1x1x1x128xf32>
    tpu.vector_store %arg9[%c0_45, %c0_46, %c0_47, %c0_48], %114 {strides = array<i32>} : memref<1x1x8x128xf32, #tpu.memory_space<vmem>>, vector<1x1x1x128xf32>,
    %c0_49 = arith.constant 0 : index
    %c0_50 = arith.constant 0 : index
    %c0_51 = arith.constant 0 : index
    %c0_52 = arith.constant 0 : index
    %115 = vector.load %arg10[%c0_49, %c0_50, %c0_51, %c0_52] : memref<1x1x8x128xf32, #tpu.memory_space<vmem>>, vector<1x1x1x128xf32>
    %116 = vector.shape_cast %115 : vector<1x1x1x128xf32> to vector<1x128xf32>
    %117 = vector.shape_cast %111 : vector<1x128xf32> to vector<1x1x1x128xf32>
    tpu.vector_store %arg10[%c0_49, %c0_50, %c0_51, %c0_52], %117 {strides = array<i32>} : memref<1x1x8x128xf32, #tpu.memory_space<vmem>>, vector<1x1x1x128xf32>,
    %118 = vector.extract_strided_slice %14 {offsets = [1, 0, 0], sizes = [8, 8, 4], strides = [1, 1, 1]} : vector<12x10x4xf32> to vector<8x8x4xf32>
    %119 = vector.shape_cast %118 : vector<8x8x4xf32> to vector<64x4xf32>
    %120 = arith.truncf %119 : vector<64x4xf32> to vector<64x4xbf16>
    %c0_53 = arith.constant 0 : index
    %c0_54 = arith.constant 0 : index
    %121 = vector.load %arg11[%c0_53, %c0_54] : memref<64x72xbf16, #tpu.memory_space<vmem>>, vector<64x4xbf16>
    tpu.vector_store %arg11[%c0_53, %c0_54], %120 {strides = array<i32>} : memref<64x72xbf16, #tpu.memory_space<vmem>>, vector<64x4xbf16>,
    %122 = vector.extract_strided_slice %14 {offsets = [1, 1, 0], sizes = [8, 8, 4], strides = [1, 1, 1]} : vector<12x10x4xf32> to vector<8x8x4xf32>
    %123 = vector.shape_cast %122 : vector<8x8x4xf32> to vector<64x4xf32>
    %124 = arith.truncf %123 : vector<64x4xf32> to vector<64x4xbf16>
    %c0_55 = arith.constant 0 : index
    %c4_56 = arith.constant 4 : index
    %125 = vector.load %arg11[%c0_55, %c4_56] : memref<64x72xbf16, #tpu.memory_space<vmem>>, vector<64x4xbf16>
    tpu.vector_store %arg11[%c0_55, %c4_56], %124 {strides = array<i32>} : memref<64x72xbf16, #tpu.memory_space<vmem>>, vector<64x4xbf16>,
    %126 = vector.extract_strided_slice %14 {offsets = [1, 2, 0], sizes = [8, 8, 4], strides = [1, 1, 1]} : vector<12x10x4xf32> to vector<8x8x4xf32>
    %127 = vector.shape_cast %126 : vector<8x8x4xf32> to vector<64x4xf32>
    %128 = arith.truncf %127 : vector<64x4xf32> to vector<64x4xbf16>
    %c0_57 = arith.constant 0 : index
    %c8_58 = arith.constant 8 : index
    %129 = vector.load %arg11[%c0_57, %c8_58] : memref<64x72xbf16, #tpu.memory_space<vmem>>, vector<64x4xbf16>
    tpu.vector_store %arg11[%c0_57, %c8_58], %128 {strides = array<i32>} : memref<64x72xbf16, #tpu.memory_space<vmem>>, vector<64x4xbf16>,
    %130 = vector.extract_strided_slice %14 {offsets = [2, 0, 0], sizes = [8, 8, 4], strides = [1, 1, 1]} : vector<12x10x4xf32> to vector<8x8x4xf32>
    %131 = vector.shape_cast %130 : vector<8x8x4xf32> to vector<64x4xf32>
    %132 = arith.truncf %131 : vector<64x4xf32> to vector<64x4xbf16>
    %c0_59 = arith.constant 0 : index
    %c12_60 = arith.constant 12 : index
    %133 = vector.load %arg11[%c0_59, %c12_60] : memref<64x72xbf16, #tpu.memory_space<vmem>>, vector<64x4xbf16>
    tpu.vector_store %arg11[%c0_59, %c12_60], %132 {strides = array<i32>} : memref<64x72xbf16, #tpu.memory_space<vmem>>, vector<64x4xbf16>,
    %134 = vector.extract_strided_slice %14 {offsets = [2, 1, 0], sizes = [8, 8, 4], strides = [1, 1, 1]} : vector<12x10x4xf32> to vector<8x8x4xf32>
    %135 = vector.shape_cast %134 : vector<8x8x4xf32> to vector<64x4xf32>
    %136 = arith.truncf %135 : vector<64x4xf32> to vector<64x4xbf16>
    %c0_61 = arith.constant 0 : index
    %c16_62 = arith.constant 16 : index
    %137 = vector.load %arg11[%c0_61, %c16_62] : memref<64x72xbf16, #tpu.memory_space<vmem>>, vector<64x4xbf16>
    tpu.vector_store %arg11[%c0_61, %c16_62], %136 {strides = array<i32>} : memref<64x72xbf16, #tpu.memory_space<vmem>>, vector<64x4xbf16>,
    %138 = vector.extract_strided_slice %14 {offsets = [2, 2, 0], sizes = [8, 8, 4], strides = [1, 1, 1]} : vector<12x10x4xf32> to vector<8x8x4xf32>
    %139 = vector.shape_cast %138 : vector<8x8x4xf32> to vector<64x4xf32>
    %140 = arith.truncf %139 : vector<64x4xf32> to vector<64x4xbf16>
    %c0_63 = arith.constant 0 : index
    %c20_64 = arith.constant 20 : index
    %141 = vector.load %arg11[%c0_63, %c20_64] : memref<64x72xbf16, #tpu.memory_space<vmem>>, vector<64x4xbf16>
    tpu.vector_store %arg11[%c0_63, %c20_64], %140 {strides = array<i32>} : memref<64x72xbf16, #tpu.memory_space<vmem>>, vector<64x4xbf16>,
    %142 = vector.extract_strided_slice %14 {offsets = [3, 0, 0], sizes = [8, 8, 4], strides = [1, 1, 1]} : vector<12x10x4xf32> to vector<8x8x4xf32>
    %143 = vector.shape_cast %142 : vector<8x8x4xf32> to vector<64x4xf32>
    %144 = arith.truncf %143 : vector<64x4xf32> to vector<64x4xbf16>
    %c0_65 = arith.constant 0 : index
    %c24_66 = arith.constant 24 : index
    %145 = vector.load %arg11[%c0_65, %c24_66] : memref<64x72xbf16, #tpu.memory_space<vmem>>, vector<64x4xbf16>
    tpu.vector_store %arg11[%c0_65, %c24_66], %144 {strides = array<i32>} : memref<64x72xbf16, #tpu.memory_space<vmem>>, vector<64x4xbf16>,
    %146 = vector.extract_strided_slice %14 {offsets = [3, 1, 0], sizes = [8, 8, 4], strides = [1, 1, 1]} : vector<12x10x4xf32> to vector<8x8x4xf32>
    %147 = vector.shape_cast %146 : vector<8x8x4xf32> to vector<64x4xf32>
    %148 = arith.truncf %147 : vector<64x4xf32> to vector<64x4xbf16>
    %c0_67 = arith.constant 0 : index
    %c28_68 = arith.constant 28 : index
    %149 = vector.load %arg11[%c0_67, %c28_68] : memref<64x72xbf16, #tpu.memory_space<vmem>>, vector<64x4xbf16>
    tpu.vector_store %arg11[%c0_67, %c28_68], %148 {strides = array<i32>} : memref<64x72xbf16, #tpu.memory_space<vmem>>, vector<64x4xbf16>,
    %150 = vector.extract_strided_slice %14 {offsets = [3, 2, 0], sizes = [8, 8, 4], strides = [1, 1, 1]} : vector<12x10x4xf32> to vector<8x8x4xf32>
    %151 = vector.shape_cast %150 : vector<8x8x4xf32> to vector<64x4xf32>
    %152 = arith.truncf %151 : vector<64x4xf32> to vector<64x4xbf16>
    %c0_69 = arith.constant 0 : index
    %c32_70 = arith.constant 32 : index
    %153 = vector.load %arg11[%c0_69, %c32_70] : memref<64x72xbf16, #tpu.memory_space<vmem>>, vector<64x4xbf16>
    tpu.vector_store %arg11[%c0_69, %c32_70], %152 {strides = array<i32>} : memref<64x72xbf16, #tpu.memory_space<vmem>>, vector<64x4xbf16>,
    %154 = vector.extract_strided_slice %21 {offsets = [1, 0, 0], sizes = [8, 8, 4], strides = [1, 1, 1]} : vector<12x10x4xf32> to vector<8x8x4xf32>
    %155 = vector.shape_cast %154 : vector<8x8x4xf32> to vector<64x4xf32>
    %156 = arith.truncf %155 : vector<64x4xf32> to vector<64x4xbf16>
    %c0_71 = arith.constant 0 : index
    %c36_72 = arith.constant 36 : index
    %157 = vector.load %arg11[%c0_71, %c36_72] : memref<64x72xbf16, #tpu.memory_space<vmem>>, vector<64x4xbf16>
    tpu.vector_store %arg11[%c0_71, %c36_72], %156 {strides = array<i32>} : memref<64x72xbf16, #tpu.memory_space<vmem>>, vector<64x4xbf16>,
    %158 = vector.extract_strided_slice %21 {offsets = [1, 1, 0], sizes = [8, 8, 4], strides = [1, 1, 1]} : vector<12x10x4xf32> to vector<8x8x4xf32>
    %159 = vector.shape_cast %158 : vector<8x8x4xf32> to vector<64x4xf32>
    %160 = arith.truncf %159 : vector<64x4xf32> to vector<64x4xbf16>
    %c0_73 = arith.constant 0 : index
    %c40_74 = arith.constant 40 : index
    %161 = vector.load %arg11[%c0_73, %c40_74] : memref<64x72xbf16, #tpu.memory_space<vmem>>, vector<64x4xbf16>
    tpu.vector_store %arg11[%c0_73, %c40_74], %160 {strides = array<i32>} : memref<64x72xbf16, #tpu.memory_space<vmem>>, vector<64x4xbf16>,
    %162 = vector.extract_strided_slice %21 {offsets = [1, 2, 0], sizes = [8, 8, 4], strides = [1, 1, 1]} : vector<12x10x4xf32> to vector<8x8x4xf32>
    %163 = vector.shape_cast %162 : vector<8x8x4xf32> to vector<64x4xf32>
    %164 = arith.truncf %163 : vector<64x4xf32> to vector<64x4xbf16>
    %c0_75 = arith.constant 0 : index
    %c44_76 = arith.constant 44 : index
    %165 = vector.load %arg11[%c0_75, %c44_76] : memref<64x72xbf16, #tpu.memory_space<vmem>>, vector<64x4xbf16>
    tpu.vector_store %arg11[%c0_75, %c44_76], %164 {strides = array<i32>} : memref<64x72xbf16, #tpu.memory_space<vmem>>, vector<64x4xbf16>,
    %166 = vector.extract_strided_slice %21 {offsets = [2, 0, 0], sizes = [8, 8, 4], strides = [1, 1, 1]} : vector<12x10x4xf32> to vector<8x8x4xf32>
    %167 = vector.shape_cast %166 : vector<8x8x4xf32> to vector<64x4xf32>
    %168 = arith.truncf %167 : vector<64x4xf32> to vector<64x4xbf16>
    %c0_77 = arith.constant 0 : index
    %c48_78 = arith.constant 48 : index
    %169 = vector.load %arg11[%c0_77, %c48_78] : memref<64x72xbf16, #tpu.memory_space<vmem>>, vector<64x4xbf16>
    tpu.vector_store %arg11[%c0_77, %c48_78], %168 {strides = array<i32>} : memref<64x72xbf16, #tpu.memory_space<vmem>>, vector<64x4xbf16>,
    %170 = vector.extract_strided_slice %21 {offsets = [2, 1, 0], sizes = [8, 8, 4], strides = [1, 1, 1]} : vector<12x10x4xf32> to vector<8x8x4xf32>
    %171 = vector.shape_cast %170 : vector<8x8x4xf32> to vector<64x4xf32>
    %172 = arith.truncf %171 : vector<64x4xf32> to vector<64x4xbf16>
    %c0_79 = arith.constant 0 : index
    %c52_80 = arith.constant 52 : index
    %173 = vector.load %arg11[%c0_79, %c52_80] : memref<64x72xbf16, #tpu.memory_space<vmem>>, vector<64x4xbf16>
    tpu.vector_store %arg11[%c0_79, %c52_80], %172 {strides = array<i32>} : memref<64x72xbf16, #tpu.memory_space<vmem>>, vector<64x4xbf16>,
    %174 = vector.extract_strided_slice %21 {offsets = [2, 2, 0], sizes = [8, 8, 4], strides = [1, 1, 1]} : vector<12x10x4xf32> to vector<8x8x4xf32>
    %175 = vector.shape_cast %174 : vector<8x8x4xf32> to vector<64x4xf32>
    %176 = arith.truncf %175 : vector<64x4xf32> to vector<64x4xbf16>
    %c0_81 = arith.constant 0 : index
    %c56_82 = arith.constant 56 : index
    %177 = vector.load %arg11[%c0_81, %c56_82] : memref<64x72xbf16, #tpu.memory_space<vmem>>, vector<64x4xbf16>
    tpu.vector_store %arg11[%c0_81, %c56_82], %176 {strides = array<i32>} : memref<64x72xbf16, #tpu.memory_space<vmem>>, vector<64x4xbf16>,
    %178 = vector.extract_strided_slice %21 {offsets = [3, 0, 0], sizes = [8, 8, 4], strides = [1, 1, 1]} : vector<12x10x4xf32> to vector<8x8x4xf32>
    %179 = vector.shape_cast %178 : vector<8x8x4xf32> to vector<64x4xf32>
    %180 = arith.truncf %179 : vector<64x4xf32> to vector<64x4xbf16>
    %c0_83 = arith.constant 0 : index
    %c60_84 = arith.constant 60 : index
    %181 = vector.load %arg11[%c0_83, %c60_84] : memref<64x72xbf16, #tpu.memory_space<vmem>>, vector<64x4xbf16>
    tpu.vector_store %arg11[%c0_83, %c60_84], %180 {strides = array<i32>} : memref<64x72xbf16, #tpu.memory_space<vmem>>, vector<64x4xbf16>,
    %182 = vector.extract_strided_slice %21 {offsets = [3, 1, 0], sizes = [8, 8, 4], strides = [1, 1, 1]} : vector<12x10x4xf32> to vector<8x8x4xf32>
    %183 = vector.shape_cast %182 : vector<8x8x4xf32> to vector<64x4xf32>
    %184 = arith.truncf %183 : vector<64x4xf32> to vector<64x4xbf16>
    %c0_85 = arith.constant 0 : index
    %c64_86 = arith.constant 64 : index
    %185 = vector.load %arg11[%c0_85, %c64_86] : memref<64x72xbf16, #tpu.memory_space<vmem>>, vector<64x4xbf16>
    tpu.vector_store %arg11[%c0_85, %c64_86], %184 {strides = array<i32>} : memref<64x72xbf16, #tpu.memory_space<vmem>>, vector<64x4xbf16>,
    %186 = vector.extract_strided_slice %21 {offsets = [3, 2, 0], sizes = [8, 8, 4], strides = [1, 1, 1]} : vector<12x10x4xf32> to vector<8x8x4xf32>
    %187 = vector.shape_cast %186 : vector<8x8x4xf32> to vector<64x4xf32>
    %188 = arith.truncf %187 : vector<64x4xf32> to vector<64x4xbf16>
    %c0_87 = arith.constant 0 : index
    %c68_88 = arith.constant 68 : index
    %189 = vector.load %arg11[%c0_87, %c68_88] : memref<64x72xbf16, #tpu.memory_space<vmem>>, vector<64x4xbf16>
    tpu.vector_store %arg11[%c0_87, %c68_88], %188 {strides = array<i32>} : memref<64x72xbf16, #tpu.memory_space<vmem>>, vector<64x4xbf16>,
    %c0_89 = arith.constant 0 : index
    %c0_90 = arith.constant 0 : index
    %190 = vector.load %arg11[%c0_89, %c0_90] : memref<64x72xbf16, #tpu.memory_space<vmem>>, vector<64x72xbf16>
    %c0_91 = arith.constant 0 : index
    %c0_92 = arith.constant 0 : index
    %191 = vector.load %arg6[%c0_91, %c0_92] : memref<72x128xbf16, #tpu.memory_space<vmem>>, vector<72x128xbf16>
    %cst_93 = arith.constant dense<0.000000e+00> : vector<64x128xf32>
    %192 = tpu.matmul %190, %191, %cst_93 {dimension_numbers = #tpu.dot_dimension_numbers<[1], [0], [0], [1], [0, 0, 1, 1], [], []>} : vector<64x72xbf16>, vector<72x128xbf16>, vector<64x128xf32> -> vector<64x128xf32>
    %193 = vector.broadcast %0 : vector<1x128xf32> to vector<64x128xf32>
    %194 = arith.addf %192, %193 : vector<64x128xf32>
    %195 = arith.truncf %194 : vector<64x128xf32> to vector<64x128xbf16>
    %c0_94 = arith.constant 0 : index
    %c64_95 = arith.constant 64 : index
    %c0_96 = arith.constant 0 : index
    %196 = vector.load %arg8[%c0_94, %c64_95, %c0_96] : memref<1x128x128xbf16, #tpu.memory_space<vmem>>, vector<1x64x128xbf16>
    %197 = vector.shape_cast %196 : vector<1x64x128xbf16> to vector<64x128xbf16>
    %198 = vector.shape_cast %195 : vector<64x128xbf16> to vector<1x64x128xbf16>
    tpu.vector_store %arg8[%c0_94, %c64_95, %c0_96], %198 {strides = array<i32>} : memref<1x128x128xbf16, #tpu.memory_space<vmem>>, vector<1x64x128xbf16>,
    %cst_97 = arith.constant dense<0.000000e+00> : vector<128xf32>
    %199 = vector.multi_reduction <add>, %194, %cst_97 [0] : vector<64x128xf32> to vector<128xf32>
    %200 = vector.shape_cast %199 : vector<128xf32> to vector<1x128xf32>
    %cst_98 = arith.constant 1.562500e-02 : f32
    %201 = vector.broadcast %cst_98 : f32 to vector<1x128xf32>
    %202 = arith.mulf %200, %201 : vector<1x128xf32>
    %203 = vector.broadcast %202 : vector<1x128xf32> to vector<64x128xf32>
    %204 = arith.subf %194, %203 : vector<64x128xf32>
    %205 = arith.mulf %204, %204 : vector<64x128xf32>
    %cst_99 = arith.constant dense<0.000000e+00> : vector<128xf32>
    %206 = vector.multi_reduction <add>, %205, %cst_99 [0] : vector<64x128xf32> to vector<128xf32>
    %207 = vector.shape_cast %206 : vector<128xf32> to vector<1x128xf32>
    %c0_100 = arith.constant 0 : index
    %c0_101 = arith.constant 0 : index
    %c1 = arith.constant 1 : index
    %c0_102 = arith.constant 0 : index
    %208 = vector.load %arg9[%c0_100, %c0_101, %c1, %c0_102] : memref<1x1x8x128xf32, #tpu.memory_space<vmem>>, vector<1x1x1x128xf32>
    %209 = vector.shape_cast %208 : vector<1x1x1x128xf32> to vector<1x128xf32>
    %210 = vector.shape_cast %200 : vector<1x128xf32> to vector<1x1x1x128xf32>
    tpu.vector_store %arg9[%c0_100, %c0_101, %c1, %c0_102], %210 {strides = array<i32>} : memref<1x1x8x128xf32, #tpu.memory_space<vmem>>, vector<1x1x1x128xf32>,
    %c0_103 = arith.constant 0 : index
    %c0_104 = arith.constant 0 : index
    %c1_105 = arith.constant 1 : index
    %c0_106 = arith.constant 0 : index
    %211 = vector.load %arg10[%c0_103, %c0_104, %c1_105, %c0_106] : memref<1x1x8x128xf32, #tpu.memory_space<vmem>>, vector<1x1x1x128xf32>
    %212 = vector.shape_cast %211 : vector<1x1x1x128xf32> to vector<1x128xf32>
    %213 = vector.shape_cast %207 : vector<1x128xf32> to vector<1x1x1x128xf32>
    tpu.vector_store %arg10[%c0_103, %c0_104, %c1_105, %c0_106], %213 {strides = array<i32>} : memref<1x1x8x128xf32, #tpu.memory_space<vmem>>, vector<1x1x1x128xf32>,
    return
  }
  func.func @transform_0(%arg0: i32, %arg1: i32) -> (i32, i32, i32, i32, i32) {
    %c0_i32 = arith.constant 0 : i32
    %0 = arith.addi %arg1, %c0_i32 : i32
    %c0_i32_0 = arith.constant 0 : i32
    %c0_i32_1 = arith.constant 0 : i32
    %c0_i32_2 = arith.constant 0 : i32
    %c0_i32_3 = arith.constant 0 : i32
    return %arg0, %0, %c0_i32_0, %c0_i32_1, %c0_i32_2 : i32, i32, i32, i32, i32
  }
  func.func @transform_1(%arg0: i32, %arg1: i32) -> (i32, i32, i32, i32, i32) {
    %c1_i32 = arith.constant 1 : i32
    %0 = arith.addi %arg1, %c1_i32 : i32
    %c0_i32 = arith.constant 0 : i32
    %c0_i32_0 = arith.constant 0 : i32
    %c0_i32_1 = arith.constant 0 : i32
    %c0_i32_2 = arith.constant 0 : i32
    return %arg0, %0, %c0_i32, %c0_i32_0, %c0_i32_1 : i32, i32, i32, i32, i32
  }
  func.func @transform_2(%arg0: i32, %arg1: i32) -> (i32, i32, i32, i32, i32) {
    %c2_i32 = arith.constant 2 : i32
    %0 = arith.addi %arg1, %c2_i32 : i32
    %c0_i32 = arith.constant 0 : i32
    %c0_i32_0 = arith.constant 0 : i32
    %c0_i32_1 = arith.constant 0 : i32
    %c0_i32_2 = arith.constant 0 : i32
    return %arg0, %0, %c0_i32, %c0_i32_0, %c0_i32_1 : i32, i32, i32, i32, i32
  }
  func.func @transform_3(%arg0: i32, %arg1: i32) -> (i32, i32) {
    %c0_i32 = arith.constant 0 : i32
    %c0_i32_0 = arith.constant 0 : i32
    %c0_i32_1 = arith.constant 0 : i32
    return %c0_i32, %c0_i32_0 : i32, i32
  }
  func.func @transform_4(%arg0: i32, %arg1: i32) -> (i32, i32) {
    %c0_i32 = arith.constant 0 : i32
    %c0_i32_0 = arith.constant 0 : i32
    %c0_i32_1 = arith.constant 0 : i32
    return %c0_i32, %c0_i32_0 : i32, i32
  }
  func.func @transform_5(%arg0: i32, %arg1: i32) -> (i32, i32) {
    %c0_i32 = arith.constant 0 : i32
    %c0_i32_0 = arith.constant 0 : i32
    %c0_i32_1 = arith.constant 0 : i32
    return %c0_i32, %c0_i32_0 : i32, i32
  }
  func.func @transform_6(%arg0: i32, %arg1: i32) -> (i32, i32, i32) {
    %c0_i32 = arith.constant 0 : i32
    %c0_i32_0 = arith.constant 0 : i32
    return %arg0, %arg1, %c0_i32 : i32, i32, i32
  }
  func.func @transform_7(%arg0: i32, %arg1: i32) -> (i32, i32, i32, i32) {
    %c0_i32 = arith.constant 0 : i32
    %c0_i32_0 = arith.constant 0 : i32
    %c0_i32_1 = arith.constant 0 : i32
    return %arg0, %arg1, %c0_i32, %c0_i32_0 : i32, i32, i32, i32
  }
  func.func @transform_8(%arg0: i32, %arg1: i32) -> (i32, i32, i32, i32) {
    %c0_i32 = arith.constant 0 : i32
    %c0_i32_0 = arith.constant 0 : i32
    %c0_i32_1 = arith.constant 0 : i32
    return %arg0, %arg1, %c0_i32, %c0_i32_0 : i32, i32, i32, i32
  }
}

module attributes {stable_mosaic.version = 11 : i64} {
  func.func @_bn_relu_t_kernel(%arg0: i32, %arg1: i32, %arg2: memref<1x512x128xbf16, #tpu.memory_space<vmem>>, %arg3: memref<1x128xf32, #tpu.memory_space<vmem>>, %arg4: memref<1x128xf32, #tpu.memory_space<vmem>>, %arg5: memref<1x8x512xf32, #tpu.memory_space<vmem>>) attributes {dimension_semantics = [#tpu.dimension_semantics<parallel>, #tpu.dimension_semantics<parallel>], iteration_bounds = array<i64: 2, 1>, scalar_prefetch = 0 : i64, scratch_operands = 0 : i64, tpu.core_type = #tpu.core_type<tc>, window_params = [{transform_indices = @transform_0, window_bounds = array<i64: 1, 512, 128>}, {pipeline_mode = #tpu.pipeline_mode<synchronous>, transform_indices = @transform_1, window_bounds = array<i64: 1, 128>}, {pipeline_mode = #tpu.pipeline_mode<synchronous>, transform_indices = @transform_2, window_bounds = array<i64: 1, 128>}, {transform_indices = @transform_3, window_bounds = array<i64: 1, 8, 512>}]} {
    %c0 = arith.constant 0 : index
    %c0_0 = arith.constant 0 : index
    %c0_1 = arith.constant 0 : index
    %0 = vector.load %arg2[%c0, %c0_0, %c0_1] : memref<1x512x128xbf16, #tpu.memory_space<vmem>>, vector<1x512x128xbf16>
    %1 = vector.shape_cast %0 : vector<1x512x128xbf16> to vector<512x128xbf16>
    %2 = arith.extf %1 : vector<512x128xbf16> to vector<512x128xf32>
    %c0_2 = arith.constant 0 : index
    %c0_3 = arith.constant 0 : index
    %3 = vector.load %arg3[%c0_2, %c0_3] : memref<1x128xf32, #tpu.memory_space<vmem>>, vector<1x128xf32>
    %4 = vector.broadcast %3 : vector<1x128xf32> to vector<512x128xf32>
    %5 = arith.mulf %2, %4 : vector<512x128xf32>
    %c0_4 = arith.constant 0 : index
    %c0_5 = arith.constant 0 : index
    %6 = vector.load %arg4[%c0_4, %c0_5] : memref<1x128xf32, #tpu.memory_space<vmem>>, vector<1x128xf32>
    %7 = vector.broadcast %6 : vector<1x128xf32> to vector<512x128xf32>
    %8 = arith.addf %5, %7 : vector<512x128xf32>
    %cst = arith.constant 0.000000e+00 : f32
    %9 = vector.broadcast %cst : f32 to vector<512x128xf32>
    %10 = arith.maximumf %8, %9 : vector<512x128xf32>
    %11 = tpu.transpose %10, [1, 0] : vector<512x128xf32> -> vector<128x512xf32>
    %12 = vector.extract_strided_slice %11 {offsets = [0, 0], sizes = [8, 512], strides = [1, 1]} : vector<128x512xf32> to vector<8x512xf32>
    %c0_6 = arith.constant 0 : index
    %c0_7 = arith.constant 0 : index
    %c0_8 = arith.constant 0 : index
    %13 = vector.load %arg5[%c0_6, %c0_7, %c0_8] : memref<1x8x512xf32, #tpu.memory_space<vmem>>, vector<1x8x512xf32>
    %14 = vector.shape_cast %13 : vector<1x8x512xf32> to vector<8x512xf32>
    %15 = vector.shape_cast %12 : vector<8x512xf32> to vector<1x8x512xf32>
    tpu.vector_store %arg5[%c0_6, %c0_7, %c0_8], %15 {strides = array<i32>} : memref<1x8x512xf32, #tpu.memory_space<vmem>>, vector<1x8x512xf32>,
    return
  }
  func.func @transform_0(%arg0: i32, %arg1: i32) -> (i32, i32, i32) {
    %c0_i32 = arith.constant 0 : i32
    %c0_i32_0 = arith.constant 0 : i32
    return %arg0, %arg1, %c0_i32 : i32, i32, i32
  }
  func.func @transform_1(%arg0: i32, %arg1: i32) -> (i32, i32) {
    %c0_i32 = arith.constant 0 : i32
    %c0_i32_0 = arith.constant 0 : i32
    %c0_i32_1 = arith.constant 0 : i32
    return %c0_i32, %c0_i32_0 : i32, i32
  }
  func.func @transform_2(%arg0: i32, %arg1: i32) -> (i32, i32) {
    %c0_i32 = arith.constant 0 : i32
    %c0_i32_0 = arith.constant 0 : i32
    %c0_i32_1 = arith.constant 0 : i32
    return %c0_i32, %c0_i32_0 : i32, i32
  }
  func.func @transform_3(%arg0: i32, %arg1: i32) -> (i32, i32, i32) {
    %c0_i32 = arith.constant 0 : i32
    %c0_i32_0 = arith.constant 0 : i32
    return %arg0, %c0_i32, %arg1 : i32, i32, i32
  }
}

</mosaic_0001>

<llo_original>
// kernel: up_conv_forward.3
$region0: #{up_conv_forward.3}
  #allocation0 [shape = 'u32[]', space=smem, size = 0x4, offset = 0x4, fixed_abs, tag = 'smem constant byte address 0x4 - core index']
  #allocation1 [shape = 'u32[144,128]{1,0:T(1,128)}', space=vmem, size = 0x12000, scoped, tag = 'internal scratch']
  %s0 = inlined_call_operand.hbm [shape: bf16[2,512,128], index: 0, kind: input, shape index: {}]
  %s1 = inlined_call_operand.hbm [shape: f32[1,128], index: 1, kind: input, shape index: {}]
  %s2 = inlined_call_operand.hbm [shape: f32[1,128], index: 2, kind: input, shape index: {}]
  %s3 = inlined_call_operand.hbm [shape: f32[2,8,512], index: 3, kind: output, shape index: {}]
  %s4 = sld [smem:[#allocation0]]
  $region57: #{up_conv_forward.3} parent=0
    _
  %s6 = ssub.s32 1, %s4
  %s7 = scalar_select 0, %s6, %s4
  $region1: #{up_conv_forward.3} parent=0
    #allocation2 [shape = 'u8[262144]{0}', space=vmem, size = 0x40000, scoped, tag = 'input window, operand 0']
    #allocation3 [shape = 's32[2]{0}', space=sflag, size = 0x8, scoped, tag = 'scoped memory for up_conv_forward.3']
    #allocation4 [shape = 's32[2]{0}', space=sflag, size = 0x8, scoped, tag = 'scoped memory for up_conv_forward.3']
    #allocation5 [shape = 'u8[512]{0}', space=vmem, size = 0x400, scoped, tag = 'input window, operand 1, single buffered']
    #allocation6 [shape = 's32[1]{0}', space=sflag, size = 0x4, scoped, tag = 'scoped memory for up_conv_forward.3']
    #allocation7 [shape = 'u8[512]{0}', space=vmem, size = 0x400, scoped, tag = 'input window, operand 2, single buffered']
    #allocation8 [shape = 'u8[32768]{0}', space=vmem, size = 0x8000, scoped, tag = 'output window, operand 0']
    %8 = vsyncpa [#allocation3], 0
    %s9 = scalar_lea.sflag [#allocation3], 1
    %10 = vsyncpa %s9, 0
    %11 = vsyncpa [#allocation6], 0
    %12 = vsyncpa [#allocation4], 0
    %s13 = scalar_lea.sflag [#allocation4], 1
    %14 = vsyncpa %s13, 0
    loop: start=0, step=1, limit=4
    $region2: #{up_conv_forward.3} parent=1 // loop_pre_header
      _
    $region3: #{up_conv_forward.3} parent=1 // loop_header
      %s16 = sphi 0, %s20
      %p17 = scmp.ge.s32.totalorder %s16, 4
      %s23 = sphi 0, %s35
      %s24 = sphi 0, %s31
      %s25 = sphi 0, %s23
      %s26 = sphi 0, %s24
      %s27 = sphi 0, %s25
      %s28 = sphi 0, %s26
      %s40 = sphi 0, %s42
      %s43 = sphi 0, %s40
      %s44 = sphi 0, %s43
      %s60 = sphi 0, %s44
      %s64 = sphi 0, %s64
      %s66 = sphi 0, %s64
      %s67 = sphi 0, %s66
      %s81 = sphi 0, %s67
      %s85 = sphi 0, %s85
      %s87 = sphi 0, %s85
      %s88 = sphi 0, %s87
      %s102 = sphi 0, %s88
      %s110 = sphi 0, %s112
      %s113 = sphi 0, %s110
      %s114 = sphi 0, %s113
      %s130 = sphi 0, %s114
    $region4: #{up_conv_forward.3} parent=1 // loop_header_branch
      %19 = sbr.rel (%p17) target = $region8
    $region5: #{up_conv_forward.3} parent=1 // loop_body
      %s21 = ssub.s32 %s16, 1
      %s22 = ssub.s32 %s16, 2
      %s29 = sadd.s32 1, %s24
      %p30 = scmp.ge.s32.totalorder %s29, 1
      %s31 = scalar_select %p30, 0, %s29
      %s32 = sadd.s32 1, %s23
      %s33 = scalar_select %p30, %s32, %s23
      %p34 = scmp.ge.s32.totalorder %s33, 2
      %s35 = scalar_select %p34, 0, %s33
      %s36 = ssub.s32 %s23, %s35
      %s37 = ssub.s32 %s24, %s31
      %s38 = sor.u32 %s36, %s37
      %p39 = scmp.eq.s32.totalorder %s38, 0
      %s41 = sadd.s32 %s40, 1
      %s42 = scalar_select %p39, %s40, %s41
      %p45 = pneg %p39
      %p46 = scmp.eq.s32.totalorder %s16, 1
      %p47 = por %p45, %p46
      %p48 = scmp.ne.s32.totalorder %s40, %s43
      %p49 = scmp.eq.s32.totalorder %s16, 0
      %p50 = por %p48, %p49
      %p51 = scmp.ne.s32.totalorder %s40, %s43
      %p52 = scmp.eq.s32.totalorder %s21, 1
      %p53 = por %p51, %p52
      %p54 = scmp.ne.s32.totalorder %s43, %s44
      %p55 = scmp.eq.s32.totalorder %s21, 0
      %p56 = por %p54, %p55
      %p57 = scmp.ne.s32.totalorder %s43, %s44
      %p58 = scmp.eq.s32.totalorder %s22, 1
      %p59 = por %p57, %p58
      %p61 = scmp.ne.s32.totalorder %s44, %s60
      %p62 = scmp.eq.s32.totalorder %s22, 0
      %p63 = por %p61, %p62
      %s65 = sadd.s32 %s64, 1
      %p68 = scmp.eq.s32.totalorder %s16, 1
      %p69 = scmp.ne.s32.totalorder %s64, %s66
      %p70 = scmp.eq.s32.totalorder %s16, 0
      %p71 = por %p69, %p70
      %p72 = scmp.ne.s32.totalorder %s64, %s66
      %p73 = scmp.eq.s32.totalorder %s21, 1
      %p74 = por %p72, %p73
      %p75 = scmp.ne.s32.totalorder %s66, %s67
      %p76 = scmp.eq.s32.totalorder %s21, 0
      %p77 = por %p75, %p76
      %p78 = scmp.ne.s32.totalorder %s66, %s67
      %p79 = scmp.eq.s32.totalorder %s22, 1
      %p80 = por %p78, %p79
      %p82 = scmp.ne.s32.totalorder %s67, %s81
      %p83 = scmp.eq.s32.totalorder %s22, 0
      %p84 = por %p82, %p83
      %s86 = sadd.s32 %s85, 1
      %p89 = scmp.eq.s32.totalorder %s16, 1
      %p90 = scmp.ne.s32.totalorder %s85, %s87
      %p91 = scmp.eq.s32.totalorder %s16, 0
      %p92 = por %p90, %p91
      %p93 = scmp.ne.s32.totalorder %s85, %s87
      %p94 = scmp.eq.s32.totalorder %s21, 1
      %p95 = por %p93, %p94
      %p96 = scmp.ne.s32.totalorder %s87, %s88
      %p97 = scmp.eq.s32.totalorder %s21, 0
      %p98 = por %p96, %p97
      %p99 = scmp.ne.s32.totalorder %s87, %s88
      %p100 = scmp.eq.s32.totalorder %s22, 1
      %p101 = por %p99, %p100
      %p103 = scmp.ne.s32.totalorder %s88, %s102
      %p104 = scmp.eq.s32.totalorder %s22, 0
      %p105 = por %p103, %p104
      %s106 = ssub.s32 %s23, %s35
      %s107 = ssub.s32 %s24, %s31
      %s108 = sor.u32 %s106, %s107
      %p109 = scmp.eq.s32.totalorder %s108, 0
      %s111 = sadd.s32 %s110, 1
      %s112 = scalar_select %p109, %s110, %s111
      %p115 = pneg %p109
      %p116 = scmp.eq.s32.totalorder %s16, 1
      %p117 = por %p115, %p116
      %p118 = scmp.ne.s32.totalorder %s110, %s113
      %p119 = scmp.eq.s32.totalorder %s16, 0
      %p120 = por %p118, %p119
      %p121 = scmp.ne.s32.totalorder %s110, %s113
      %p122 = scmp.eq.s32.totalorder %s21, 1
      %p123 = por %p121, %p122
      %p124 = scmp.ne.s32.totalorder %s113, %s114
      %p125 = scmp.eq.s32.totalorder %s21, 0
      %p126 = por %p124, %p125
      %p127 = scmp.ne.s32.totalorder %s113, %s114
      %p128 = scmp.eq.s32.totalorder %s22, 1
      %p129 = por %p127, %p128
      %p131 = scmp.ne.s32.totalorder %s114, %s130
      %p132 = scmp.eq.s32.totalorder %s22, 0
      %p133 = por %p131, %p132
      %p134 = scmp.le.s32.totalorder 1, %s16
      %p135 = scmp.lt.s32.totalorder %s16, 3
      %p136 = pnand %p134, %p135
      %p137 = pneg %p136
      // Predicated region
      $region9: #{up_conv_forward.3} parent=5 // pred_check
        _
      $region10: #{up_conv_forward.3} parent=5 // pred_check_branch
        %139 = sbr.rel (%p136) target = $region12
      $region11: #{up_conv_forward.3} parent=5 // pred_region
        %s140 = ssub.s32 %s16, 1
        // Predicated region
        $region13: #{up_conv_forward.3} parent=11 // pred_check
          %p141 = pneg %p77
        $region14: #{up_conv_forward.3} parent=11 // pred_check_branch
          %143 = sbr.rel (%p141) target = $region16
        $region15: #{up_conv_forward.3} parent=11 // pred_region
          %s145 = ssub.s32 16, 16
          %146 = vsyncadd [#allocation6], %s145
          %s148 = sshll.u32 [#allocation5], 4
          %s149 = int_to_ptr.vmem [resolvable:$true] %s148
          %151 = dma.hbm_to_vmem [thread:$0]  %s1, 16, %s149, [#allocation6]
        $region16: #{up_conv_forward.3} parent=11 // pred_fallthru
          _
        // Predicated region
        $region17: #{up_conv_forward.3} parent=11 // pred_check
          %p152 = pneg %p98
        $region18: #{up_conv_forward.3} parent=11 // pred_check_branch
          %154 = sbr.rel (%p152) target = $region20
        $region19: #{up_conv_forward.3} parent=11 // pred_region
          %s156 = ssub.s32 16, 16
          %157 = vsyncadd [#allocation6], %s156
          %s159 = sshll.u32 [#allocation7], 4
          %s160 = int_to_ptr.vmem [resolvable:$true] %s159
          %162 = dma.hbm_to_vmem [thread:$0]  %s2, 16, %s160, [#allocation6]
        $region20: #{up_conv_forward.3} parent=11 // pred_fallthru
          _
      $region12: #{up_conv_forward.3} parent=5 // pred_fallthru
        _
      %p163 = scmp.lt.s32.totalorder %s16, 2
      // Predicated region
      $region21: #{up_conv_forward.3} parent=5 // pred_check
        %p164 = pneg %p163
      $region22: #{up_conv_forward.3} parent=5 // pred_check_branch
        %166 = sbr.rel (%p164) target = $region24
      $region23: #{up_conv_forward.3} parent=5 // pred_region
        // Predicated region
        $region25: #{up_conv_forward.3} parent=23 // pred_check
          %p167 = pneg %p50
        $region26: #{up_conv_forward.3} parent=23 // pred_check_branch
          %169 = sbr.rel (%p167) target = $region28
        $region27: #{up_conv_forward.3} parent=23 // pred_region
          %s170 = sand.u32 %s40, 1
          %s171 = scalar_lea.sflag [#allocation3], %s170
          %s172 = sand.u32 %s40, 1
          %s173 = smul.addr %s172, 256
          %s174 = scalar_lea.vmem [#allocation2], %s173
          %s175 = smul.u32 64, %s24
          %s177 = ssub.s32 4096, 4096
          %178 = vsyncadd %s171, %s177
          %s179 = smul.addr %s23, 64
          %s180 = sadd.s32 %s175, %s179
          %s181 = smul.addr %s180, 64
          %s182 = scalar_lea.hbm %s0, %s181
          %s183 = sshll.u32 %s174, 4
          %s184 = int_to_ptr.vmem [resolvable:$true] %s183
          %189 = dma.hbm_to_vmem [thread:$0]  %s182, 4096, %s184, %s171, 64, 64, 4
        $region28: #{up_conv_forward.3} parent=23 // pred_fallthru
          _
      $region24: #{up_conv_forward.3} parent=5 // pred_fallthru
        _
      %p190 = scmp.le.s32.totalorder 1, %s16
      %p191 = scmp.lt.s32.totalorder %s16, 3
      %p192 = pnand %p190, %p191
      %p193 = pneg %p192
      // Predicated region
      $region29: #{up_conv_forward.3} parent=5 // pred_check
        _
      $region30: #{up_conv_forward.3} parent=5 // pred_check_branch
        %195 = sbr.rel (%p192) target = $region32
      $region31: #{up_conv_forward.3} parent=5 // pred_region
        %s196 = ssub.s32 %s16, 1
        %s197 = sand.u32 %s43, 1
        %s198 = scalar_lea.sflag [#allocation3], %s197
        %s199 = sand.u32 %s43, 1
        %s200 = smul.addr %s199, 256
        %s201 = scalar_lea.vmem [#allocation2], %s200
        // Predicated region
        $region33: #{up_conv_forward.3} parent=31 // pred_check
          %p202 = pneg %p56
        $region34: #{up_conv_forward.3} parent=31 // pred_check_branch
          %204 = sbr.rel (%p202) target = $region36
        $region35: #{up_conv_forward.3} parent=31 // pred_region
          %205 = dma.done %s198, 4096
        $region36: #{up_conv_forward.3} parent=31 // pred_fallthru
          _
        // Predicated region
        $region37: #{up_conv_forward.3} parent=31 // pred_check
          %p206 = pneg %p77
        $region38: #{up_conv_forward.3} parent=31 // pred_check_branch
          %208 = sbr.rel (%p206) target = $region40
        $region39: #{up_conv_forward.3} parent=31 // pred_region
          %209 = dma.done [#allocation6], 16
        $region40: #{up_conv_forward.3} parent=31 // pred_fallthru
          _
        // Predicated region
        $region41: #{up_conv_forward.3} parent=31 // pred_check
          %p210 = pneg %p98
        $region42: #{up_conv_forward.3} parent=31 // pred_check_branch
          %212 = sbr.rel (%p210) target = $region44
        $region43: #{up_conv_forward.3} parent=31 // pred_region
          %213 = dma.done [#allocation6], 16
        $region44: #{up_conv_forward.3} parent=31 // pred_fallthru
          _
        %s214 = sand.u32 %s43, 1
        %s215 = scalar_lea.sflag [#allocation3], %s214
        %s216 = sand.u32 %s43, 1
        %s217 = smul.addr %s216, 256
        %s218 = scalar_lea.vmem [#allocation2], %s217
        %p219 = pneg %p56
        %p220 = pneg %p53
        %p221 = pneg %p77
        %p222 = pneg %p74
        %p223 = pneg %p98
        %p224 = pneg %p95
        %p225 = pneg %p126
        %p226 = pneg %p123
        %s227 = sand.u32 %s113, 1
        %s228 = scalar_lea.sflag [#allocation4], %s227
        %s229 = sand.u32 %s113, 1
        %s230 = smul.addr %s229, 32
        %s231 = scalar_lea.vmem [#allocation8], %s230
        %s232 = smul.u32 64, %s26
        %s233 = smul.u32 4, %s26
        %v234 = vld [vmem:[%s201] sm:$0xf]
        %v235 = vld [vmem:[%s201 + $0x4] sm:$0xf]
        %v236 = vld [vmem:[%s201 + $0x8] sm:$0xf]
        %v237 = vld [vmem:[%s201 + $0xc] sm:$0xf]
        %v238 = vld [vmem:[%s201 + $0x10] sm:$0xf]
        %v239 = vld [vmem:[%s201 + $0x14] sm:$0xf]
        %v240 = vld [vmem:[%s201 + $0x18] sm:$0xf]
        %v241 = vld [vmem:[%s201 + $0x1c] sm:$0xf]
        %v242 = vld [vmem:[%s201 + $0x20] sm:$0xf]
        %v243 = vld [vmem:[%s201 + $0x24] sm:$0xf]
        %v244 = vld [vmem:[%s201 + $0x28] sm:$0xf]
        %v245 = vld [vmem:[%s201 + $0x2c] sm:$0xf]
        %v246 = vld [vmem:[%s201 + $0x30] sm:$0xf]
        %v247 = vld [vmem:[%s201 + $0x34] sm:$0xf]
        %v248 = vld [vmem:[%s201 + $0x38] sm:$0xf]
        %v249 = vld [vmem:[%s201 + $0x3c] sm:$0xf]
        %v250 = vld [vmem:[%s201 + $0x40] sm:$0xf]
        %v251 = vld [vmem:[%s201 + $0x44] sm:$0xf]
        %v252 = vld [vmem:[%s201 + $0x48] sm:$0xf]
        %v253 = vld [vmem:[%s201 + $0x4c] sm:$0xf]
        %v254 = vld [vmem:[%s201 + $0x50] sm:$0xf]
        %v255 = vld [vmem:[%s201 + $0x54] sm:$0xf]
        %v256 = vld [vmem:[%s201 + $0x58] sm:$0xf]
        %v257 = vld [vmem:[%s201 + $0x5c] sm:$0xf]
        %v258 = vld [vmem:[%s201 + $0x60] sm:$0xf]
        %v259 = vld [vmem:[%s201 + $0x64] sm:$0xf]
        %v260 = vld [vmem:[%s201 + $0x68] sm:$0xf]
        %v261 = vld [vmem:[%s201 + $0x6c] sm:$0xf]
        %v262 = vld [vmem:[%s201 + $0x70] sm:$0xf]
        %v263 = vld [vmem:[%s201 + $0x74] sm:$0xf]
        %v264 = vld [vmem:[%s201 + $0x78] sm:$0xf]
        %v265 = vld [vmem:[%s201 + $0x7c] sm:$0xf]
        %v266 = vld [vmem:[%s201 + $0x80] sm:$0xf]
        %v267 = vld [vmem:[%s201 + $0x84] sm:$0xf]
        %v268 = vld [vmem:[%s201 + $0x88] sm:$0xf]
        %v269 = vld [vmem:[%s201 + $0x8c] sm:$0xf]
        %v270 = vld [vmem:[%s201 + $0x90] sm:$0xf]
        %v271 = vld [vmem:[%s201 + $0x94] sm:$0xf]
        %v272 = vld [vmem:[%s201 + $0x98] sm:$0xf]
        %v273 = vld [vmem:[%s201 + $0x9c] sm:$0xf]
        %v274 = vld [vmem:[%s201 + $0xa0] sm:$0xf]
        %v275 = vld [vmem:[%s201 + $0xa4] sm:$0xf]
        %v276 = vld [vmem:[%s201 + $0xa8] sm:$0xf]
        %v277 = vld [vmem:[%s201 + $0xac] sm:$0xf]
        %v278 = vld [vmem:[%s201 + $0xb0] sm:$0xf]
        %v279 = vld [vmem:[%s201 + $0xb4] sm:$0xf]
        %v280 = vld [vmem:[%s201 + $0xb8] sm:$0xf]
        %v281 = vld [vmem:[%s201 + $0xbc] sm:$0xf]
        %v282 = vld [vmem:[%s201 + $0xc0] sm:$0xf]
        %v283 = vld [vmem:[%s201 + $0xc4] sm:$0xf]
        %v284 = vld [vmem:[%s201 + $0xc8] sm:$0xf]
        %v285 = vld [vmem:[%s201 + $0xcc] sm:$0xf]
        %v286 = vld [vmem:[%s201 + $0xd0] sm:$0xf]
        %v287 = vld [vmem:[%s201 + $0xd4] sm:$0xf]
        %v288 = vld [vmem:[%s201 + $0xd8] sm:$0xf]
        %v289 = vld [vmem:[%s201 + $0xdc] sm:$0xf]
        %v290 = vld [vmem:[%s201 + $0xe0] sm:$0xf]
        %v291 = vld [vmem:[%s201 + $0xe4] sm:$0xf]
        %v292 = vld [vmem:[%s201 + $0xe8] sm:$0xf]
        %v293 = vld [vmem:[%s201 + $0xec] sm:$0xf]
        %v294 = vld [vmem:[%s201 + $0xf0] sm:$0xf]
        %v295 = vld [vmem:[%s201 + $0xf4] sm:$0xf]
        %v296 = vld [vmem:[%s201 + $0xf8] sm:$0xf]
        %v297 = vld [vmem:[%s201 + $0xfc] sm:$0xf]
        %v298 = vunpack.c.l.bf16 %v234
        %v299 = vunpack.c.l.bf16 %v235
        %v300 = vunpack.c.l.bf16 %v236
        %v301 = vunpack.c.l.bf16 %v237
        %v302 = vunpack.c.l.bf16 %v238
        %v303 = vunpack.c.l.bf16 %v239
        %v304 = vunpack.c.l.bf16 %v240
        %v305 = vunpack.c.l.bf16 %v241
        %v306 = vunpack.c.l.bf16 %v242
        %v307 = vunpack.c.l.bf16 %v243
        %v308 = vunpack.c.l.bf16 %v244
        %v309 = vunpack.c.l.bf16 %v245
        %v310 = vunpack.c.l.bf16 %v246
        %v311 = vunpack.c.l.bf16 %v247
        %v312 = vunpack.c.l.bf16 %v248
        %v313 = vunpack.c.l.bf16 %v249
        %v314 = vunpack.c.l.bf16 %v250
        %v315 = vunpack.c.l.bf16 %v251
        %v316 = vunpack.c.l.bf16 %v252
        %v317 = vunpack.c.l.bf16 %v253
        %v318 = vunpack.c.l.bf16 %v254
        %v319 = vunpack.c.l.bf16 %v255
        %v320 = vunpack.c.l.bf16 %v256
        %v321 = vunpack.c.l.bf16 %v257
        %v322 = vunpack.c.l.bf16 %v258
        %v323 = vunpack.c.l.bf16 %v259
        %v324 = vunpack.c.l.bf16 %v260
        %v325 = vunpack.c.l.bf16 %v261
        %v326 = vunpack.c.l.bf16 %v262
        %v327 = vunpack.c.l.bf16 %v263
        %v328 = vunpack.c.l.bf16 %v264
        %v329 = vunpack.c.l.bf16 %v265
        %v330 = vunpack.c.l.bf16 %v266
        %v331 = vunpack.c.l.bf16 %v267
        %v332 = vunpack.c.l.bf16 %v268
        %v333 = vunpack.c.l.bf16 %v269
        %v334 = vunpack.c.l.bf16 %v270
        %v335 = vunpack.c.l.bf16 %v271
        %v336 = vunpack.c.l.bf16 %v272
        %v337 = vunpack.c.l.bf16 %v273
        %v338 = vunpack.c.l.bf16 %v274
        %v339 = vunpack.c.l.bf16 %v275
        %v340 = vunpack.c.l.bf16 %v276
        %v341 = vunpack.c.l.bf16 %v277
        %v342 = vunpack.c.l.bf16 %v278
        %v343 = vunpack.c.l.bf16 %v279
        %v344 = vunpack.c.l.bf16 %v280
        %v345 = vunpack.c.l.bf16 %v281
        %v346 = vunpack.c.l.bf16 %v282
        %v347 = vunpack.c.l.bf16 %v283
        %v348 = vunpack.c.l.bf16 %v284
        %v349 = vunpack.c.l.bf16 %v285
        %v350 = vunpack.c.l.bf16 %v286
        %v351 = vunpack.c.l.bf16 %v287
        %v352 = vunpack.c.l.bf16 %v288
        %v353 = vunpack.c.l.bf16 %v289
        %v354 = vunpack.c.l.bf16 %v290
        %v355 = vunpack.c.l.bf16 %v291
        %v356 = vunpack.c.l.bf16 %v292
        %v357 = vunpack.c.l.bf16 %v293
        %v358 = vunpack.c.l.bf16 %v294
        %v359 = vunpack.c.l.bf16 %v295
        %v360 = vunpack.c.l.bf16 %v296
        %v361 = vunpack.c.l.bf16 %v297
        %v362 = vld [vmem:[#allocation5] sm:$0x1]
        %v364 = vlaneseq
        %v365 = vshrl.u32 %v364, 7
        %v366 = vsub.s32 0, %v365
        %v367 = vrot.slane %v362, %v366
        %v369 = vmul.f32 %v298, %v367
        %v370 = vmul.f32 %v299, %v367
        %v371 = vmul.f32 %v300, %v367
        %v372 = vmul.f32 %v301, %v367
        %v373 = vmul.f32 %v302, %v367
        %v374 = vmul.f32 %v303, %v367
        %v375 = vmul.f32 %v304, %v367
        %v376 = vmul.f32 %v305, %v367
        %v377 = vmul.f32 %v306, %v367
        %v378 = vmul.f32 %v307, %v367
        %v379 = vmul.f32 %v308, %v367
        %v380 = vmul.f32 %v309, %v367
        %v381 = vmul.f32 %v310, %v367
        %v382 = vmul.f32 %v311, %v367
        %v383 = vmul.f32 %v312, %v367
        %v384 = vmul.f32 %v313, %v367
        %v385 = vmul.f32 %v314, %v367
        %v386 = vmul.f32 %v315, %v367
        %v387 = vmul.f32 %v316, %v367
        %v388 = vmul.f32 %v317, %v367
        %v389 = vmul.f32 %v318, %v367
        %v390 = vmul.f32 %v319, %v367
        %v391 = vmul.f32 %v320, %v367
        %v392 = vmul.f32 %v321, %v367
        %v393 = vmul.f32 %v322, %v367
        %v394 = vmul.f32 %v323, %v367
        %v395 = vmul.f32 %v324, %v367
        %v396 = vmul.f32 %v325, %v367
        %v397 = vmul.f32 %v326, %v367
        %v398 = vmul.f32 %v327, %v367
        %v399 = vmul.f32 %v328, %v367
        %v400 = vmul.f32 %v329, %v367
        %v401 = vmul.f32 %v330, %v367
        %v402 = vmul.f32 %v331, %v367
        %v403 = vmul.f32 %v332, %v367
        %v404 = vmul.f32 %v333, %v367
        %v405 = vmul.f32 %v334, %v367
        %v406 = vmul.f32 %v335, %v367
        %v407 = vmul.f32 %v336, %v367
        %v408 = vmul.f32 %v337, %v367
        %v409 = vmul.f32 %v338, %v367
        %v410 = vmul.f32 %v339, %v367
        %v411 = vmul.f32 %v340, %v367
        %v412 = vmul.f32 %v341, %v367
        %v413 = vmul.f32 %v342, %v367
        %v414 = vmul.f32 %v343, %v367
        %v415 = vmul.f32 %v344, %v367
        %v416 = vmul.f32 %v345, %v367
        %v417 = vmul.f32 %v346, %v367
        %v418 = vmul.f32 %v347, %v367
        %v419 = vmul.f32 %v348, %v367
        %v420 = vmul.f32 %v349, %v367
        %v421 = vmul.f32 %v350, %v367
        %v422 = vmul.f32 %v351, %v367
        %v423 = vmul.f32 %v352, %v367
        %v424 = vmul.f32 %v353, %v367
        %v425 = vmul.f32 %v354, %v367
        %v426 = vmul.f32 %v355, %v367
        %v427 = vmul.f32 %v356, %v367
        %v428 = vmul.f32 %v357, %v367
        %v429 = vmul.f32 %v358, %v367
        %v430 = vmul.f32 %v359, %v367
        %v431 = vmul.f32 %v360, %v367
        %v432 = vmul.f32 %v361, %v367
        %v433 = vld [vmem:[#allocation7] sm:$0x1]
        %v435 = vlaneseq
        %v436 = vshrl.u32 %v435, 7
        %v437 = vsub.s32 0, %v436
        %v438 = vrot.slane %v433, %v437
        %v440 = vadd.f32 %v369, %v438
        %v441 = vadd.f32 %v370, %v438
        %v442 = vadd.f32 %v371, %v438
        %v443 = vadd.f32 %v372, %v438
        %v444 = vadd.f32 %v373, %v438
        %v445 = vadd.f32 %v374, %v438
        %v446 = vadd.f32 %v375, %v438
        %v447 = vadd.f32 %v376, %v438
        %v448 = vadd.f32 %v377, %v438
        %v449 = vadd.f32 %v378, %v438
        %v450 = vadd.f32 %v379, %v438
        %v451 = vadd.f32 %v380, %v438
        %v452 = vadd.f32 %v381, %v438
        %v453 = vadd.f32 %v382, %v438
        %v454 = vadd.f32 %v383, %v438
        %v455 = vadd.f32 %v384, %v438
        %v456 = vadd.f32 %v385, %v438
        %v457 = vadd.f32 %v386, %v438
        %v458 = vadd.f32 %v387, %v438
        %v459 = vadd.f32 %v388, %v438
        %v460 = vadd.f32 %v389, %v438
        %v461 = vadd.f32 %v390, %v438
        %v462 = vadd.f32 %v391, %v438
        %v463 = vadd.f32 %v392, %v438
        %v464 = vadd.f32 %v393, %v438
        %v465 = vadd.f32 %v394, %v438
        %v466 = vadd.f32 %v395, %v438
        %v467 = vadd.f32 %v396, %v438
        %v468 = vadd.f32 %v397, %v438
        %v469 = vadd.f32 %v398, %v438
        %v470 = vadd.f32 %v399, %v438
        %v471 = vadd.f32 %v400, %v438
        %v472 = vadd.f32 %v401, %v438
        %v473 = vadd.f32 %v402, %v438
        %v474 = vadd.f32 %v403, %v438
        %v475 = vadd.f32 %v404, %v438
        %v476 = vadd.f32 %v405, %v438
        %v477 = vadd.f32 %v406, %v438
        %v478 = vadd.f32 %v407, %v438
        %v479 = vadd.f32 %v408, %v438
        %v480 = vadd.f32 %v409, %v438
        %v481 = vadd.f32 %v410, %v438
        %v482 = vadd.f32 %v411, %v438
        %v483 = vadd.f32 %v412, %v438
        %v484 = vadd.f32 %v413, %v438
        %v485 = vadd.f32 %v414, %v438
        %v486 = vadd.f32 %v415, %v438
        %v487 = vadd.f32 %v416, %v438
        %v488 = vadd.f32 %v417, %v438
        %v489 = vadd.f32 %v418, %v438
        %v490 = vadd.f32 %v419, %v438
        %v491 = vadd.f32 %v420, %v438
        %v492 = vadd.f32 %v421, %v438
        %v493 = vadd.f32 %v422, %v438
        %v494 = vadd.f32 %v423, %v438
        %v495 = vadd.f32 %v424, %v438
        %v496 = vadd.f32 %v425, %v438
        %v497 = vadd.f32 %v426, %v438
        %v498 = vadd.f32 %v427, %v438
        %v499 = vadd.f32 %v428, %v438
        %v500 = vadd.f32 %v429, %v438
        %v501 = vadd.f32 %v430, %v438
        %v502 = vadd.f32 %v431, %v438
        %v503 = vadd.f32 %v432, %v438
        %v504 = vmax.f32 %v440, 0.0
        %v505 = vmax.f32 %v441, 0.0
        %v506 = vmax.f32 %v442, 0.0
        %v507 = vmax.f32 %v443, 0.0
        %v508 = vmax.f32 %v444, 0.0
        %v509 = vmax.f32 %v445, 0.0
        %v510 = vmax.f32 %v446, 0.0
        %v511 = vmax.f32 %v447, 0.0
        %v512 = vmax.f32 %v448, 0.0
        %v513 = vmax.f32 %v449, 0.0
        %v514 = vmax.f32 %v450, 0.0
        %v515 = vmax.f32 %v451, 0.0
        %v516 = vmax.f32 %v452, 0.0
        %v517 = vmax.f32 %v453, 0.0
        %v518 = vmax.f32 %v454, 0.0
        %v519 = vmax.f32 %v455, 0.0
        %v520 = vmax.f32 %v456, 0.0
        %v521 = vmax.f32 %v457, 0.0
        %v522 = vmax.f32 %v458, 0.0
        %v523 = vmax.f32 %v459, 0.0
        %v524 = vmax.f32 %v460, 0.0
        %v525 = vmax.f32 %v461, 0.0
        %v526 = vmax.f32 %v462, 0.0
        %v527 = vmax.f32 %v463, 0.0
        %v528 = vmax.f32 %v464, 0.0
        %v529 = vmax.f32 %v465, 0.0
        %v530 = vmax.f32 %v466, 0.0
        %v531 = vmax.f32 %v467, 0.0
        %v532 = vmax.f32 %v468, 0.0
        %v533 = vmax.f32 %v469, 0.0
        %v534 = vmax.f32 %v470, 0.0
        %v535 = vmax.f32 %v471, 0.0
        %v536 = vmax.f32 %v472, 0.0
        %v537 = vmax.f32 %v473, 0.0
        %v538 = vmax.f32 %v474, 0.0
        %v539 = vmax.f32 %v475, 0.0
        %v540 = vmax.f32 %v476, 0.0
        %v541 = vmax.f32 %v477, 0.0
        %v542 = vmax.f32 %v478, 0.0
        %v543 = vmax.f32 %v479, 0.0
        %v544 = vmax.f32 %v480, 0.0
        %v545 = vmax.f32 %v481, 0.0
        %v546 = vmax.f32 %v482, 0.0
        %v547 = vmax.f32 %v483, 0.0
        %v548 = vmax.f32 %v484, 0.0
        %v549 = vmax.f32 %v485, 0.0
        %v550 = vmax.f32 %v486, 0.0
        %v551 = vmax.f32 %v487, 0.0
        %v552 = vmax.f32 %v488, 0.0
        %v553 = vmax.f32 %v489, 0.0
        %v554 = vmax.f32 %v490, 0.0
        %v555 = vmax.f32 %v491, 0.0
        %v556 = vmax.f32 %v492, 0.0
        %v557 = vmax.f32 %v493, 0.0
        %v558 = vmax.f32 %v494, 0.0
        %v559 = vmax.f32 %v495, 0.0
        %v560 = vmax.f32 %v496, 0.0
        %v561 = vmax.f32 %v497, 0.0
        %v562 = vmax.f32 %v498, 0.0
        %v563 = vmax.f32 %v499, 0.0
        %v564 = vmax.f32 %v500, 0.0
        %v565 = vmax.f32 %v501, 0.0
        %v566 = vmax.f32 %v502, 0.0
        %v567 = vmax.f32 %v503, 0.0
        %568 = vxpose.xlu0.b32.start [1/16] %v504, 128
        %569 = vxpose.xlu0.b32.cont [2/16] %v505, 128
        %570 = vxpose.xlu0.b32.cont [3/16] %v506, 128
        %571 = vxpose.xlu0.b32.cont [4/16] %v507, 128
        %572 = vxpose.xlu0.b32.cont [5/16] %v508, 128
        %573 = vxpose.xlu0.b32.cont [6/16] %v509, 128
        %574 = vxpose.xlu0.b32.cont [7/16] %v510, 128
        %575 = vxpose.xlu0.b32.cont [8/16] %v511, 128
        %576 = vxpose.xlu0.b32.cont [9/16] %v512, 128
        %577 = vxpose.xlu0.b32.cont [10/16] %v513, 128
        %578 = vxpose.xlu0.b32.cont [11/16] %v514, 128
        %579 = vxpose.xlu0.b32.cont [12/16] %v515, 128
        %580 = vxpose.xlu0.b32.cont [13/16] %v516, 128
        %581 = vxpose.xlu0.b32.cont [14/16] %v517, 128
        %582 = vxpose.xlu0.b32.cont [15/16] %v518, 128
        %583 = vxpose.xlu0.b32.end [16/16] %v519, 128
        %v584 = vpop.trf.xlu0
        %v585 = vpop.trf.xlu0
        %v586 = vpop.trf.xlu0
        %v587 = vpop.trf.xlu0
        %v588 = vpop.trf.xlu0
        %v589 = vpop.trf.xlu0
        %v590 = vpop.trf.xlu0
        %v591 = vpop.trf.xlu0
        %v592 = vpop.trf.xlu0
        %v593 = vpop.trf.xlu0
        %v594 = vpop.trf.xlu0
        %v595 = vpop.trf.xlu0
        %v596 = vpop.trf.xlu0
        %v597 = vpop.trf.xlu0
        %v598 = vpop.trf.xlu0
        %v599 = vpop.trf.xlu0
        %600 = vxpose.xlu0.b32.start [1/16] %v520, 128
        %601 = vxpose.xlu0.b32.cont [2/16] %v521, 128
        %602 = vxpose.xlu0.b32.cont [3/16] %v522, 128
        %603 = vxpose.xlu0.b32.cont [4/16] %v523, 128
        %604 = vxpose.xlu0.b32.cont [5/16] %v524, 128
        %605 = vxpose.xlu0.b32.cont [6/16] %v525, 128
        %606 = vxpose.xlu0.b32.cont [7/16] %v526, 128
        %607 = vxpose.xlu0.b32.cont [8/16] %v527, 128
        %608 = vxpose.xlu0.b32.cont [9/16] %v528, 128
        %609 = vxpose.xlu0.b32.cont [10/16] %v529, 128
        %610 = vxpose.xlu0.b32.cont [11/16] %v530, 128
        %611 = vxpose.xlu0.b32.cont [12/16] %v531, 128
        %612 = vxpose.xlu0.b32.cont [13/16] %v532, 128
        %613 = vxpose.xlu0.b32.cont [14/16] %v533, 128
        %614 = vxpose.xlu0.b32.cont [15/16] %v534, 128
        %615 = vxpose.xlu0.b32.end [16/16] %v535, 128
        %v616 = vpop.trf.xlu0
        %v617 = vpop.trf.xlu0
        %v618 = vpop.trf.xlu0
        %v619 = vpop.trf.xlu0
        %v620 = vpop.trf.xlu0
        %v621 = vpop.trf.xlu0
        %v622 = vpop.trf.xlu0
        %v623 = vpop.trf.xlu0
        %v624 = vpop.trf.xlu0
        %v625 = vpop.trf.xlu0
        %v626 = vpop.trf.xlu0
        %v627 = vpop.trf.xlu0
        %v628 = vpop.trf.xlu0
        %v629 = vpop.trf.xlu0
        %v630 = vpop.trf.xlu0
        %v631 = vpop.trf.xlu0
        %632 = vxpose.xlu0.b32.start [1/16] %v536, 128
        %633 = vxpose.xlu0.b32.cont [2/16] %v537, 128
        %634 = vxpose.xlu0.b32.cont [3/16] %v538, 128
        %635 = vxpose.xlu0.b32.cont [4/16] %v539, 128
        %636 = vxpose.xlu0.b32.cont [5/16] %v540, 128
        %637 = vxpose.xlu0.b32.cont [6/16] %v541, 128
        %638 = vxpose.xlu0.b32.cont [7/16] %v542, 128
        %639 = vxpose.xlu0.b32.cont [8/16] %v543, 128
        %640 = vxpose.xlu0.b32.cont [9/16] %v544, 128
        %641 = vxpose.xlu0.b32.cont [10/16] %v545, 128
        %642 = vxpose.xlu0.b32.cont [11/16] %v546, 128
        %643 = vxpose.xlu0.b32.cont [12/16] %v547, 128
        %644 = vxpose.xlu0.b32.cont [13/16] %v548, 128
        %645 = vxpose.xlu0.b32.cont [14/16] %v549, 128
        %646 = vxpose.xlu0.b32.cont [15/16] %v550, 128
        %647 = vxpose.xlu0.b32.end [16/16] %v551, 128
        %v648 = vpop.trf.xlu0
        %v649 = vpop.trf.xlu0
        %v650 = vpop.trf.xlu0
        %v651 = vpop.trf.xlu0
        %v652 = vpop.trf.xlu0
        %v653 = vpop.trf.xlu0
        %v654 = vpop.trf.xlu0
        %v655 = vpop.trf.xlu0
        %v656 = vpop.trf.xlu0
        %v657 = vpop.trf.xlu0
        %v658 = vpop.trf.xlu0
        %v659 = vpop.trf.xlu0
        %v660 = vpop.trf.xlu0
        %v661 = vpop.trf.xlu0
        %v662 = vpop.trf.xlu0
        %v663 = vpop.trf.xlu0
        %664 = vxpose.xlu0.b32.start [1/16] %v552, 128
        %665 = vxpose.xlu0.b32.cont [2/16] %v553, 128
        %666 = vxpose.xlu0.b32.cont [3/16] %v554, 128
        %667 = vxpose.xlu0.b32.cont [4/16] %v555, 128
        %668 = vxpose.xlu0.b32.cont [5/16] %v556, 128
        %669 = vxpose.xlu0.b32.cont [6/16] %v557, 128
        %670 = vxpose.xlu0.b32.cont [7/16] %v558, 128
        %671 = vxpose.xlu0.b32.cont [8/16] %v559, 128
        %672 = vxpose.xlu0.b32.cont [9/16] %v560, 128
        %673 = vxpose.xlu0.b32.cont [10/16] %v561, 128
        %674 = vxpose.xlu0.b32.cont [11/16] %v562, 128
        %675 = vxpose.xlu0.b32.cont [12/16] %v563, 128
        %676 = vxpose.xlu0.b32.cont [13/16] %v564, 128
        %677 = vxpose.xlu0.b32.cont [14/16] %v565, 128
        %678 = vxpose.xlu0.b32.cont [15/16] %v566, 128
        %679 = vxpose.xlu0.b32.end [16/16] %v567, 128
        %v680 = vpop.trf.xlu0
        %v681 = vpop.trf.xlu0
        %v682 = vpop.trf.xlu0
        %v683 = vpop.trf.xlu0
        %v684 = vpop.trf.xlu0
        %v685 = vpop.trf.xlu0
        %v686 = vpop.trf.xlu0
        %v687 = vpop.trf.xlu0
        %v688 = vpop.trf.xlu0
        %v689 = vpop.trf.xlu0
        %v690 = vpop.trf.xlu0
        %v691 = vpop.trf.xlu0
        %v692 = vpop.trf.xlu0
        %v693 = vpop.trf.xlu0
        %v694 = vpop.trf.xlu0
        %v695 = vpop.trf.xlu0
        %696 = vst [vmem:[%s231] sm:$0xff] %v584
        %697 = vst [vmem:[%s231 + $0x8] sm:$0xff] %v616
        %698 = vst [vmem:[%s231 + $0x10] sm:$0xff] %v648
        %699 = vst [vmem:[%s231 + $0x18] sm:$0xff] %v680
        %s700 = sand.u32 %s113, 1
        %s701 = scalar_lea.sflag [#allocation4], %s700
        %s702 = sand.u32 %s113, 1
        %s703 = smul.addr %s702, 32
        %s704 = scalar_lea.vmem [#allocation8], %s703
        // Predicated region
        $region45: #{up_conv_forward.3} parent=31 // pred_check
          %p705 = pneg %p123
        $region46: #{up_conv_forward.3} parent=31 // pred_check_branch
          %707 = sbr.rel (%p705) target = $region48
        $region47: #{up_conv_forward.3} parent=31 // pred_region
          %s708 = smul.u32 4, %s26
          %s710 = ssub.s32 512, 512
          %711 = vsyncadd %s701, %s710
          %s712 = smul.addr %s25, 4
          %s713 = sadd.s32 %s708, %s712
          %s714 = smul.addr %s713, 128
          %s715 = scalar_lea.hbm %s3, %s714
          %s717 = sshll.u32 %s704, 4
          %s718 = int_to_ptr.vmem [resolvable:$true] %s717
          %720 = dma.vmem_to_hbm [thread:$0]  %s718, 512, %s715, %s701
        $region48: #{up_conv_forward.3} parent=31 // pred_fallthru
          _
      $region32: #{up_conv_forward.3} parent=5 // pred_fallthru
        _
      %p721 = scmp.le.s32.totalorder 2, %s16
      // Predicated region
      $region49: #{up_conv_forward.3} parent=5 // pred_check
        %p722 = pneg %p721
      $region50: #{up_conv_forward.3} parent=5 // pred_check_branch
        %724 = sbr.rel (%p722) target = $region52
      $region51: #{up_conv_forward.3} parent=5 // pred_region
        %s725 = ssub.s32 %s16, 2
        // Predicated region
        $region53: #{up_conv_forward.3} parent=51 // pred_check
          %p726 = pneg %p129
        $region54: #{up_conv_forward.3} parent=51 // pred_check_branch
          %728 = sbr.rel (%p726) target = $region56
        $region55: #{up_conv_forward.3} parent=51 // pred_region
          %s729 = sand.u32 %s114, 1
          %s730 = scalar_lea.sflag [#allocation4], %s729
          %s731 = sand.u32 %s114, 1
          %s732 = smul.addr %s731, 32
          %s733 = scalar_lea.vmem [#allocation8], %s732
          %734 = dma.done %s730, 512
        $region56: #{up_conv_forward.3} parent=51 // pred_fallthru
          _
      $region52: #{up_conv_forward.3} parent=5 // pred_fallthru
        _
    $region6: #{up_conv_forward.3} parent=1 // loop_footer
      %s20 = sadd.s32 1, %s16
    $region7: #{up_conv_forward.3} parent=1 // loop_footer_branch
      %15 = sbr.rel target = $region3
    $region8: #{up_conv_forward.3} parent=1 // loop_exit
      _
    %735 = vsyncpa [#allocation3], 1
    %s736 = scalar_lea.sflag [#allocation3], 1
    %737 = vsyncpa %s736, 1
    %738 = vsyncpa [#allocation6], 1
    %739 = vsyncpa [#allocation4], 1
    %s740 = scalar_lea.sflag [#allocation4], 1
    %741 = vsyncpa %s740, 1

// kernel: up_conv_forward.2
$region0: #{up_conv_forward.2}
  #allocation0 [shape = 'u32[]', space=smem, size = 0x4, offset = 0x4, fixed_abs, tag = 'smem constant byte address 0x4 - core index']
  #allocation1 [shape = 'u32[144,128]{1,0:T(1,128)}', space=vmem, size = 0x12000, scoped, tag = 'internal scratch']
  #allocation2 [shape = 'bf16[64,72]{1,0:T(16,128)(2,1)}', space=vmem, size = 0x4000, scoped, tag = 'scratch operand']
  %s0 = inlined_call_operand.hbm [shape: bf16[2,6,6,10,4], index: 0, kind: input, shape index: {}, may-alias: {0,1,2}]
  %s1 = inlined_call_operand.hbm [shape: bf16[2,6,6,10,4], index: 1, kind: input, shape index: {}, may-alias: {0,1,2}]
  %s2 = inlined_call_operand.hbm [shape: bf16[2,6,6,10,4], index: 2, kind: input, shape index: {}, may-alias: {0,1,2}]
  %s3 = inlined_call_operand.hbm [shape: bf16[72,128], index: 3, kind: input, shape index: {}]
  %s4 = inlined_call_operand.hbm [shape: bf16[72,128], index: 4, kind: input, shape index: {}]
  %s5 = inlined_call_operand.hbm [shape: f32[1,128], index: 5, kind: input, shape index: {}]
  %s6 = inlined_call_operand.hbm [shape: bf16[2,512,128], index: 6, kind: output, shape index: {0}]
  %s7 = inlined_call_operand.hbm [shape: f32[2,4,8,128], index: 7, kind: output, shape index: {1}]
  %s8 = inlined_call_operand.hbm [shape: f32[2,4,8,128], index: 8, kind: output, shape index: {2}]
  %9 = xla_tuple %s6, %s7, %s8
  %s10 = sld [smem:[#allocation0]]
  $region97: #{up_conv_forward.2} parent=0
    _
  %s12 = ssub.s32 1, %s10
  %s13 = scalar_select 0, %s12, %s10
  $region1: #{up_conv_forward.2} parent=0
    #allocation3 [shape = 'u8[49152]{0}', space=vmem, size = 0xc000, scoped, tag = 'input window, operand 0']
    #allocation4 [shape = 's32[2]{0}', space=sflag, size = 0x8, scoped, tag = 'scoped memory for up_conv_forward.2']
    #allocation5 [shape = 's32[2]{0}', space=sflag, size = 0x8, scoped, tag = 'scoped memory for up_conv_forward.2']
    #allocation6 [shape = 'u8[49152]{0}', space=vmem, size = 0xc000, scoped, tag = 'input window, operand 1']
    #allocation7 [shape = 's32[2]{0}', space=sflag, size = 0x8, scoped, tag = 'scoped memory for up_conv_forward.2']
    #allocation8 [shape = 'u8[49152]{0}', space=vmem, size = 0xc000, scoped, tag = 'input window, operand 2']
    #allocation9 [shape = 'u8[18432]{0}', space=vmem, size = 0x4800, scoped, tag = 'input window, operand 3, single buffered']
    #allocation10 [shape = 's32[1]{0}', space=sflag, size = 0x4, scoped, tag = 'scoped memory for up_conv_forward.2']
    #allocation11 [shape = 'u8[18432]{0}', space=vmem, size = 0x4800, scoped, tag = 'input window, operand 4, single buffered']
    #allocation12 [shape = 'u8[512]{0}', space=vmem, size = 0x400, scoped, tag = 'input window, operand 5, single buffered']
    #allocation13 [shape = 's32[1]{0}', space=sflag, size = 0x4, scoped, tag = 'scoped memory for up_conv_forward.2']
    #allocation14 [shape = 'u8[65536]{0}', space=vmem, size = 0x10000, scoped, tag = 'output window, operand 0']
    #allocation15 [shape = 'u8[8192]{0}', space=vmem, size = 0x2000, scoped, tag = 'output window, operand 1']
    #allocation16 [shape = 's32[2]{0}', space=sflag, size = 0x8, scoped, tag = 'scoped memory for up_conv_forward.2']
    #allocation17 [shape = 'u8[8192]{0}', space=vmem, size = 0x2000, scoped, tag = 'output window, operand 2']
    %14 = vsyncpa [#allocation4], 0
    %s15 = scalar_lea.sflag [#allocation4], 1
    %16 = vsyncpa %s15, 0
    %17 = vsyncpa [#allocation7], 0
    %s18 = scalar_lea.sflag [#allocation7], 1
    %19 = vsyncpa %s18, 0
    %20 = vsyncpa [#allocation10], 0
    %21 = vsyncpa [#allocation13], 0
    %22 = vsyncpa [#allocation5], 0
    %s23 = scalar_lea.sflag [#allocation5], 1
    %24 = vsyncpa %s23, 0
    %25 = vsyncpa [#allocation16], 0
    %s26 = scalar_lea.sflag [#allocation16], 1
    %27 = vsyncpa %s26, 0
    loop: start=0, step=1, limit=10
    $region2: #{up_conv_forward.2} parent=1 // loop_pre_header
      _
    $region3: #{up_conv_forward.2} parent=1 // loop_header
      %s29 = sphi 0, %s33
      %p30 = scmp.ge.s32.totalorder %s29, 10
      %s36 = sphi 0, %s48
      %s37 = sphi 0, %s44
      %s38 = sphi 0, %s36
      %s39 = sphi 0, %s37
      %s40 = sphi 0, %s38
      %s41 = sphi 0, %s39
      %s53 = sphi 0, %s55
      %s56 = sphi 0, %s53
      %s57 = sphi 0, %s56
      %s73 = sphi 0, %s57
      %s83 = sphi 0, %s85
      %s86 = sphi 0, %s83
      %s87 = sphi 0, %s86
      %s103 = sphi 0, %s87
      %s113 = sphi 0, %s115
      %s116 = sphi 0, %s113
      %s117 = sphi 0, %s116
      %s133 = sphi 0, %s117
      %s137 = sphi 0, %s137
      %s139 = sphi 0, %s137
      %s140 = sphi 0, %s139
      %s154 = sphi 0, %s140
      %s158 = sphi 0, %s158
      %s160 = sphi 0, %s158
      %s161 = sphi 0, %s160
      %s175 = sphi 0, %s161
      %s179 = sphi 0, %s179
      %s181 = sphi 0, %s179
      %s182 = sphi 0, %s181
      %s196 = sphi 0, %s182
      %s204 = sphi 0, %s206
      %s207 = sphi 0, %s204
      %s208 = sphi 0, %s207
      %s224 = sphi 0, %s208
      %s232 = sphi 0, %s234
      %s235 = sphi 0, %s232
      %s236 = sphi 0, %s235
      %s252 = sphi 0, %s236
      %s260 = sphi 0, %s262
      %s263 = sphi 0, %s260
      %s264 = sphi 0, %s263
      %s280 = sphi 0, %s264
    $region4: #{up_conv_forward.2} parent=1 // loop_header_branch
      %32 = sbr.rel (%p30) target = $region8
    $region5: #{up_conv_forward.2} parent=1 // loop_body
      %s34 = ssub.s32 %s29, 1
      %s35 = ssub.s32 %s29, 2
      %s42 = sadd.s32 1, %s37
      %p43 = scmp.ge.s32.totalorder %s42, 4
      %s44 = scalar_select %p43, 0, %s42
      %s45 = sadd.s32 1, %s36
      %s46 = scalar_select %p43, %s45, %s36
      %p47 = scmp.ge.s32.totalorder %s46, 2
      %s48 = scalar_select %p47, 0, %s46
      %s49 = ssub.s32 %s36, %s48
      %s50 = ssub.s32 %s37, %s44
      %s51 = sor.u32 %s49, %s50
      %p52 = scmp.eq.s32.totalorder %s51, 0
      %s54 = sadd.s32 %s53, 1
      %s55 = scalar_select %p52, %s53, %s54
      %p58 = pneg %p52
      %p59 = scmp.eq.s32.totalorder %s29, 7
      %p60 = por %p58, %p59
      %p61 = scmp.ne.s32.totalorder %s53, %s56
      %p62 = scmp.eq.s32.totalorder %s29, 0
      %p63 = por %p61, %p62
      %p64 = scmp.ne.s32.totalorder %s53, %s56
      %p65 = scmp.eq.s32.totalorder %s34, 7
      %p66 = por %p64, %p65
      %p67 = scmp.ne.s32.totalorder %s56, %s57
      %p68 = scmp.eq.s32.totalorder %s34, 0
      %p69 = por %p67, %p68
      %p70 = scmp.ne.s32.totalorder %s56, %s57
      %p71 = scmp.eq.s32.totalorder %s35, 7
      %p72 = por %p70, %p71
      %p74 = scmp.ne.s32.totalorder %s57, %s73
      %p75 = scmp.eq.s32.totalorder %s35, 0
      %p76 = por %p74, %p75
      %s77 = sadd.s32 %s37, 1
      %s78 = sadd.s32 %s44, 1
      %s79 = ssub.s32 %s36, %s48
      %s80 = ssub.s32 %s77, %s78
      %s81 = sor.u32 %s79, %s80
      %p82 = scmp.eq.s32.totalorder %s81, 0
      %s84 = sadd.s32 %s83, 1
      %s85 = scalar_select %p82, %s83, %s84
      %p88 = pneg %p82
      %p89 = scmp.eq.s32.totalorder %s29, 7
      %p90 = por %p88, %p89
      %p91 = scmp.ne.s32.totalorder %s83, %s86
      %p92 = scmp.eq.s32.totalorder %s29, 0
      %p93 = por %p91, %p92
      %p94 = scmp.ne.s32.totalorder %s83, %s86
      %p95 = scmp.eq.s32.totalorder %s34, 7
      %p96 = por %p94, %p95
      %p97 = scmp.ne.s32.totalorder %s86, %s87
      %p98 = scmp.eq.s32.totalorder %s34, 0
      %p99 = por %p97, %p98
      %p100 = scmp.ne.s32.totalorder %s86, %s87
      %p101 = scmp.eq.s32.totalorder %s35, 7
      %p102 = por %p100, %p101
      %p104 = scmp.ne.s32.totalorder %s87, %s103
      %p105 = scmp.eq.s32.totalorder %s35, 0
      %p106 = por %p104, %p105
      %s107 = sadd.s32 %s37, 2
      %s108 = sadd.s32 %s44, 2
      %s109 = ssub.s32 %s36, %s48
      %s110 = ssub.s32 %s107, %s108
      %s111 = sor.u32 %s109, %s110
      %p112 = scmp.eq.s32.totalorder %s111, 0
      %s114 = sadd.s32 %s113, 1
      %s115 = scalar_select %p112, %s113, %s114
      %p118 = pneg %p112
      %p119 = scmp.eq.s32.totalorder %s29, 7
      %p120 = por %p118, %p119
      %p121 = scmp.ne.s32.totalorder %s113, %s116
      %p122 = scmp.eq.s32.totalorder %s29, 0
      %p123 = por %p121, %p122
      %p124 = scmp.ne.s32.totalorder %s113, %s116
      %p125 = scmp.eq.s32.totalorder %s34, 7
      %p126 = por %p124, %p125
      %p127 = scmp.ne.s32.totalorder %s116, %s117
      %p128 = scmp.eq.s32.totalorder %s34, 0
      %p129 = por %p127, %p128
      %p130 = scmp.ne.s32.totalorder %s116, %s117
      %p131 = scmp.eq.s32.totalorder %s35, 7
      %p132 = por %p130, %p131
      %p134 = scmp.ne.s32.totalorder %s117, %s133
      %p135 = scmp.eq.s32.totalorder %s35, 0
      %p136 = por %p134, %p135
      %s138 = sadd.s32 %s137, 1
      %p141 = scmp.eq.s32.totalorder %s29, 7
      %p142 = scmp.ne.s32.totalorder %s137, %s139
      %p143 = scmp.eq.s32.totalorder %s29, 0
      %p144 = por %p142, %p143
      %p145 = scmp.ne.s32.totalorder %s137, %s139
      %p146 = scmp.eq.s32.totalorder %s34, 7
      %p147 = por %p145, %p146
      %p148 = scmp.ne.s32.totalorder %s139, %s140
      %p149 = scmp.eq.s32.totalorder %s34, 0
      %p150 = por %p148, %p149
      %p151 = scmp.ne.s32.totalorder %s139, %s140
      %p152 = scmp.eq.s32.totalorder %s35, 7
      %p153 = por %p151, %p152
      %p155 = scmp.ne.s32.totalorder %s140, %s154
      %p156 = scmp.eq.s32.totalorder %s35, 0
      %p157 = por %p155, %p156
      %s159 = sadd.s32 %s158, 1
      %p162 = scmp.eq.s32.totalorder %s29, 7
      %p163 = scmp.ne.s32.totalorder %s158, %s160
      %p164 = scmp.eq.s32.totalorder %s29, 0
      %p165 = por %p163, %p164
      %p166 = scmp.ne.s32.totalorder %s158, %s160
      %p167 = scmp.eq.s32.totalorder %s34, 7
      %p168 = por %p166, %p167
      %p169 = scmp.ne.s32.totalorder %s160, %s161
      %p170 = scmp.eq.s32.totalorder %s34, 0
      %p171 = por %p169, %p170
      %p172 = scmp.ne.s32.totalorder %s160, %s161
      %p173 = scmp.eq.s32.totalorder %s35, 7
      %p174 = por %p172, %p173
      %p176 = scmp.ne.s32.totalorder %s161, %s175
      %p177 = scmp.eq.s32.totalorder %s35, 0
      %p178 = por %p176, %p177
      %s180 = sadd.s32 %s179, 1
      %p183 = scmp.eq.s32.totalorder %s29, 7
      %p184 = scmp.ne.s32.totalorder %s179, %s181
      %p185 = scmp.eq.s32.totalorder %s29, 0
      %p186 = por %p184, %p185
      %p187 = scmp.ne.s32.totalorder %s179, %s181
      %p188 = scmp.eq.s32.totalorder %s34, 7
      %p189 = por %p187, %p188
      %p190 = scmp.ne.s32.totalorder %s181, %s182
      %p191 = scmp.eq.s32.totalorder %s34, 0
      %p192 = por %p190, %p191
      %p193 = scmp.ne.s32.totalorder %s181, %s182
      %p194 = scmp.eq.s32.totalorder %s35, 7
      %p195 = por %p193, %p194
      %p197 = scmp.ne.s32.totalorder %s182, %s196
      %p198 = scmp.eq.s32.totalorder %s35, 0
      %p199 = por %p197, %p198
      %s200 = ssub.s32 %s36, %s48
      %s201 = ssub.s32 %s37, %s44
      %s202 = sor.u32 %s200, %s201
      %p203 = scmp.eq.s32.totalorder %s202, 0
      %s205 = sadd.s32 %s204, 1
      %s206 = scalar_select %p203, %s204, %s205
      %p209 = pneg %p203
      %p210 = scmp.eq.s32.totalorder %s29, 7
      %p211 = por %p209, %p210
      %p212 = scmp.ne.s32.totalorder %s204, %s207
      %p213 = scmp.eq.s32.totalorder %s29, 0
      %p214 = por %p212, %p213
      %p215 = scmp.ne.s32.totalorder %s204, %s207
      %p216 = scmp.eq.s32.totalorder %s34, 7
      %p217 = por %p215, %p216
      %p218 = scmp.ne.s32.totalorder %s207, %s208
      %p219 = scmp.eq.s32.totalorder %s34, 0
      %p220 = por %p218, %p219
      %p221 = scmp.ne.s32.totalorder %s207, %s208
      %p222 = scmp.eq.s32.totalorder %s35, 7
      %p223 = por %p221, %p222
      %p225 = scmp.ne.s32.totalorder %s208, %s224
      %p226 = scmp.eq.s32.totalorder %s35, 0
      %p227 = por %p225, %p226
      %s228 = ssub.s32 %s36, %s48
      %s229 = ssub.s32 %s37, %s44
      %s230 = sor.u32 %s228, %s229
      %p231 = scmp.eq.s32.totalorder %s230, 0
      %s233 = sadd.s32 %s232, 1
      %s234 = scalar_select %p231, %s232, %s233
      %p237 = pneg %p231
      %p238 = scmp.eq.s32.totalorder %s29, 7
      %p239 = por %p237, %p238
      %p240 = scmp.ne.s32.totalorder %s232, %s235
      %p241 = scmp.eq.s32.totalorder %s29, 0
      %p242 = por %p240, %p241
      %p243 = scmp.ne.s32.totalorder %s232, %s235
      %p244 = scmp.eq.s32.totalorder %s34, 7
      %p245 = por %p243, %p244
      %p246 = scmp.ne.s32.totalorder %s235, %s236
      %p247 = scmp.eq.s32.totalorder %s34, 0
      %p248 = por %p246, %p247
      %p249 = scmp.ne.s32.totalorder %s235, %s236
      %p250 = scmp.eq.s32.totalorder %s35, 7
      %p251 = por %p249, %p250
      %p253 = scmp.ne.s32.totalorder %s236, %s252
      %p254 = scmp.eq.s32.totalorder %s35, 0
      %p255 = por %p253, %p254
      %s256 = ssub.s32 %s36, %s48
      %s257 = ssub.s32 %s37, %s44
      %s258 = sor.u32 %s256, %s257
      %p259 = scmp.eq.s32.totalorder %s258, 0
      %s261 = sadd.s32 %s260, 1
      %s262 = scalar_select %p259, %s260, %s261
      %p265 = pneg %p259
      %p266 = scmp.eq.s32.totalorder %s29, 7
      %p267 = por %p265, %p266
      %p268 = scmp.ne.s32.totalorder %s260, %s263
      %p269 = scmp.eq.s32.totalorder %s29, 0
      %p270 = por %p268, %p269
      %p271 = scmp.ne.s32.totalorder %s260, %s263
      %p272 = scmp.eq.s32.totalorder %s34, 7
      %p273 = por %p271, %p272
      %p274 = scmp.ne.s32.totalorder %s263, %s264
      %p275 = scmp.eq.s32.totalorder %s34, 0
      %p276 = por %p274, %p275
      %p277 = scmp.ne.s32.totalorder %s263, %s264
      %p278 = scmp.eq.s32.totalorder %s35, 7
      %p279 = por %p277, %p278
      %p281 = scmp.ne.s32.totalorder %s264, %s280
      %p282 = scmp.eq.s32.totalorder %s35, 0
      %p283 = por %p281, %p282
      %p284 = scmp.le.s32.totalorder 1, %s29
      %p285 = scmp.lt.s32.totalorder %s29, 9
      %p286 = pnand %p284, %p285
      %p287 = pneg %p286
      // Predicated region
      $region9: #{up_conv_forward.2} parent=5 // pred_check
        _
      $region10: #{up_conv_forward.2} parent=5 // pred_check_branch
        %289 = sbr.rel (%p286) target = $region12
      $region11: #{up_conv_forward.2} parent=5 // pred_region
        %s290 = ssub.s32 %s29, 1
        // Predicated region
        $region13: #{up_conv_forward.2} parent=11 // pred_check
          %p291 = pneg %p150
        $region14: #{up_conv_forward.2} parent=11 // pred_check_branch
          %293 = sbr.rel (%p291) target = $region16
        $region15: #{up_conv_forward.2} parent=11 // pred_region
          %s295 = ssub.s32 576, 576
          %296 = vsyncadd [#allocation10], %s295
          %s297 = sshll.u32 [#allocation9], 4
          %s298 = int_to_ptr.vmem [resolvable:$true] %s297
          %303 = dma.hbm_to_vmem [thread:$0]  %s3, 576, %s298, [#allocation10], 64, 64, 4
        $region16: #{up_conv_forward.2} parent=11 // pred_fallthru
          _
        // Predicated region
        $region17: #{up_conv_forward.2} parent=11 // pred_check
          %p304 = pneg %p171
        $region18: #{up_conv_forward.2} parent=11 // pred_check_branch
          %306 = sbr.rel (%p304) target = $region20
        $region19: #{up_conv_forward.2} parent=11 // pred_region
          %s308 = ssub.s32 576, 576
          %309 = vsyncadd [#allocation10], %s308
          %s310 = sshll.u32 [#allocation11], 4
          %s311 = int_to_ptr.vmem [resolvable:$true] %s310
          %316 = dma.hbm_to_vmem [thread:$0]  %s4, 576, %s311, [#allocation10], 64, 64, 4
        $region20: #{up_conv_forward.2} parent=11 // pred_fallthru
          _
        // Predicated region
        $region21: #{up_conv_forward.2} parent=11 // pred_check
          %p317 = pneg %p192
        $region22: #{up_conv_forward.2} parent=11 // pred_check_branch
          %319 = sbr.rel (%p317) target = $region24
        $region23: #{up_conv_forward.2} parent=11 // pred_region
          %s321 = ssub.s32 16, 16
          %322 = vsyncadd [#allocation13], %s321
          %s324 = sshll.u32 [#allocation12], 4
          %s325 = int_to_ptr.vmem [resolvable:$true] %s324
          %327 = dma.hbm_to_vmem [thread:$0]  %s5, 16, %s325, [#allocation13]
        $region24: #{up_conv_forward.2} parent=11 // pred_fallthru
          _
      $region12: #{up_conv_forward.2} parent=5 // pred_fallthru
        _
      %p328 = scmp.lt.s32.totalorder %s29, 8
      // Predicated region
      $region25: #{up_conv_forward.2} parent=5 // pred_check
        %p329 = pneg %p328
      $region26: #{up_conv_forward.2} parent=5 // pred_check_branch
        %331 = sbr.rel (%p329) target = $region28
      $region27: #{up_conv_forward.2} parent=5 // pred_region
        // Predicated region
        $region29: #{up_conv_forward.2} parent=27 // pred_check
          %p332 = pneg %p63
        $region30: #{up_conv_forward.2} parent=27 // pred_check_branch
          %334 = sbr.rel (%p332) target = $region32
        $region31: #{up_conv_forward.2} parent=27 // pred_region
          %s335 = sand.u32 %s53, 1
          %s336 = scalar_lea.sflag [#allocation4], %s335
          %s337 = sand.u32 %s53, 1
          %s338 = smul.addr %s337, 48
          %s339 = scalar_lea.vmem [#allocation3], %s338
          %s341 = ssub.s32 768, 768
          %342 = vsyncadd %s336, %s341
          %s343 = smul.addr %s37, 12
          %s344 = smul.addr %s36, 72
          %s345 = sadd.s32 %s343, %s344
          %s346 = smul.addr %s345, 64
          %s347 = scalar_lea.hbm %s0, %s346
          %s348 = sshll.u32 %s339, 4
          %s349 = int_to_ptr.vmem [resolvable:$true] %s348
          %354 = dma.hbm_to_vmem [thread:$0]  %s347, 768, %s349, %s336, 64, 64, 4
        $region32: #{up_conv_forward.2} parent=27 // pred_fallthru
          _
        // Predicated region
        $region33: #{up_conv_forward.2} parent=27 // pred_check
          %p355 = pneg %p93
        $region34: #{up_conv_forward.2} parent=27 // pred_check_branch
          %357 = sbr.rel (%p355) target = $region36
        $region35: #{up_conv_forward.2} parent=27 // pred_region
          %s358 = sand.u32 %s29, 1
          %s359 = scalar_lea.sflag [#allocation7], %s358
          %s360 = sand.u32 %s83, 1
          %s361 = smul.addr %s360, 48
          %s362 = scalar_lea.vmem [#allocation6], %s361
          %s363 = sadd.s32 %s37, 1
          %s365 = ssub.s32 768, 768
          %366 = vsyncadd %s359, %s365
          %s367 = smul.addr %s363, 12
          %s368 = smul.addr %s36, 72
          %s369 = sadd.s32 %s367, %s368
          %s370 = smul.addr %s369, 64
          %s371 = scalar_lea.hbm %s1, %s370
          %s372 = sshll.u32 %s362, 4
          %s373 = int_to_ptr.vmem [resolvable:$true] %s372
          %378 = dma.hbm_to_vmem [thread:$0]  %s371, 768, %s373, %s359, 64, 64, 4
        $region36: #{up_conv_forward.2} parent=27 // pred_fallthru
          _
        // Predicated region
        $region37: #{up_conv_forward.2} parent=27 // pred_check
          %p379 = pneg %p123
        $region38: #{up_conv_forward.2} parent=27 // pred_check_branch
          %381 = sbr.rel (%p379) target = $region40
        $region39: #{up_conv_forward.2} parent=27 // pred_region
          %s382 = sand.u32 %s29, 1
          %s383 = scalar_lea.sflag [#allocation7], %s382
          %s384 = sand.u32 %s113, 1
          %s385 = smul.addr %s384, 48
          %s386 = scalar_lea.vmem [#allocation8], %s385
          %s387 = sadd.s32 %s37, 2
          %s389 = ssub.s32 768, 768
          %390 = vsyncadd %s383, %s389
          %s391 = smul.addr %s387, 12
          %s392 = smul.addr %s36, 72
          %s393 = sadd.s32 %s391, %s392
          %s394 = smul.addr %s393, 64
          %s395 = scalar_lea.hbm %s2, %s394
          %s396 = sshll.u32 %s386, 4
          %s397 = int_to_ptr.vmem [resolvable:$true] %s396
          %402 = dma.hbm_to_vmem [thread:$0]  %s395, 768, %s397, %s383, 64, 64, 4
        $region40: #{up_conv_forward.2} parent=27 // pred_fallthru
          _
      $region28: #{up_conv_forward.2} parent=5 // pred_fallthru
        _
      %p403 = scmp.le.s32.totalorder 1, %s29
      %p404 = scmp.lt.s32.totalorder %s29, 9
      %p405 = pnand %p403, %p404
      %p406 = pneg %p405
      // Predicated region
      $region41: #{up_conv_forward.2} parent=5 // pred_check
        _
      $region42: #{up_conv_forward.2} parent=5 // pred_check_branch
        %408 = sbr.rel (%p405) target = $region44
      $region43: #{up_conv_forward.2} parent=5 // pred_region
        %s409 = ssub.s32 %s29, 1
        %s410 = sand.u32 %s56, 1
        %s411 = scalar_lea.sflag [#allocation4], %s410
        %s412 = sand.u32 %s56, 1
        %s413 = smul.addr %s412, 48
        %s414 = scalar_lea.vmem [#allocation3], %s413
        // Predicated region
        $region45: #{up_conv_forward.2} parent=43 // pred_check
          %p415 = pneg %p69
        $region46: #{up_conv_forward.2} parent=43 // pred_check_branch
          %417 = sbr.rel (%p415) target = $region48
        $region47: #{up_conv_forward.2} parent=43 // pred_region
          %418 = dma.done %s411, 768
        $region48: #{up_conv_forward.2} parent=43 // pred_fallthru
          _
        %s419 = sand.u32 %s34, 1
        %s420 = scalar_lea.sflag [#allocation7], %s419
        %s421 = sand.u32 %s86, 1
        %s422 = smul.addr %s421, 48
        %s423 = scalar_lea.vmem [#allocation6], %s422
        // Predicated region
        $region49: #{up_conv_forward.2} parent=43 // pred_check
          %p424 = pneg %p99
        $region50: #{up_conv_forward.2} parent=43 // pred_check_branch
          %426 = sbr.rel (%p424) target = $region52
        $region51: #{up_conv_forward.2} parent=43 // pred_region
          %427 = dma.done %s420, 768
        $region52: #{up_conv_forward.2} parent=43 // pred_fallthru
          _
        %s428 = sand.u32 %s34, 1
        %s429 = scalar_lea.sflag [#allocation7], %s428
        %s430 = sand.u32 %s116, 1
        %s431 = smul.addr %s430, 48
        %s432 = scalar_lea.vmem [#allocation8], %s431
        // Predicated region
        $region53: #{up_conv_forward.2} parent=43 // pred_check
          %p433 = pneg %p129
        $region54: #{up_conv_forward.2} parent=43 // pred_check_branch
          %435 = sbr.rel (%p433) target = $region56
        $region55: #{up_conv_forward.2} parent=43 // pred_region
          %436 = dma.done %s429, 768
        $region56: #{up_conv_forward.2} parent=43 // pred_fallthru
          _
        // Predicated region
        $region57: #{up_conv_forward.2} parent=43 // pred_check
          %p437 = pneg %p150
        $region58: #{up_conv_forward.2} parent=43 // pred_check_branch
          %439 = sbr.rel (%p437) target = $region60
        $region59: #{up_conv_forward.2} parent=43 // pred_region
          %440 = dma.done [#allocation10], 576
        $region60: #{up_conv_forward.2} parent=43 // pred_fallthru
          _
        // Predicated region
        $region61: #{up_conv_forward.2} parent=43 // pred_check
          %p441 = pneg %p171
        $region62: #{up_conv_forward.2} parent=43 // pred_check_branch
          %443 = sbr.rel (%p441) target = $region64
        $region63: #{up_conv_forward.2} parent=43 // pred_region
          %444 = dma.done [#allocation10], 576
        $region64: #{up_conv_forward.2} parent=43 // pred_fallthru
          _
        // Predicated region
        $region65: #{up_conv_forward.2} parent=43 // pred_check
          %p445 = pneg %p192
        $region66: #{up_conv_forward.2} parent=43 // pred_check_branch
          %447 = sbr.rel (%p445) target = $region68
        $region67: #{up_conv_forward.2} parent=43 // pred_region
          %448 = dma.done [#allocation13], 16
        $region68: #{up_conv_forward.2} parent=43 // pred_fallthru
          _
        %s449 = sand.u32 %s56, 1
        %s450 = scalar_lea.sflag [#allocation4], %s449
        %s451 = sand.u32 %s56, 1
        %s452 = smul.addr %s451, 48
        %s453 = scalar_lea.vmem [#allocation3], %s452
        %p454 = pneg %p69
        %p455 = pneg %p66
        %s456 = sand.u32 %s34, 1
        %s457 = scalar_lea.sflag [#allocation7], %s456
        %s458 = sand.u32 %s86, 1
        %s459 = smul.addr %s458, 48
        %s460 = scalar_lea.vmem [#allocation6], %s459
        %p461 = pneg %p99
        %p462 = pneg %p96
        %s463 = sand.u32 %s34, 1
        %s464 = scalar_lea.sflag [#allocation7], %s463
        %s465 = sand.u32 %s116, 1
        %s466 = smul.addr %s465, 48
        %s467 = scalar_lea.vmem [#allocation8], %s466
        %p468 = pneg %p129
        %p469 = pneg %p126
        %p470 = pneg %p150
        %p471 = pneg %p147
        %p472 = pneg %p171
        %p473 = pneg %p168
        %p474 = pneg %p192
        %p475 = pneg %p189
        %p476 = pneg %p220
        %p477 = pneg %p217
        %s478 = sand.u32 %s207, 1
        %s479 = scalar_lea.sflag [#allocation5], %s478
        %s480 = sand.u32 %s207, 1
        %s481 = smul.addr %s480, 64
        %s482 = scalar_lea.vmem [#allocation14], %s481
        %p483 = pneg %p248
        %p484 = pneg %p245
        %s485 = sand.u32 %s34, 1
        %s486 = scalar_lea.sflag [#allocation16], %s485
        %s487 = sand.u32 %s235, 1
        %s488 = smul.addr %s487, 8
        %s489 = scalar_lea.vmem [#allocation15], %s488
        %p490 = pneg %p276
        %p491 = pneg %p273
        %s492 = sand.u32 %s34, 1
        %s493 = scalar_lea.sflag [#allocation16], %s492
        %s494 = sand.u32 %s263, 1
        %s495 = smul.addr %s494, 8
        %s496 = scalar_lea.vmem [#allocation17], %s495
        %s497 = sadd.s32 %s39, 1
        %s498 = sadd.s32 %s39, 2
        %s499 = smul.u32 16, %s39
        %v501 = vld [vmem:[#allocation12] sm:$0x1]
        %v502 = vld [vmem:[%s414] sm:$0xf]
        %v503 = vld [vmem:[%s414 + $0x4] sm:$0x1]
        %v504 = vld [vmem:[%s414 + $0x8] sm:$0xf]
        %v505 = vld [vmem:[%s414 + $0xc] sm:$0x1]
        %v506 = vld [vmem:[%s414 + $0x10] sm:$0xf]
        %v507 = vld [vmem:[%s414 + $0x14] sm:$0x1]
        %v508 = vld [vmem:[%s414 + $0x18] sm:$0xf]
        %v509 = vld [vmem:[%s414 + $0x1c] sm:$0x1]
        %v510 = vld [vmem:[%s414 + $0x20] sm:$0xf]
        %v511 = vld [vmem:[%s414 + $0x24] sm:$0x1]
        %v512 = vld [vmem:[%s414 + $0x28] sm:$0xf]
        %v513 = vld [vmem:[%s414 + $0x2c] sm:$0x1]
        %v514 = vunpack.c.l.bf16 %v502
        %v515 = vunpack.c.l.bf16 %v503
        %v516 = vunpack.c.l.bf16 %v504
        %v517 = vunpack.c.l.bf16 %v505
        %v518 = vunpack.c.l.bf16 %v506
        %v519 = vunpack.c.l.bf16 %v507
        %v520 = vunpack.c.l.bf16 %v508
        %v521 = vunpack.c.l.bf16 %v509
        %v522 = vunpack.c.l.bf16 %v510
        %v523 = vunpack.c.l.bf16 %v511
        %v524 = vunpack.c.l.bf16 %v512
        %v525 = vunpack.c.l.bf16 %v513
        %v526 = vld [vmem:[%s423] sm:$0xf]
        %v527 = vld [vmem:[%s423 + $0x4] sm:$0x1]
        %v528 = vld [vmem:[%s423 + $0x8] sm:$0xf]
        %v529 = vld [vmem:[%s423 + $0xc] sm:$0x1]
        %v530 = vld [vmem:[%s423 + $0x10] sm:$0xf]
        %v531 = vld [vmem:[%s423 + $0x14] sm:$0x1]
        %v532 = vld [vmem:[%s423 + $0x18] sm:$0xf]
        %v533 = vld [vmem:[%s423 + $0x1c] sm:$0x1]
        %v534 = vld [vmem:[%s423 + $0x20] sm:$0xf]
        %v535 = vld [vmem:[%s423 + $0x24] sm:$0x1]
        %v536 = vld [vmem:[%s423 + $0x28] sm:$0xf]
        %v537 = vld [vmem:[%s423 + $0x2c] sm:$0x1]
        %v538 = vunpack.c.l.bf16 %v526
        %v539 = vunpack.c.l.bf16 %v527
        %v540 = vunpack.c.l.bf16 %v528
        %v541 = vunpack.c.l.bf16 %v529
        %v542 = vunpack.c.l.bf16 %v530
        %v543 = vunpack.c.l.bf16 %v531
        %v544 = vunpack.c.l.bf16 %v532
        %v545 = vunpack.c.l.bf16 %v533
        %v546 = vunpack.c.l.bf16 %v534
        %v547 = vunpack.c.l.bf16 %v535
        %v548 = vunpack.c.l.bf16 %v536
        %v549 = vunpack.c.l.bf16 %v537
        %v550 = vld [vmem:[%s432] sm:$0xf]
        %v551 = vld [vmem:[%s432 + $0x4] sm:$0x1]
        %v552 = vld [vmem:[%s432 + $0x8] sm:$0xf]
        %v553 = vld [vmem:[%s432 + $0xc] sm:$0x1]
        %v554 = vld [vmem:[%s432 + $0x10] sm:$0xf]
        %v555 = vld [vmem:[%s432 + $0x14] sm:$0x1]
        %v556 = vld [vmem:[%s432 + $0x18] sm:$0xf]
        %v557 = vld [vmem:[%s432 + $0x1c] sm:$0x1]
        %v558 = vld [vmem:[%s432 + $0x20] sm:$0xf]
        %v559 = vld [vmem:[%s432 + $0x24] sm:$0x1]
        %v560 = vld [vmem:[%s432 + $0x28] sm:$0xf]
        %v561 = vld [vmem:[%s432 + $0x2c] sm:$0x1]
        %v562 = vunpack.c.l.bf16 %v550
        %v563 = vunpack.c.l.bf16 %v551
        %v564 = vunpack.c.l.bf16 %v552
        %v565 = vunpack.c.l.bf16 %v553
        %v566 = vunpack.c.l.bf16 %v554
        %v567 = vunpack.c.l.bf16 %v555
        %v568 = vunpack.c.l.bf16 %v556
        %v569 = vunpack.c.l.bf16 %v557
        %v570 = vunpack.c.l.bf16 %v558
        %v571 = vunpack.c.l.bf16 %v559
        %v572 = vunpack.c.l.bf16 %v560
        %v573 = vunpack.c.l.bf16 %v561
        %v574 = vpack.c.bf16 %v516, %v514
        %v575 = vpack.c.bf16 %v518, %v516
        %v576 = vpack.c.bf16 %v520, %v518
        %v577 = vpack.c.bf16 %v522, %v520
        %vm578 = vcmask 31744
        %579 = vst.msk [vmem:[#allocation2] sm:$0xff] %vm578, %v574
        %580 = vst.msk [vmem:[#allocation2 + $0x8] sm:$0xff] %vm578, %v575
        %581 = vst.msk [vmem:[#allocation2 + $0x10] sm:$0xff] %vm578, %v576
        %582 = vst.msk [vmem:[#allocation2 + $0x18] sm:$0xff] %vm578, %v577
        %vm593 = vcmask 1046528
        %v594 = vrot.slane %v514, 1
        %v595 = vrot.slane %v515, 1
        %v596 = vsel %vm593, %v594, %v595
        %v597 = vrot.slane %v516, 1
        %v598 = vrot.slane %v517, 1
        %v599 = vsel %vm593, %v597, %v598
        %v600 = vrot.slane %v518, 1
        %v601 = vrot.slane %v519, 1
        %v602 = vsel %vm593, %v600, %v601
        %v603 = vrot.slane %v520, 1
        %v604 = vrot.slane %v521, 1
        %v605 = vsel %vm593, %v603, %v604
        %v606 = vrot.slane %v522, 1
        %v607 = vrot.slane %v523, 1
        %v608 = vsel %vm593, %v606, %v607
        %v614 = vpack.c.bf16 %v599, %v596
        %v615 = vpack.c.bf16 %v602, %v599
        %v616 = vpack.c.bf16 %v605, %v602
        %v617 = vpack.c.bf16 %v608, %v605
        %622 = vrot.lane.b32.xlu0 %v614, 4
        %v623 = vpop.permute.xlu0 %622
        %624 = vrot.lane.b32.xlu0 %v615, 4
        %v625 = vpop.permute.xlu0 %624
        %626 = vrot.lane.b32.xlu0 %v616, 4
        %v627 = vpop.permute.xlu0 %626
        %628 = vrot.lane.b32.xlu0 %v617, 4
        %v629 = vpop.permute.xlu0 %628
        %vm634 = vcmask 64544
        %635 = vst.msk [vmem:[#allocation2] sm:$0xff] %vm634, %v623
        %636 = vst.msk [vmem:[#allocation2 + $0x8] sm:$0xff] %vm634, %v625
        %637 = vst.msk [vmem:[#allocation2 + $0x10] sm:$0xff] %vm634, %v627
        %638 = vst.msk [vmem:[#allocation2 + $0x18] sm:$0xff] %vm634, %v629
        %vm639 = vcmask 1045504
        %v640 = vrot.slane %v514, 2
        %v641 = vrot.slane %v515, 2
        %v642 = vsel %vm639, %v640, %v641
        %v643 = vrot.slane %v516, 2
        %v644 = vrot.slane %v517, 2
        %v645 = vsel %vm639, %v643, %v644
        %v646 = vrot.slane %v518, 2
        %v647 = vrot.slane %v519, 2
        %v648 = vsel %vm639, %v646, %v647
        %v649 = vrot.slane %v520, 2
        %v650 = vrot.slane %v521, 2
        %v651 = vsel %vm639, %v649, %v650
        %v652 = vrot.slane %v522, 2
        %v653 = vrot.slane %v523, 2
        %v654 = vsel %vm639, %v652, %v653
        %v660 = vpack.c.bf16 %v645, %v642
        %v661 = vpack.c.bf16 %v648, %v645
        %v662 = vpack.c.bf16 %v651, %v648
        %v663 = vpack.c.bf16 %v654, %v651
        %668 = vrot.lane.b32.xlu0 %v660, 8
        %v669 = vpop.permute.xlu0 %668
        %670 = vrot.lane.b32.xlu0 %v661, 8
        %v671 = vpop.permute.xlu0 %670
        %672 = vrot.lane.b32.xlu0 %v662, 8
        %v673 = vpop.permute.xlu0 %672
        %674 = vrot.lane.b32.xlu0 %v663, 8
        %v675 = vpop.permute.xlu0 %674
        %vm680 = vcmask 97344
        %681 = vst.msk [vmem:[#allocation2] sm:$0xff] %vm680, %v669
        %682 = vst.msk [vmem:[#allocation2 + $0x8] sm:$0xff] %vm680, %v671
        %683 = vst.msk [vmem:[#allocation2 + $0x10] sm:$0xff] %vm680, %v673
        %684 = vst.msk [vmem:[#allocation2 + $0x18] sm:$0xff] %vm680, %v675
        %v685 = vpack.c.bf16 %v516, %v516
        %v686 = vpack.c.bf16 %v518, %v518
        %v687 = vpack.c.bf16 %v520, %v520
        %v688 = vpack.c.bf16 %v522, %v522
        %693 = vrot.lane.b32.xlu0 %v685, 12
        %v694 = vpop.permute.xlu0 %693
        %695 = vrot.lane.b32.xlu0 %v686, 12
        %v696 = vpop.permute.xlu0 %695
        %697 = vrot.lane.b32.xlu0 %v687, 12
        %v698 = vpop.permute.xlu0 %697
        %699 = vrot.lane.b32.xlu0 %v688, 12
        %v700 = vpop.permute.xlu0 %699
        %vm705 = vcmask 130144
        %706 = vst.msk [vmem:[#allocation2] sm:$0xff] %vm705, %v694
        %707 = vst.msk [vmem:[#allocation2 + $0x8] sm:$0xff] %vm705, %v696
        %708 = vst.msk [vmem:[#allocation2 + $0x10] sm:$0xff] %vm705, %v698
        %709 = vst.msk [vmem:[#allocation2 + $0x18] sm:$0xff] %vm705, %v700
        %v710 = vpack.c.bf16 %v599, %v599
        %v711 = vpack.c.bf16 %v602, %v602
        %v712 = vpack.c.bf16 %v605, %v605
        %v713 = vpack.c.bf16 %v608, %v608
        %718 = vrot.lane.b32.xlu0 %v710, 16
        %v719 = vpop.permute.xlu0 %718
        %720 = vrot.lane.b32.xlu0 %v711, 16
        %v721 = vpop.permute.xlu0 %720
        %722 = vrot.lane.b32.xlu0 %v712, 16
        %v723 = vpop.permute.xlu0 %722
        %724 = vrot.lane.b32.xlu0 %v713, 16
        %v725 = vpop.permute.xlu0 %724
        %vm730 = vcmask 162944
        %731 = vst.msk [vmem:[#allocation2] sm:$0xff] %vm730, %v719
        %732 = vst.msk [vmem:[#allocation2 + $0x8] sm:$0xff] %vm730, %v721
        %733 = vst.msk [vmem:[#allocation2 + $0x10] sm:$0xff] %vm730, %v723
        %734 = vst.msk [vmem:[#allocation2 + $0x18] sm:$0xff] %vm730, %v725
        %v735 = vpack.c.bf16 %v645, %v645
        %v736 = vpack.c.bf16 %v648, %v648
        %v737 = vpack.c.bf16 %v651, %v651
        %v738 = vpack.c.bf16 %v654, %v654
        %743 = vrot.lane.b32.xlu0 %v735, 20
        %v744 = vpop.permute.xlu0 %743
        %745 = vrot.lane.b32.xlu0 %v736, 20
        %v746 = vpop.permute.xlu0 %745
        %747 = vrot.lane.b32.xlu0 %v737, 20
        %v748 = vpop.permute.xlu0 %747
        %749 = vrot.lane.b32.xlu0 %v738, 20
        %v750 = vpop.permute.xlu0 %749
        %vm755 = vcmask 195744
        %756 = vst.msk [vmem:[#allocation2] sm:$0xff] %vm755, %v744
        %757 = vst.msk [vmem:[#allocation2 + $0x8] sm:$0xff] %vm755, %v746
        %758 = vst.msk [vmem:[#allocation2 + $0x10] sm:$0xff] %vm755, %v748
        %759 = vst.msk [vmem:[#allocation2 + $0x18] sm:$0xff] %vm755, %v750
        %v760 = vpack.c.bf16 %v524, %v522
        %765 = vrot.lane.b32.xlu0 %v575, 24
        %v766 = vpop.permute.xlu0 %765
        %767 = vrot.lane.b32.xlu0 %v576, 24
        %v768 = vpop.permute.xlu0 %767
        %769 = vrot.lane.b32.xlu0 %v577, 24
        %v770 = vpop.permute.xlu0 %769
        %771 = vrot.lane.b32.xlu0 %v760, 24
        %v772 = vpop.permute.xlu0 %771
        %vm777 = vcmask 228544
        %778 = vst.msk [vmem:[#allocation2] sm:$0xff] %vm777, %v766
        %779 = vst.msk [vmem:[#allocation2 + $0x8] sm:$0xff] %vm777, %v768
        %780 = vst.msk [vmem:[#allocation2 + $0x10] sm:$0xff] %vm777, %v770
        %781 = vst.msk [vmem:[#allocation2 + $0x18] sm:$0xff] %vm777, %v772
        %v784 = vrot.slane %v524, 1
        %v785 = vrot.slane %v525, 1
        %v786 = vsel %vm593, %v784, %v785
        %v788 = vpack.c.bf16 %v786, %v608
        %790 = vrot.lane.b32.xlu0 %v615, 28
        %v791 = vpop.permute.xlu0 %790
        %792 = vrot.lane.b32.xlu0 %v616, 28
        %v793 = vpop.permute.xlu0 %792
        %794 = vrot.lane.b32.xlu0 %v617, 28
        %v795 = vpop.permute.xlu0 %794
        %796 = vrot.lane.b32.xlu0 %v788, 28
        %v797 = vpop.permute.xlu0 %796
        %vm802 = vcmask 261344
        %803 = vst.msk [vmem:[#allocation2] sm:$0xff] %vm802, %v791
        %804 = vst.msk [vmem:[#allocation2 + $0x8] sm:$0xff] %vm802, %v793
        %805 = vst.msk [vmem:[#allocation2 + $0x10] sm:$0xff] %vm802, %v795
        %806 = vst.msk [vmem:[#allocation2 + $0x18] sm:$0xff] %vm802, %v797
        %v807 = vrot.slane %v524, 2
        %v808 = vrot.slane %v525, 2
        %v809 = vsel %vm639, %v807, %v808
        %v811 = vpack.c.bf16 %v809, %v654
        %813 = vrot.lane.b32.xlu0 %v661, 32
        %v814 = vpop.permute.xlu0 %813
        %815 = vrot.lane.b32.xlu0 %v662, 32
        %v816 = vpop.permute.xlu0 %815
        %817 = vrot.lane.b32.xlu0 %v663, 32
        %v818 = vpop.permute.xlu0 %817
        %819 = vrot.lane.b32.xlu0 %v811, 32
        %v820 = vpop.permute.xlu0 %819
        %vm825 = vcmask 294144
        %826 = vst.msk [vmem:[#allocation2] sm:$0xff] %vm825, %v814
        %827 = vst.msk [vmem:[#allocation2 + $0x8] sm:$0xff] %vm825, %v816
        %828 = vst.msk [vmem:[#allocation2 + $0x10] sm:$0xff] %vm825, %v818
        %829 = vst.msk [vmem:[#allocation2 + $0x18] sm:$0xff] %vm825, %v820
        %v830 = vpack.c.bf16 %v540, %v538
        %v831 = vpack.c.bf16 %v542, %v540
        %v832 = vpack.c.bf16 %v544, %v542
        %v833 = vpack.c.bf16 %v546, %v544
        %838 = vrot.lane.b32.xlu0 %v830, 36
        %v839 = vpop.permute.xlu0 %838
        %840 = vrot.lane.b32.xlu0 %v831, 36
        %v841 = vpop.permute.xlu0 %840
        %842 = vrot.lane.b32.xlu0 %v832, 36
        %v843 = vpop.permute.xlu0 %842
        %844 = vrot.lane.b32.xlu0 %v833, 36
        %v845 = vpop.permute.xlu0 %844
        %vm850 = vcmask 326944
        %851 = vst.msk [vmem:[#allocation2] sm:$0xff] %vm850, %v839
        %852 = vst.msk [vmem:[#allocation2 + $0x8] sm:$0xff] %vm850, %v841
        %853 = vst.msk [vmem:[#allocation2 + $0x10] sm:$0xff] %vm850, %v843
        %854 = vst.msk [vmem:[#allocation2 + $0x18] sm:$0xff] %vm850, %v845
        %v865 = vrot.slane %v538, 1
        %v866 = vrot.slane %v539, 1
        %v867 = vsel %vm593, %v865, %v866
        %v868 = vrot.slane %v540, 1
        %v869 = vrot.slane %v541, 1
        %v870 = vsel %vm593, %v868, %v869
        %v871 = vrot.slane %v542, 1
        %v872 = vrot.slane %v543, 1
        %v873 = vsel %vm593, %v871, %v872
        %v874 = vrot.slane %v544, 1
        %v875 = vrot.slane %v545, 1
        %v876 = vsel %vm593, %v874, %v875
        %v877 = vrot.slane %v546, 1
        %v878 = vrot.slane %v547, 1
        %v879 = vsel %vm593, %v877, %v878
        %v885 = vpack.c.bf16 %v870, %v867
        %v886 = vpack.c.bf16 %v873, %v870
        %v887 = vpack.c.bf16 %v876, %v873
        %v888 = vpack.c.bf16 %v879, %v876
        %893 = vrot.lane.b32.xlu0 %v885, 40
        %v894 = vpop.permute.xlu0 %893
        %895 = vrot.lane.b32.xlu0 %v886, 40
        %v896 = vpop.permute.xlu0 %895
        %897 = vrot.lane.b32.xlu0 %v887, 40
        %v898 = vpop.permute.xlu0 %897
        %899 = vrot.lane.b32.xlu0 %v888, 40
        %v900 = vpop.permute.xlu0 %899
        %vm905 = vcmask 359744
        %906 = vst.msk [vmem:[#allocation2] sm:$0xff] %vm905, %v894
        %907 = vst.msk [vmem:[#allocation2 + $0x8] sm:$0xff] %vm905, %v896
        %908 = vst.msk [vmem:[#allocation2 + $0x10] sm:$0xff] %vm905, %v898
        %909 = vst.msk [vmem:[#allocation2 + $0x18] sm:$0xff] %vm905, %v900
        %v910 = vrot.slane %v538, 2
        %v911 = vrot.slane %v539, 2
        %v912 = vsel %vm639, %v910, %v911
        %v913 = vrot.slane %v540, 2
        %v914 = vrot.slane %v541, 2
        %v915 = vsel %vm639, %v913, %v914
        %v916 = vrot.slane %v542, 2
        %v917 = vrot.slane %v543, 2
        %v918 = vsel %vm639, %v916, %v917
        %v919 = vrot.slane %v544, 2
        %v920 = vrot.slane %v545, 2
        %v921 = vsel %vm639, %v919, %v920
        %v922 = vrot.slane %v546, 2
        %v923 = vrot.slane %v547, 2
        %v924 = vsel %vm639, %v922, %v923
        %v930 = vpack.c.bf16 %v915, %v912
        %v931 = vpack.c.bf16 %v918, %v915
        %v932 = vpack.c.bf16 %v921, %v918
        %v933 = vpack.c.bf16 %v924, %v921
        %938 = vrot.lane.b32.xlu0 %v930, 44
        %v939 = vpop.permute.xlu0 %938
        %940 = vrot.lane.b32.xlu0 %v931, 44
        %v941 = vpop.permute.xlu0 %940
        %942 = vrot.lane.b32.xlu0 %v932, 44
        %v943 = vpop.permute.xlu0 %942
        %944 = vrot.lane.b32.xlu0 %v933, 44
        %v945 = vpop.permute.xlu0 %944
        %vm950 = vcmask 392544
        %951 = vst.msk [vmem:[#allocation2] sm:$0xff] %vm950, %v939
        %952 = vst.msk [vmem:[#allocation2 + $0x8] sm:$0xff] %vm950, %v941
        %953 = vst.msk [vmem:[#allocation2 + $0x10] sm:$0xff] %vm950, %v943
        %954 = vst.msk [vmem:[#allocation2 + $0x18] sm:$0xff] %vm950, %v945
        %v955 = vpack.c.bf16 %v540, %v540
        %v956 = vpack.c.bf16 %v542, %v542
        %v957 = vpack.c.bf16 %v544, %v544
        %v958 = vpack.c.bf16 %v546, %v546
        %963 = vrot.lane.b32.xlu0 %v955, 48
        %v964 = vpop.permute.xlu0 %963
        %965 = vrot.lane.b32.xlu0 %v956, 48
        %v966 = vpop.permute.xlu0 %965
        %967 = vrot.lane.b32.xlu0 %v957, 48
        %v968 = vpop.permute.xlu0 %967
        %969 = vrot.lane.b32.xlu0 %v958, 48
        %v970 = vpop.permute.xlu0 %969
        %vm975 = vcmask 425344
        %976 = vst.msk [vmem:[#allocation2] sm:$0xff] %vm975, %v964
        %977 = vst.msk [vmem:[#allocation2 + $0x8] sm:$0xff] %vm975, %v966
        %978 = vst.msk [vmem:[#allocation2 + $0x10] sm:$0xff] %vm975, %v968
        %979 = vst.msk [vmem:[#allocation2 + $0x18] sm:$0xff] %vm975, %v970
        %v980 = vpack.c.bf16 %v870, %v870
        %v981 = vpack.c.bf16 %v873, %v873
        %v982 = vpack.c.bf16 %v876, %v876
        %v983 = vpack.c.bf16 %v879, %v879
        %988 = vrot.lane.b32.xlu0 %v980, 52
        %v989 = vpop.permute.xlu0 %988
        %990 = vrot.lane.b32.xlu0 %v981, 52
        %v991 = vpop.permute.xlu0 %990
        %992 = vrot.lane.b32.xlu0 %v982, 52
        %v993 = vpop.permute.xlu0 %992
        %994 = vrot.lane.b32.xlu0 %v983, 52
        %v995 = vpop.permute.xlu0 %994
        %vm1000 = vcmask 458144
        %1001 = vst.msk [vmem:[#allocation2] sm:$0xff] %vm1000, %v989
        %1002 = vst.msk [vmem:[#allocation2 + $0x8] sm:$0xff] %vm1000, %v991
        %1003 = vst.msk [vmem:[#allocation2 + $0x10] sm:$0xff] %vm1000, %v993
        %1004 = vst.msk [vmem:[#allocation2 + $0x18] sm:$0xff] %vm1000, %v995
        %v1005 = vpack.c.bf16 %v915, %v915
        %v1006 = vpack.c.bf16 %v918, %v918
        %v1007 = vpack.c.bf16 %v921, %v921
        %v1008 = vpack.c.bf16 %v924, %v924
        %1013 = vrot.lane.b32.xlu0 %v1005, 56
        %v1014 = vpop.permute.xlu0 %1013
        %1015 = vrot.lane.b32.xlu0 %v1006, 56
        %v1016 = vpop.permute.xlu0 %1015
        %1017 = vrot.lane.b32.xlu0 %v1007, 56
        %v1018 = vpop.permute.xlu0 %1017
        %1019 = vrot.lane.b32.xlu0 %v1008, 56
        %v1020 = vpop.permute.xlu0 %1019
        %vm1025 = vcmask 490944
        %1026 = vst.msk [vmem:[#allocation2] sm:$0xff] %vm1025, %v1014
        %1027 = vst.msk [vmem:[#allocation2 + $0x8] sm:$0xff] %vm1025, %v1016
        %1028 = vst.msk [vmem:[#allocation2 + $0x10] sm:$0xff] %vm1025, %v1018
        %1029 = vst.msk [vmem:[#allocation2 + $0x18] sm:$0xff] %vm1025, %v1020
        %v1030 = vpack.c.bf16 %v548, %v546
        %1032 = vrot.lane.b32.xlu0 %v831, 60
        %v1033 = vpop.permute.xlu0 %1032
        %1034 = vrot.lane.b32.xlu0 %v832, 60
        %v1035 = vpop.permute.xlu0 %1034
        %1036 = vrot.lane.b32.xlu0 %v833, 60
        %v1037 = vpop.permute.xlu0 %1036
        %1038 = vrot.lane.b32.xlu0 %v1030, 60
        %v1039 = vpop.permute.xlu0 %1038
        %vm1044 = vcmask 523744
        %1045 = vst.msk [vmem:[#allocation2] sm:$0xff] %vm1044, %v1033
        %1046 = vst.msk [vmem:[#allocation2 + $0x8] sm:$0xff] %vm1044, %v1035
        %1047 = vst.msk [vmem:[#allocation2 + $0x10] sm:$0xff] %vm1044, %v1037
        %1048 = vst.msk [vmem:[#allocation2 + $0x18] sm:$0xff] %vm1044, %v1039
        %v1051 = vrot.slane %v548, 1
        %v1052 = vrot.slane %v549, 1
        %v1053 = vsel %vm593, %v1051, %v1052
        %v1055 = vpack.c.bf16 %v1053, %v879
        %1057 = vrot.lane.b32.xlu0 %v886, 64
        %v1058 = vpop.permute.xlu0 %1057
        %1059 = vrot.lane.b32.xlu0 %v887, 64
        %v1060 = vpop.permute.xlu0 %1059
        %1061 = vrot.lane.b32.xlu0 %v888, 64
        %v1062 = vpop.permute.xlu0 %1061
        %1063 = vrot.lane.b32.xlu0 %v1055, 64
        %v1064 = vpop.permute.xlu0 %1063
        %vm1069 = vcmask 556544
        %1070 = vst.msk [vmem:[#allocation2] sm:$0xff] %vm1069, %v1058
        %1071 = vst.msk [vmem:[#allocation2 + $0x8] sm:$0xff] %vm1069, %v1060
        %1072 = vst.msk [vmem:[#allocation2 + $0x10] sm:$0xff] %vm1069, %v1062
        %1073 = vst.msk [vmem:[#allocation2 + $0x18] sm:$0xff] %vm1069, %v1064
        %v1074 = vrot.slane %v548, 2
        %v1075 = vrot.slane %v549, 2
        %v1076 = vsel %vm639, %v1074, %v1075
        %v1078 = vpack.c.bf16 %v1076, %v924
        %1080 = vrot.lane.b32.xlu0 %v931, 68
        %v1081 = vpop.permute.xlu0 %1080
        %1082 = vrot.lane.b32.xlu0 %v932, 68
        %v1083 = vpop.permute.xlu0 %1082
        %1084 = vrot.lane.b32.xlu0 %v933, 68
        %v1085 = vpop.permute.xlu0 %1084
        %1086 = vrot.lane.b32.xlu0 %v1078, 68
        %v1087 = vpop.permute.xlu0 %1086
        %vm1092 = vcmask 589344
        %1093 = vst.msk [vmem:[#allocation2] sm:$0xff] %vm1092, %v1081
        %1094 = vst.msk [vmem:[#allocation2 + $0x8] sm:$0xff] %vm1092, %v1083
        %1095 = vst.msk [vmem:[#allocation2 + $0x10] sm:$0xff] %vm1092, %v1085
        %1096 = vst.msk [vmem:[#allocation2 + $0x18] sm:$0xff] %vm1092, %v1087
        %v1097 = vld [vmem:[#allocation2] sm:$0xff]
        %v1098 = vld [vmem:[#allocation2 + $0x8] sm:$0xff]
        %v1099 = vld [vmem:[#allocation2 + $0x10] sm:$0xff]
        %v1100 = vld [vmem:[#allocation2 + $0x18] sm:$0xff]
        %v1101 = vld [vmem:[#allocation9] sm:$0xf]
        %v1102 = vld [vmem:[#allocation9 + $0x4] sm:$0xf]
        %v1103 = vld [vmem:[#allocation9 + $0x8] sm:$0xf]
        %v1104 = vld [vmem:[#allocation9 + $0xc] sm:$0xf]
        %v1105 = vld [vmem:[#allocation9 + $0x10] sm:$0xf]
        %v1106 = vld [vmem:[#allocation9 + $0x14] sm:$0xf]
        %v1107 = vld [vmem:[#allocation9 + $0x18] sm:$0xf]
        %v1108 = vld [vmem:[#allocation9 + $0x1c] sm:$0xf]
        %v1109 = vld [vmem:[#allocation9 + $0x20] sm:$0xf]
        %v1111 = vlaneseq
        %v1112 = vshrl.u32 %v1111, 7
        %v1113 = vsub.s32 0, %v1112
        %v1114 = vrot.slane %v501, %v1113
        %v1125 = vunpack.c.l.b16 %v1101
        %v1126 = vunpack.c.l.b16 %v1102
        %v1127 = vunpack.c.l.b16 %v1103
        %v1128 = vunpack.c.l.b16 %v1104
        %v1129 = vunpack.c.l.b16 %v1105
        %v1130 = vunpack.c.l.b16 %v1106
        %v1131 = vunpack.c.l.b16 %v1107
        %v1132 = vunpack.c.l.b16 %v1108
        %v1133 = vunpack.c.l.b16 %v1109
        %v1134 = vpack.c.b16 %v1126, %v1125
        %v1135 = vpack.c.b16 %v1128, %v1127
        %v1136 = vpack.c.b16 %v1130, %v1129
        %v1137 = vpack.c.b16 %v1132, %v1131
        %v1138 = vpack.c.b16 %v1133, %v1133
        %vm1143 = vcmask 588800
        %v1145 = vsel %vm1143, %v1097, 0
        %v1148 = vsel %vm1143, %v1098, 0
        %v1151 = vsel %vm1143, %v1099, 0
        %v1154 = vsel %vm1143, %v1100, 0
        %vm1156 = vcmask 1043456
        %v1158 = vsel %vm1156, %v1138, 0
        %1160 = vmatprep.subr.bf16.mxu0 0
        %1161 = vmatpush1.bf16.msra.mxu0 %v1134
        %1162 = vmatprep.subr.bf16.mxu0 0
        %1163 = vmatpush1.bf16.msra.mxu0 %v1135
        %1164 = vmatprep.subr.bf16.mxu0 0
        %1165 = vmatpush1.bf16.msra.mxu0 %v1136
        %1166 = vmatprep.subr.bf16.mxu0 0
        %1167 = vmatpush1.bf16.msra.mxu0 %v1137
        %1168 = vmatprep.subr.bf16.mxu0 0
        %1169 = vmatpush1.bf16.msra.mxu0 %v1158
        %1170 = vmatprep.subr.bf16.mxu0 0
        %1171 = vmatpush1.bf16.msra.mxu0 0
        %1172 = vmatprep.subr.bf16.mxu0 0
        %1173 = vmatpush1.bf16.msra.mxu0 0
        %1174 = vmatprep.subr.bf16.mxu0 0
        %1175 = vmatpush1.bf16.msra.mxu0 0
        %1176 = vmatprep.subr.bf16.mxu0 0
        %1177 = vmatpush1.bf16.msra.mxu0 0
        %1178 = vmatprep.subr.bf16.mxu0 0
        %1179 = vmatpush1.bf16.msra.mxu0 0
        %1180 = vmatprep.subr.bf16.mxu0 0
        %1181 = vmatpush1.bf16.msra.mxu0 0
        %1182 = vmatprep.subr.bf16.mxu0 0
        %1183 = vmatpush1.bf16.msra.mxu0 0
        %1184 = vmatprep.subr.bf16.mxu0 0
        %1185 = vmatpush1.bf16.msra.mxu0 0
        %1186 = vmatprep.subr.bf16.mxu0 0
        %1187 = vmatpush1.bf16.msra.mxu0 0
        %1188 = vmatprep.subr.bf16.mxu0 0
        %1189 = vmatpush1.bf16.msra.mxu0 0
        %1190 = vmatprep.subr.bf16.mxu0 0
        %1191 = vmatpush1.bf16.msra.mxu0 0
        %1192 = vmatprep.mubr.bf16.mxu0 0
        %1193 = vmatmul.mubr.bf16.gmra.mrb[0].mxu0 %v1145
        %v1194 = vpop.f32.mrb[0].mxu0
        %v1195 = vadd.f32 %v1114, %v1194
        %v1196 = vpop.f32.mrb[0].mxu0
        %v1197 = vpop.f32.mrb[0].mxu0
        %v1198 = vadd.f32 %v1114, %v1197
        %v1199 = vpop.f32.mrb[0].mxu0
        %1200 = vmatprep.mubr.bf16.mxu0 0
        %1201 = vmatmul.mubr.bf16.gmra.mrb[0].mxu0 %v1148
        %v1202 = vpop.f32.mrb[0].mxu0
        %v1203 = vadd.f32 %v1114, %v1202
        %v1204 = vpop.f32.mrb[0].mxu0
        %v1205 = vpop.f32.mrb[0].mxu0
        %v1206 = vadd.f32 %v1114, %v1205
        %v1207 = vpop.f32.mrb[0].mxu0
        %1208 = vmatprep.mubr.bf16.mxu0 0
        %1209 = vmatmul.mubr.bf16.gmra.mrb[0].mxu0 %v1151
        %v1210 = vpop.f32.mrb[0].mxu0
        %v1211 = vadd.f32 %v1114, %v1210
        %v1212 = vpop.f32.mrb[0].mxu0
        %v1213 = vpop.f32.mrb[0].mxu0
        %v1214 = vadd.f32 %v1114, %v1213
        %v1215 = vpop.f32.mrb[0].mxu0
        %1216 = vmatprep.mubr.bf16.mxu0 0
        %1217 = vmatmul.mubr.bf16.gmra.mrb[0].mxu0 %v1154
        %v1218 = vpop.f32.mrb[0].mxu0
        %v1219 = vadd.f32 %v1114, %v1218
        %v1220 = vpop.f32.mrb[0].mxu0
        %v1221 = vpop.f32.mrb[0].mxu0
        %v1222 = vadd.f32 %v1114, %v1221
        %v1223 = vpop.f32.mrb[0].mxu0
        %1224 = vdwg.mxu0
        %v1225 = vpack.c.bf16 %v1198, %v1195
        %v1226 = vpack.c.bf16 %v1206, %v1203
        %v1227 = vpack.c.bf16 %v1214, %v1211
        %v1228 = vpack.c.bf16 %v1222, %v1219
        %v1233 = vunpack.c.l.b16 %v1225
        %v1234 = vunpack.c.h.b16 %v1225
        %v1235 = vunpack.c.l.b16 %v1226
        %v1236 = vunpack.c.h.b16 %v1226
        %v1237 = vunpack.c.l.b16 %v1227
        %v1238 = vunpack.c.h.b16 %v1227
        %v1239 = vunpack.c.l.b16 %v1228
        %v1240 = vunpack.c.h.b16 %v1228
        %v1241 = vpack.c.b16 %v1233, %v1233
        %v1242 = vpack.c.b16 %v1234, %v1234
        %v1243 = vpack.c.b16 %v1235, %v1235
        %v1244 = vpack.c.b16 %v1236, %v1236
        %v1245 = vpack.c.b16 %v1237, %v1237
        %v1246 = vpack.c.b16 %v1238, %v1238
        %v1247 = vpack.c.b16 %v1239, %v1239
        %v1248 = vpack.c.b16 %v1240, %v1240
        %1257 = vst [vmem:[%s482] sm:$0xf] %v1241
        %1258 = vst [vmem:[%s482 + $0x4] sm:$0xf] %v1242
        %1259 = vst [vmem:[%s482 + $0x8] sm:$0xf] %v1243
        %1260 = vst [vmem:[%s482 + $0xc] sm:$0xf] %v1244
        %1261 = vst [vmem:[%s482 + $0x10] sm:$0xf] %v1245
        %1262 = vst [vmem:[%s482 + $0x14] sm:$0xf] %v1246
        %1263 = vst [vmem:[%s482 + $0x18] sm:$0xf] %v1247
        %1264 = vst [vmem:[%s482 + $0x1c] sm:$0xf] %v1248
        %v1265 = vadd.f32 %v1195, %v1198
        %v1266 = vadd.f32 %v1265, %v1203
        %v1267 = vadd.f32 %v1266, %v1206
        %v1268 = vadd.f32 %v1267, %v1211
        %v1269 = vadd.f32 %v1268, %v1214
        %v1270 = vadd.f32 %v1269, %v1219
        %v1271 = vadd.f32 %v1270, %v1222
        %v1272 = vrot.slane %v1271, 4
        %v1273 = vadd.f32 %v1271, %v1272
        %v1274 = vrot.slane %v1273, 2
        %v1275 = vadd.f32 %v1273, %v1274
        %v1276 = vrot.slane %v1275, 1
        %v1277 = vadd.f32 %v1275, %v1276
        %v1278 = vmul.f32 %v1277, 0.015625
        %v1279 = vsub.f32 %v1195, %v1278
        %v1280 = vsub.f32 %v1198, %v1278
        %v1281 = vsub.f32 %v1203, %v1278
        %v1282 = vsub.f32 %v1206, %v1278
        %v1283 = vsub.f32 %v1211, %v1278
        %v1284 = vsub.f32 %v1214, %v1278
        %v1285 = vsub.f32 %v1219, %v1278
        %v1286 = vsub.f32 %v1222, %v1278
        %v1287 = vmul.f32 %v1279, %v1279
        %v1288 = vmul.f32 %v1280, %v1280
        %v1289 = vmul.f32 %v1281, %v1281
        %v1290 = vmul.f32 %v1282, %v1282
        %v1291 = vmul.f32 %v1283, %v1283
        %v1292 = vmul.f32 %v1284, %v1284
        %v1293 = vmul.f32 %v1285, %v1285
        %v1294 = vmul.f32 %v1286, %v1286
        %v1295 = vadd.f32 %v1287, %v1288
        %v1296 = vadd.f32 %v1295, %v1289
        %v1297 = vadd.f32 %v1296, %v1290
        %v1298 = vadd.f32 %v1297, %v1291
        %v1299 = vadd.f32 %v1298, %v1292
        %v1300 = vadd.f32 %v1299, %v1293
        %v1301 = vadd.f32 %v1300, %v1294
        %v1302 = vrot.slane %v1301, 4
        %v1303 = vadd.f32 %v1301, %v1302
        %v1304 = vrot.slane %v1303, 2
        %v1305 = vadd.f32 %v1303, %v1304
        %v1306 = vrot.slane %v1305, 1
        %v1307 = vadd.f32 %v1305, %v1306
        %1308 = vst [vmem:[%s489] sm:$0x1] %v1277
        %1309 = vst [vmem:[%s496] sm:$0x1] %v1307
        %1310 = vst.msk [vmem:[#allocation2] sm:$0xff] %vm578, %v830
        %1311 = vst.msk [vmem:[#allocation2 + $0x8] sm:$0xff] %vm578, %v831
        %1312 = vst.msk [vmem:[#allocation2 + $0x10] sm:$0xff] %vm578, %v832
        %1313 = vst.msk [vmem:[#allocation2 + $0x18] sm:$0xff] %vm578, %v833
        %1314 = vrot.lane.b32.xlu0 %v885, 4
        %v1315 = vpop.permute.xlu0 %1314
        %1316 = vrot.lane.b32.xlu0 %v886, 4
        %v1317 = vpop.permute.xlu0 %1316
        %1318 = vrot.lane.b32.xlu0 %v887, 4
        %v1319 = vpop.permute.xlu0 %1318
        %1320 = vrot.lane.b32.xlu0 %v888, 4
        %v1321 = vpop.permute.xlu0 %1320
        %1326 = vst.msk [vmem:[#allocation2] sm:$0xff] %vm634, %v1315
        %1327 = vst.msk [vmem:[#allocation2 + $0x8] sm:$0xff] %vm634, %v1317
        %1328 = vst.msk [vmem:[#allocation2 + $0x10] sm:$0xff] %vm634, %v1319
        %1329 = vst.msk [vmem:[#allocation2 + $0x18] sm:$0xff] %vm634, %v1321
        %1330 = vrot.lane.b32.xlu0 %v930, 8
        %v1331 = vpop.permute.xlu0 %1330
        %1332 = vrot.lane.b32.xlu0 %v931, 8
        %v1333 = vpop.permute.xlu0 %1332
        %1334 = vrot.lane.b32.xlu0 %v932, 8
        %v1335 = vpop.permute.xlu0 %1334
        %1336 = vrot.lane.b32.xlu0 %v933, 8
        %v1337 = vpop.permute.xlu0 %1336
        %1342 = vst.msk [vmem:[#allocation2] sm:$0xff] %vm680, %v1331
        %1343 = vst.msk [vmem:[#allocation2 + $0x8] sm:$0xff] %vm680, %v1333
        %1344 = vst.msk [vmem:[#allocation2 + $0x10] sm:$0xff] %vm680, %v1335
        %1345 = vst.msk [vmem:[#allocation2 + $0x18] sm:$0xff] %vm680, %v1337
        %1346 = vrot.lane.b32.xlu0 %v955, 12
        %v1347 = vpop.permute.xlu0 %1346
        %1348 = vrot.lane.b32.xlu0 %v956, 12
        %v1349 = vpop.permute.xlu0 %1348
        %1350 = vrot.lane.b32.xlu0 %v957, 12
        %v1351 = vpop.permute.xlu0 %1350
        %1352 = vrot.lane.b32.xlu0 %v958, 12
        %v1353 = vpop.permute.xlu0 %1352
        %1358 = vst.msk [vmem:[#allocation2] sm:$0xff] %vm705, %v1347
        %1359 = vst.msk [vmem:[#allocation2 + $0x8] sm:$0xff] %vm705, %v1349
        %1360 = vst.msk [vmem:[#allocation2 + $0x10] sm:$0xff] %vm705, %v1351
        %1361 = vst.msk [vmem:[#allocation2 + $0x18] sm:$0xff] %vm705, %v1353
        %1362 = vrot.lane.b32.xlu0 %v980, 16
        %v1363 = vpop.permute.xlu0 %1362
        %1364 = vrot.lane.b32.xlu0 %v981, 16
        %v1365 = vpop.permute.xlu0 %1364
        %1366 = vrot.lane.b32.xlu0 %v982, 16
        %v1367 = vpop.permute.xlu0 %1366
        %1368 = vrot.lane.b32.xlu0 %v983, 16
        %v1369 = vpop.permute.xlu0 %1368
        %1374 = vst.msk [vmem:[#allocation2] sm:$0xff] %vm730, %v1363
        %1375 = vst.msk [vmem:[#allocation2 + $0x8] sm:$0xff] %vm730, %v1365
        %1376 = vst.msk [vmem:[#allocation2 + $0x10] sm:$0xff] %vm730, %v1367
        %1377 = vst.msk [vmem:[#allocation2 + $0x18] sm:$0xff] %vm730, %v1369
        %1378 = vrot.lane.b32.xlu0 %v1005, 20
        %v1379 = vpop.permute.xlu0 %1378
        %1380 = vrot.lane.b32.xlu0 %v1006, 20
        %v1381 = vpop.permute.xlu0 %1380
        %1382 = vrot.lane.b32.xlu0 %v1007, 20
        %v1383 = vpop.permute.xlu0 %1382
        %1384 = vrot.lane.b32.xlu0 %v1008, 20
        %v1385 = vpop.permute.xlu0 %1384
        %1390 = vst.msk [vmem:[#allocation2] sm:$0xff] %vm755, %v1379
        %1391 = vst.msk [vmem:[#allocation2 + $0x8] sm:$0xff] %vm755, %v1381
        %1392 = vst.msk [vmem:[#allocation2 + $0x10] sm:$0xff] %vm755, %v1383
        %1393 = vst.msk [vmem:[#allocation2 + $0x18] sm:$0xff] %vm755, %v1385
        %1394 = vrot.lane.b32.xlu0 %v831, 24
        %v1395 = vpop.permute.xlu0 %1394
        %1396 = vrot.lane.b32.xlu0 %v832, 24
        %v1397 = vpop.permute.xlu0 %1396
        %1398 = vrot.lane.b32.xlu0 %v833, 24
        %v1399 = vpop.permute.xlu0 %1398
        %1400 = vrot.lane.b32.xlu0 %v1030, 24
        %v1401 = vpop.permute.xlu0 %1400
        %1406 = vst.msk [vmem:[#allocation2] sm:$0xff] %vm777, %v1395
        %1407 = vst.msk [vmem:[#allocation2 + $0x8] sm:$0xff] %vm777, %v1397
        %1408 = vst.msk [vmem:[#allocation2 + $0x10] sm:$0xff] %vm777, %v1399
        %1409 = vst.msk [vmem:[#allocation2 + $0x18] sm:$0xff] %vm777, %v1401
        %1410 = vrot.lane.b32.xlu0 %v886, 28
        %v1411 = vpop.permute.xlu0 %1410
        %1412 = vrot.lane.b32.xlu0 %v887, 28
        %v1413 = vpop.permute.xlu0 %1412
        %1414 = vrot.lane.b32.xlu0 %v888, 28
        %v1415 = vpop.permute.xlu0 %1414
        %1416 = vrot.lane.b32.xlu0 %v1055, 28
        %v1417 = vpop.permute.xlu0 %1416
        %1422 = vst.msk [vmem:[#allocation2] sm:$0xff] %vm802, %v1411
        %1423 = vst.msk [vmem:[#allocation2 + $0x8] sm:$0xff] %vm802, %v1413
        %1424 = vst.msk [vmem:[#allocation2 + $0x10] sm:$0xff] %vm802, %v1415
        %1425 = vst.msk [vmem:[#allocation2 + $0x18] sm:$0xff] %vm802, %v1417
        %1426 = vrot.lane.b32.xlu0 %v931, 32
        %v1427 = vpop.permute.xlu0 %1426
        %1428 = vrot.lane.b32.xlu0 %v932, 32
        %v1429 = vpop.permute.xlu0 %1428
        %1430 = vrot.lane.b32.xlu0 %v933, 32
        %v1431 = vpop.permute.xlu0 %1430
        %1432 = vrot.lane.b32.xlu0 %v1078, 32
        %v1433 = vpop.permute.xlu0 %1432
        %1438 = vst.msk [vmem:[#allocation2] sm:$0xff] %vm825, %v1427
        %1439 = vst.msk [vmem:[#allocation2 + $0x8] sm:$0xff] %vm825, %v1429
        %1440 = vst.msk [vmem:[#allocation2 + $0x10] sm:$0xff] %vm825, %v1431
        %1441 = vst.msk [vmem:[#allocation2 + $0x18] sm:$0xff] %vm825, %v1433
        %v1442 = vpack.c.bf16 %v564, %v562
        %v1443 = vpack.c.bf16 %v566, %v564
        %v1444 = vpack.c.bf16 %v568, %v566
        %v1445 = vpack.c.bf16 %v570, %v568
        %1450 = vrot.lane.b32.xlu0 %v1442, 36
        %v1451 = vpop.permute.xlu0 %1450
        %1452 = vrot.lane.b32.xlu0 %v1443, 36
        %v1453 = vpop.permute.xlu0 %1452
        %1454 = vrot.lane.b32.xlu0 %v1444, 36
        %v1455 = vpop.permute.xlu0 %1454
        %1456 = vrot.lane.b32.xlu0 %v1445, 36
        %v1457 = vpop.permute.xlu0 %1456
        %1462 = vst.msk [vmem:[#allocation2] sm:$0xff] %vm850, %v1451
        %1463 = vst.msk [vmem:[#allocation2 + $0x8] sm:$0xff] %vm850, %v1453
        %1464 = vst.msk [vmem:[#allocation2 + $0x10] sm:$0xff] %vm850, %v1455
        %1465 = vst.msk [vmem:[#allocation2 + $0x18] sm:$0xff] %vm850, %v1457
        %v1476 = vrot.slane %v562, 1
        %v1477 = vrot.slane %v563, 1
        %v1478 = vsel %vm593, %v1476, %v1477
        %v1479 = vrot.slane %v564, 1
        %v1480 = vrot.slane %v565, 1
        %v1481 = vsel %vm593, %v1479, %v1480
        %v1482 = vrot.slane %v566, 1
        %v1483 = vrot.slane %v567, 1
        %v1484 = vsel %vm593, %v1482, %v1483
        %v1485 = vrot.slane %v568, 1
        %v1486 = vrot.slane %v569, 1
        %v1487 = vsel %vm593, %v1485, %v1486
        %v1488 = vrot.slane %v570, 1
        %v1489 = vrot.slane %v571, 1
        %v1490 = vsel %vm593, %v1488, %v1489
        %v1496 = vpack.c.bf16 %v1481, %v1478
        %v1497 = vpack.c.bf16 %v1484, %v1481
        %v1498 = vpack.c.bf16 %v1487, %v1484
        %v1499 = vpack.c.bf16 %v1490, %v1487
        %1504 = vrot.lane.b32.xlu0 %v1496, 40
        %v1505 = vpop.permute.xlu0 %1504
        %1506 = vrot.lane.b32.xlu0 %v1497, 40
        %v1507 = vpop.permute.xlu0 %1506
        %1508 = vrot.lane.b32.xlu0 %v1498, 40
        %v1509 = vpop.permute.xlu0 %1508
        %1510 = vrot.lane.b32.xlu0 %v1499, 40
        %v1511 = vpop.permute.xlu0 %1510
        %1516 = vst.msk [vmem:[#allocation2] sm:$0xff] %vm905, %v1505
        %1517 = vst.msk [vmem:[#allocation2 + $0x8] sm:$0xff] %vm905, %v1507
        %1518 = vst.msk [vmem:[#allocation2 + $0x10] sm:$0xff] %vm905, %v1509
        %1519 = vst.msk [vmem:[#allocation2 + $0x18] sm:$0xff] %vm905, %v1511
        %v1520 = vrot.slane %v562, 2
        %v1521 = vrot.slane %v563, 2
        %v1522 = vsel %vm639, %v1520, %v1521
        %v1523 = vrot.slane %v564, 2
        %v1524 = vrot.slane %v565, 2
        %v1525 = vsel %vm639, %v1523, %v1524
        %v1526 = vrot.slane %v566, 2
        %v1527 = vrot.slane %v567, 2
        %v1528 = vsel %vm639, %v1526, %v1527
        %v1529 = vrot.slane %v568, 2
        %v1530 = vrot.slane %v569, 2
        %v1531 = vsel %vm639, %v1529, %v1530
        %v1532 = vrot.slane %v570, 2
        %v1533 = vrot.slane %v571, 2
        %v1534 = vsel %vm639, %v1532, %v1533
        %v1540 = vpack.c.bf16 %v1525, %v1522
        %v1541 = vpack.c.bf16 %v1528, %v1525
        %v1542 = vpack.c.bf16 %v1531, %v1528
        %v1543 = vpack.c.bf16 %v1534, %v1531
        %1548 = vrot.lane.b32.xlu0 %v1540, 44
        %v1549 = vpop.permute.xlu0 %1548
        %1550 = vrot.lane.b32.xlu0 %v1541, 44
        %v1551 = vpop.permute.xlu0 %1550
        %1552 = vrot.lane.b32.xlu0 %v1542, 44
        %v1553 = vpop.permute.xlu0 %1552
        %1554 = vrot.lane.b32.xlu0 %v1543, 44
        %v1555 = vpop.permute.xlu0 %1554
        %1560 = vst.msk [vmem:[#allocation2] sm:$0xff] %vm950, %v1549
        %1561 = vst.msk [vmem:[#allocation2 + $0x8] sm:$0xff] %vm950, %v1551
        %1562 = vst.msk [vmem:[#allocation2 + $0x10] sm:$0xff] %vm950, %v1553
        %1563 = vst.msk [vmem:[#allocation2 + $0x18] sm:$0xff] %vm950, %v1555
        %v1564 = vpack.c.bf16 %v564, %v564
        %v1565 = vpack.c.bf16 %v566, %v566
        %v1566 = vpack.c.bf16 %v568, %v568
        %v1567 = vpack.c.bf16 %v570, %v570
        %1572 = vrot.lane.b32.xlu0 %v1564, 48
        %v1573 = vpop.permute.xlu0 %1572
        %1574 = vrot.lane.b32.xlu0 %v1565, 48
        %v1575 = vpop.permute.xlu0 %1574
        %1576 = vrot.lane.b32.xlu0 %v1566, 48
        %v1577 = vpop.permute.xlu0 %1576
        %1578 = vrot.lane.b32.xlu0 %v1567, 48
        %v1579 = vpop.permute.xlu0 %1578
        %1584 = vst.msk [vmem:[#allocation2] sm:$0xff] %vm975, %v1573
        %1585 = vst.msk [vmem:[#allocation2 + $0x8] sm:$0xff] %vm975, %v1575
        %1586 = vst.msk [vmem:[#allocation2 + $0x10] sm:$0xff] %vm975, %v1577
        %1587 = vst.msk [vmem:[#allocation2 + $0x18] sm:$0xff] %vm975, %v1579
        %v1588 = vpack.c.bf16 %v1481, %v1481
        %v1589 = vpack.c.bf16 %v1484, %v1484
        %v1590 = vpack.c.bf16 %v1487, %v1487
        %v1591 = vpack.c.bf16 %v1490, %v1490
        %1596 = vrot.lane.b32.xlu0 %v1588, 52
        %v1597 = vpop.permute.xlu0 %1596
        %1598 = vrot.lane.b32.xlu0 %v1589, 52
        %v1599 = vpop.permute.xlu0 %1598
        %1600 = vrot.lane.b32.xlu0 %v1590, 52
        %v1601 = vpop.permute.xlu0 %1600
        %1602 = vrot.lane.b32.xlu0 %v1591, 52
        %v1603 = vpop.permute.xlu0 %1602
        %1608 = vst.msk [vmem:[#allocation2] sm:$0xff] %vm1000, %v1597
        %1609 = vst.msk [vmem:[#allocation2 + $0x8] sm:$0xff] %vm1000, %v1599
        %1610 = vst.msk [vmem:[#allocation2 + $0x10] sm:$0xff] %vm1000, %v1601
        %1611 = vst.msk [vmem:[#allocation2 + $0x18] sm:$0xff] %vm1000, %v1603
        %v1612 = vpack.c.bf16 %v1525, %v1525
        %v1613 = vpack.c.bf16 %v1528, %v1528
        %v1614 = vpack.c.bf16 %v1531, %v1531
        %v1615 = vpack.c.bf16 %v1534, %v1534
        %1620 = vrot.lane.b32.xlu0 %v1612, 56
        %v1621 = vpop.permute.xlu0 %1620
        %1622 = vrot.lane.b32.xlu0 %v1613, 56
        %v1623 = vpop.permute.xlu0 %1622
        %1624 = vrot.lane.b32.xlu0 %v1614, 56
        %v1625 = vpop.permute.xlu0 %1624
        %1626 = vrot.lane.b32.xlu0 %v1615, 56
        %v1627 = vpop.permute.xlu0 %1626
        %1632 = vst.msk [vmem:[#allocation2] sm:$0xff] %vm1025, %v1621
        %1633 = vst.msk [vmem:[#allocation2 + $0x8] sm:$0xff] %vm1025, %v1623
        %1634 = vst.msk [vmem:[#allocation2 + $0x10] sm:$0xff] %vm1025, %v1625
        %1635 = vst.msk [vmem:[#allocation2 + $0x18] sm:$0xff] %vm1025, %v1627
        %v1636 = vpack.c.bf16 %v572, %v570
        %1638 = vrot.lane.b32.xlu0 %v1443, 60
        %v1639 = vpop.permute.xlu0 %1638
        %1640 = vrot.lane.b32.xlu0 %v1444, 60
        %v1641 = vpop.permute.xlu0 %1640
        %1642 = vrot.lane.b32.xlu0 %v1445, 60
        %v1643 = vpop.permute.xlu0 %1642
        %1644 = vrot.lane.b32.xlu0 %v1636, 60
        %v1645 = vpop.permute.xlu0 %1644
        %1650 = vst.msk [vmem:[#allocation2] sm:$0xff] %vm1044, %v1639
        %1651 = vst.msk [vmem:[#allocation2 + $0x8] sm:$0xff] %vm1044, %v1641
        %1652 = vst.msk [vmem:[#allocation2 + $0x10] sm:$0xff] %vm1044, %v1643
        %1653 = vst.msk [vmem:[#allocation2 + $0x18] sm:$0xff] %vm1044, %v1645
        %v1656 = vrot.slane %v572, 1
        %v1657 = vrot.slane %v573, 1
        %v1658 = vsel %vm593, %v1656, %v1657
        %v1660 = vpack.c.bf16 %v1658, %v1490
        %1662 = vrot.lane.b32.xlu0 %v1497, 64
        %v1663 = vpop.permute.xlu0 %1662
        %1664 = vrot.lane.b32.xlu0 %v1498, 64
        %v1665 = vpop.permute.xlu0 %1664
        %1666 = vrot.lane.b32.xlu0 %v1499, 64
        %v1667 = vpop.permute.xlu0 %1666
        %1668 = vrot.lane.b32.xlu0 %v1660, 64
        %v1669 = vpop.permute.xlu0 %1668
        %1674 = vst.msk [vmem:[#allocation2] sm:$0xff] %vm1069, %v1663
        %1675 = vst.msk [vmem:[#allocation2 + $0x8] sm:$0xff] %vm1069, %v1665
        %1676 = vst.msk [vmem:[#allocation2 + $0x10] sm:$0xff] %vm1069, %v1667
        %1677 = vst.msk [vmem:[#allocation2 + $0x18] sm:$0xff] %vm1069, %v1669
        %v1678 = vrot.slane %v572, 2
        %v1679 = vrot.slane %v573, 2
        %v1680 = vsel %vm639, %v1678, %v1679
        %v1682 = vpack.c.bf16 %v1680, %v1534
        %1684 = vrot.lane.b32.xlu0 %v1541, 68
        %v1685 = vpop.permute.xlu0 %1684
        %1686 = vrot.lane.b32.xlu0 %v1542, 68
        %v1687 = vpop.permute.xlu0 %1686
        %1688 = vrot.lane.b32.xlu0 %v1543, 68
        %v1689 = vpop.permute.xlu0 %1688
        %1690 = vrot.lane.b32.xlu0 %v1682, 68
        %v1691 = vpop.permute.xlu0 %1690
        %1696 = vst.msk [vmem:[#allocation2] sm:$0xff] %vm1092, %v1685
        %1697 = vst.msk [vmem:[#allocation2 + $0x8] sm:$0xff] %vm1092, %v1687
        %1698 = vst.msk [vmem:[#allocation2 + $0x10] sm:$0xff] %vm1092, %v1689
        %1699 = vst.msk [vmem:[#allocation2 + $0x18] sm:$0xff] %vm1092, %v1691
        %v1700 = vld [vmem:[#allocation2] sm:$0xff]
        %v1701 = vld [vmem:[#allocation2 + $0x8] sm:$0xff]
        %v1702 = vld [vmem:[#allocation2 + $0x10] sm:$0xff]
        %v1703 = vld [vmem:[#allocation2 + $0x18] sm:$0xff]
        %v1704 = vld [vmem:[#allocation11] sm:$0xf]
        %v1705 = vld [vmem:[#allocation11 + $0x4] sm:$0xf]
        %v1706 = vld [vmem:[#allocation11 + $0x8] sm:$0xf]
        %v1707 = vld [vmem:[#allocation11 + $0xc] sm:$0xf]
        %v1708 = vld [vmem:[#allocation11 + $0x10] sm:$0xf]
        %v1709 = vld [vmem:[#allocation11 + $0x14] sm:$0xf]
        %v1710 = vld [vmem:[#allocation11 + $0x18] sm:$0xf]
        %v1711 = vld [vmem:[#allocation11 + $0x1c] sm:$0xf]
        %v1712 = vld [vmem:[#allocation11 + $0x20] sm:$0xf]
        %v1722 = vunpack.c.l.b16 %v1704
        %v1723 = vunpack.c.l.b16 %v1705
        %v1724 = vunpack.c.l.b16 %v1706
        %v1725 = vunpack.c.l.b16 %v1707
        %v1726 = vunpack.c.l.b16 %v1708
        %v1727 = vunpack.c.l.b16 %v1709
        %v1728 = vunpack.c.l.b16 %v1710
        %v1729 = vunpack.c.l.b16 %v1711
        %v1730 = vunpack.c.l.b16 %v1712
        %v1731 = vpack.c.b16 %v1723, %v1722
        %v1732 = vpack.c.b16 %v1725, %v1724
        %v1733 = vpack.c.b16 %v1727, %v1726
        %v1734 = vpack.c.b16 %v1729, %v1728
        %v1735 = vpack.c.b16 %v1730, %v1730
        %v1741 = vsel %vm1143, %v1700, 0
        %v1744 = vsel %vm1143, %v1701, 0
        %v1747 = vsel %vm1143, %v1702, 0
        %v1750 = vsel %vm1143, %v1703, 0
        %v1753 = vsel %vm1156, %v1735, 0
        %1755 = vmatprep.subr.bf16.mxu0 0
        %1756 = vmatpush1.bf16.msra.mxu0 %v1731
        %1757 = vmatprep.subr.bf16.mxu0 0
        %1758 = vmatpush1.bf16.msra.mxu0 %v1732
        %1759 = vmatprep.subr.bf16.mxu0 0
        %1760 = vmatpush1.bf16.msra.mxu0 %v1733
        %1761 = vmatprep.subr.bf16.mxu0 0
        %1762 = vmatpush1.bf16.msra.mxu0 %v1734
        %1763 = vmatprep.subr.bf16.mxu0 0
        %1764 = vmatpush1.bf16.msra.mxu0 %v1753
        %1765 = vmatprep.subr.bf16.mxu0 0
        %1766 = vmatpush1.bf16.msra.mxu0 0
        %1767 = vmatprep.subr.bf16.mxu0 0
        %1768 = vmatpush1.bf16.msra.mxu0 0
        %1769 = vmatprep.subr.bf16.mxu0 0
        %1770 = vmatpush1.bf16.msra.mxu0 0
        %1771 = vmatprep.subr.bf16.mxu0 0
        %1772 = vmatpush1.bf16.msra.mxu0 0
        %1773 = vmatprep.subr.bf16.mxu0 0
        %1774 = vmatpush1.bf16.msra.mxu0 0
        %1775 = vmatprep.subr.bf16.mxu0 0
        %1776 = vmatpush1.bf16.msra.mxu0 0
        %1777 = vmatprep.subr.bf16.mxu0 0
        %1778 = vmatpush1.bf16.msra.mxu0 0
        %1779 = vmatprep.subr.bf16.mxu0 0
        %1780 = vmatpush1.bf16.msra.mxu0 0
        %1781 = vmatprep.subr.bf16.mxu0 0
        %1782 = vmatpush1.bf16.msra.mxu0 0
        %1783 = vmatprep.subr.bf16.mxu0 0
        %1784 = vmatpush1.bf16.msra.mxu0 0
        %1785 = vmatprep.subr.bf16.mxu0 0
        %1786 = vmatpush1.bf16.msra.mxu0 0
        %1787 = vmatprep.mubr.bf16.mxu0 0
        %1788 = vmatmul.mubr.bf16.gmra.mrb[0].mxu0 %v1741
        %v1789 = vpop.f32.mrb[0].mxu0
        %v1790 = vadd.f32 %v1114, %v1789
        %v1791 = vpop.f32.mrb[0].mxu0
        %v1792 = vpop.f32.mrb[0].mxu0
        %v1793 = vadd.f32 %v1114, %v1792
        %v1794 = vpop.f32.mrb[0].mxu0
        %1795 = vmatprep.mubr.bf16.mxu0 0
        %1796 = vmatmul.mubr.bf16.gmra.mrb[0].mxu0 %v1744
        %v1797 = vpop.f32.mrb[0].mxu0
        %v1798 = vadd.f32 %v1114, %v1797
        %v1799 = vpop.f32.mrb[0].mxu0
        %v1800 = vpop.f32.mrb[0].mxu0
        %v1801 = vadd.f32 %v1114, %v1800
        %v1802 = vpop.f32.mrb[0].mxu0
        %1803 = vmatprep.mubr.bf16.mxu0 0
        %1804 = vmatmul.mubr.bf16.gmra.mrb[0].mxu0 %v1747
        %v1805 = vpop.f32.mrb[0].mxu0
        %v1806 = vadd.f32 %v1114, %v1805
        %v1807 = vpop.f32.mrb[0].mxu0
        %v1808 = vpop.f32.mrb[0].mxu0
        %v1809 = vadd.f32 %v1114, %v1808
        %v1810 = vpop.f32.mrb[0].mxu0
        %1811 = vmatprep.mubr.bf16.mxu0 0
        %1812 = vmatmul.mubr.bf16.gmra.mrb[0].mxu0 %v1750
        %v1813 = vpop.f32.mrb[0].mxu0
        %v1814 = vadd.f32 %v1114, %v1813
        %v1815 = vpop.f32.mrb[0].mxu0
        %v1816 = vpop.f32.mrb[0].mxu0
        %v1817 = vadd.f32 %v1114, %v1816
        %v1818 = vpop.f32.mrb[0].mxu0
        %1819 = vdwg.mxu0
        %v1820 = vpack.c.bf16 %v1793, %v1790
        %v1821 = vpack.c.bf16 %v1801, %v1798
        %v1822 = vpack.c.bf16 %v1809, %v1806
        %v1823 = vpack.c.bf16 %v1817, %v1814
        %v1828 = vunpack.c.l.b16 %v1820
        %v1829 = vunpack.c.h.b16 %v1820
        %v1830 = vunpack.c.l.b16 %v1821
        %v1831 = vunpack.c.h.b16 %v1821
        %v1832 = vunpack.c.l.b16 %v1822
        %v1833 = vunpack.c.h.b16 %v1822
        %v1834 = vunpack.c.l.b16 %v1823
        %v1835 = vunpack.c.h.b16 %v1823
        %v1836 = vpack.c.b16 %v1828, %v1828
        %v1837 = vpack.c.b16 %v1829, %v1829
        %v1838 = vpack.c.b16 %v1830, %v1830
        %v1839 = vpack.c.b16 %v1831, %v1831
        %v1840 = vpack.c.b16 %v1832, %v1832
        %v1841 = vpack.c.b16 %v1833, %v1833
        %v1842 = vpack.c.b16 %v1834, %v1834
        %v1843 = vpack.c.b16 %v1835, %v1835
        %1852 = vst [vmem:[%s482 + $0x20] sm:$0xf] %v1836
        %1853 = vst [vmem:[%s482 + $0x24] sm:$0xf] %v1837
        %1854 = vst [vmem:[%s482 + $0x28] sm:$0xf] %v1838
        %1855 = vst [vmem:[%s482 + $0x2c] sm:$0xf] %v1839
        %1856 = vst [vmem:[%s482 + $0x30] sm:$0xf] %v1840
        %1857 = vst [vmem:[%s482 + $0x34] sm:$0xf] %v1841
        %1858 = vst [vmem:[%s482 + $0x38] sm:$0xf] %v1842
        %1859 = vst [vmem:[%s482 + $0x3c] sm:$0xf] %v1843
        %v1860 = vadd.f32 %v1790, %v1793
        %v1861 = vadd.f32 %v1860, %v1798
        %v1862 = vadd.f32 %v1861, %v1801
        %v1863 = vadd.f32 %v1862, %v1806
        %v1864 = vadd.f32 %v1863, %v1809
        %v1865 = vadd.f32 %v1864, %v1814
        %v1866 = vadd.f32 %v1865, %v1817
        %v1867 = vrot.slane %v1866, 4
        %v1868 = vadd.f32 %v1866, %v1867
        %v1869 = vrot.slane %v1868, 2
        %v1870 = vadd.f32 %v1868, %v1869
        %v1871 = vrot.slane %v1870, 1
        %v1872 = vadd.f32 %v1870, %v1871
        %v1873 = vmul.f32 %v1872, 0.015625
        %v1874 = vsub.f32 %v1790, %v1873
        %v1875 = vsub.f32 %v1793, %v1873
        %v1876 = vsub.f32 %v1798, %v1873
        %v1877 = vsub.f32 %v1801, %v1873
        %v1878 = vsub.f32 %v1806, %v1873
        %v1879 = vsub.f32 %v1809, %v1873
        %v1880 = vsub.f32 %v1814, %v1873
        %v1881 = vsub.f32 %v1817, %v1873
        %v1882 = vmul.f32 %v1874, %v1874
        %v1883 = vmul.f32 %v1875, %v1875
        %v1884 = vmul.f32 %v1876, %v1876
        %v1885 = vmul.f32 %v1877, %v1877
        %v1886 = vmul.f32 %v1878, %v1878
        %v1887 = vmul.f32 %v1879, %v1879
        %v1888 = vmul.f32 %v1880, %v1880
        %v1889 = vmul.f32 %v1881, %v1881
        %v1890 = vadd.f32 %v1882, %v1883
        %v1891 = vadd.f32 %v1890, %v1884
        %v1892 = vadd.f32 %v1891, %v1885
        %v1893 = vadd.f32 %v1892, %v1886
        %v1894 = vadd.f32 %v1893, %v1887
        %v1895 = vadd.f32 %v1894, %v1888
        %v1896 = vadd.f32 %v1895, %v1889
        %v1897 = vrot.slane %v1896, 4
        %v1898 = vadd.f32 %v1896, %v1897
        %v1899 = vrot.slane %v1898, 2
        %v1900 = vadd.f32 %v1898, %v1899
        %v1901 = vrot.slane %v1900, 1
        %v1902 = vadd.f32 %v1900, %v1901
        %1903 = vst [vmem:[%s489 + $0x1] sm:$0x1] %v1872
        %1904 = vst [vmem:[%s496 + $0x1] sm:$0x1] %v1902
        %s1905 = sand.u32 %s207, 1
        %s1906 = scalar_lea.sflag [#allocation5], %s1905
        %s1907 = sand.u32 %s207, 1
        %s1908 = smul.addr %s1907, 64
        %s1909 = scalar_lea.vmem [#allocation14], %s1908
        %s1910 = sand.u32 %s34, 1
        %s1911 = scalar_lea.sflag [#allocation16], %s1910
        %s1912 = sand.u32 %s235, 1
        %s1913 = smul.addr %s1912, 8
        %s1914 = scalar_lea.vmem [#allocation15], %s1913
        %s1915 = sand.u32 %s34, 1
        %s1916 = scalar_lea.sflag [#allocation16], %s1915
        %s1917 = sand.u32 %s263, 1
        %s1918 = smul.addr %s1917, 8
        %s1919 = scalar_lea.vmem [#allocation17], %s1918
        // Predicated region
        $region69: #{up_conv_forward.2} parent=43 // pred_check
          %p1920 = pneg %p217
        $region70: #{up_conv_forward.2} parent=43 // pred_check_branch
          %1922 = sbr.rel (%p1920) target = $region72
        $region71: #{up_conv_forward.2} parent=43 // pred_region
          %s1923 = smul.u32 16, %s39
          %s1925 = ssub.s32 1024, 1024
          %1926 = vsyncadd %s1906, %s1925
          %s1927 = smul.addr %s38, 64
          %s1928 = sadd.s32 %s1923, %s1927
          %s1929 = smul.addr %s1928, 64
          %s1930 = scalar_lea.hbm %s6, %s1929
          %s1931 = sshll.u32 %s1909, 4
          %s1932 = int_to_ptr.vmem [resolvable:$true] %s1931
          %1937 = dma.vmem_to_hbm [thread:$0]  %s1932, 1024, %s1930, %s1906, 64, 64, 4
        $region72: #{up_conv_forward.2} parent=43 // pred_fallthru
          _
        // Predicated region
        $region73: #{up_conv_forward.2} parent=43 // pred_check
          %p1938 = pneg %p245
        $region74: #{up_conv_forward.2} parent=43 // pred_check_branch
          %1940 = sbr.rel (%p1938) target = $region76
        $region75: #{up_conv_forward.2} parent=43 // pred_region
          %s1942 = ssub.s32 128, 128
          %1943 = vsyncadd %s1911, %s1942
          %s1944 = smul.addr %s38, 4
          %s1945 = sadd.s32 %s39, %s1944
          %s1946 = smul.addr %s1945, 128
          %s1947 = scalar_lea.hbm %s7, %s1946
          %s1949 = sshll.u32 %s1914, 4
          %s1950 = int_to_ptr.vmem [resolvable:$true] %s1949
          %1952 = dma.vmem_to_hbm [thread:$0]  %s1950, 128, %s1947, %s1911
        $region76: #{up_conv_forward.2} parent=43 // pred_fallthru
          _
        // Predicated region
        $region77: #{up_conv_forward.2} parent=43 // pred_check
          %p1953 = pneg %p273
        $region78: #{up_conv_forward.2} parent=43 // pred_check_branch
          %1955 = sbr.rel (%p1953) target = $region80
        $region79: #{up_conv_forward.2} parent=43 // pred_region
          %s1957 = ssub.s32 128, 128
          %1958 = vsyncadd %s1916, %s1957
          %s1959 = smul.addr %s38, 4
          %s1960 = sadd.s32 %s39, %s1959
          %s1961 = smul.addr %s1960, 128
          %s1962 = scalar_lea.hbm %s8, %s1961
          %s1964 = sshll.u32 %s1919, 4
          %s1965 = int_to_ptr.vmem [resolvable:$true] %s1964
          %1967 = dma.vmem_to_hbm [thread:$0]  %s1965, 128, %s1962, %s1916
        $region80: #{up_conv_forward.2} parent=43 // pred_fallthru
          _
      $region44: #{up_conv_forward.2} parent=5 // pred_fallthru
        _
      %p1968 = scmp.le.s32.totalorder 2, %s29
      // Predicated region
      $region81: #{up_conv_forward.2} parent=5 // pred_check
        %p1969 = pneg %p1968
      $region82: #{up_conv_forward.2} parent=5 // pred_check_branch
        %1971 = sbr.rel (%p1969) target = $region84
      $region83: #{up_conv_forward.2} parent=5 // pred_region
        %s1972 = ssub.s32 %s29, 2
        // Predicated region
        $region85: #{up_conv_forward.2} parent=83 // pred_check
          %p1973 = pneg %p223
        $region86: #{up_conv_forward.2} parent=83 // pred_check_branch
          %1975 = sbr.rel (%p1973) target = $region88
        $region87: #{up_conv_forward.2} parent=83 // pred_region
          %s1976 = sand.u32 %s208, 1
          %s1977 = scalar_lea.sflag [#allocation5], %s1976
          %s1978 = sand.u32 %s208, 1
          %s1979 = smul.addr %s1978, 64
          %s1980 = scalar_lea.vmem [#allocation14], %s1979
          %1981 = dma.done %s1977, 1024
        $region88: #{up_conv_forward.2} parent=83 // pred_fallthru
          _
        // Predicated region
        $region89: #{up_conv_forward.2} parent=83 // pred_check
          %p1982 = pneg %p251
        $region90: #{up_conv_forward.2} parent=83 // pred_check_branch
          %1984 = sbr.rel (%p1982) target = $region92
        $region91: #{up_conv_forward.2} parent=83 // pred_region
          %s1985 = sand.u32 %s35, 1
          %s1986 = scalar_lea.sflag [#allocation16], %s1985
          %s1987 = sand.u32 %s236, 1
          %s1988 = smul.addr %s1987, 8
          %s1989 = scalar_lea.vmem [#allocation15], %s1988
          %1990 = dma.done %s1986, 128
        $region92: #{up_conv_forward.2} parent=83 // pred_fallthru
          _
        // Predicated region
        $region93: #{up_conv_forward.2} parent=83 // pred_check
          %p1991 = pneg %p279
        $region94: #{up_conv_forward.2} parent=83 // pred_check_branch
          %1993 = sbr.rel (%p1991) target = $region96
        $region95: #{up_conv_forward.2} parent=83 // pred_region
          %s1994 = sand.u32 %s35, 1
          %s1995 = scalar_lea.sflag [#allocation16], %s1994
          %s1996 = sand.u32 %s264, 1
          %s1997 = smul.addr %s1996, 8
          %s1998 = scalar_lea.vmem [#allocation17], %s1997
          %1999 = dma.done %s1995, 128
        $region96: #{up_conv_forward.2} parent=83 // pred_fallthru
          _
      $region84: #{up_conv_forward.2} parent=5 // pred_fallthru
        _
    $region6: #{up_conv_forward.2} parent=1 // loop_footer
      %s33 = sadd.s32 1, %s29
    $region7: #{up_conv_forward.2} parent=1 // loop_footer_branch
      %28 = sbr.rel target = $region3
    $region8: #{up_conv_forward.2} parent=1 // loop_exit
      _
    %2000 = vsyncpa [#allocation4], 1
    %s2001 = scalar_lea.sflag [#allocation4], 1
    %2002 = vsyncpa %s2001, 1
    %2003 = vsyncpa [#allocation7], 1
    %s2004 = scalar_lea.sflag [#allocation7], 1
    %2005 = vsyncpa %s2004, 1
    %2006 = vsyncpa [#allocation10], 1
    %2007 = vsyncpa [#allocation13], 1
    %2008 = vsyncpa [#allocation5], 1
    %s2009 = scalar_lea.sflag [#allocation5], 1
    %2010 = vsyncpa %s2009, 1
    %2011 = vsyncpa [#allocation16], 1
    %s2012 = scalar_lea.sflag [#allocation16], 1
    %2013 = vsyncpa %s2012, 1

</llo_original>
